<compile_context>
chip_gen: v7x
topology: tpu7x:2x2x1
jax: 0.10.0
libtpu: 0.0.40
codegen_flags: <defaults>
</compile_context>

<pallas_src>
import math

import jax
import jax.numpy as jnp
from jax.experimental import pallas as pl
from jax.experimental.pallas import tpu as pltpu  # noqa: F401  (TPU backend)

B = 2
S = 50
D = 32
NUM_HEADS = 4
DH = D // NUM_HEADS
EPS = 1e-5
NEG_BIG = -1e30


def multihead_kernel(qkv_ref, mask_ref, w_ref, b_ref, o_ref):
    """Fused MultiHead forward (batch-fused attention).

    qkv_ref  : [3, B*S, D] f32  stacked raw Q, K, V
    mask_ref : [B*S, B*S]  f32  additive mask (0 valid / -1e30 masked), block-diagonal
    w_ref    : [4, D, D]   f32  (Wq*1/sqrt(dh), Wk, Wv, Wo), applied as x @ W
    b_ref    : [8, D]      f32  rows: gamma, beta, bq*1/sqrt(dh), bk, bv, bo, pad, pad
    o_ref    : [B*S, D]    f32
    """
    bs, d = o_ref.shape
    dh = d // NUM_HEADS

    gamma = b_ref[0:1, :]
    beta = b_ref[1:2, :]

    def ln_proj(x_idx, w_idx, b_row):
        x = qkv_ref[x_idx]                                   # [BS, D]
        mean = jnp.mean(x, axis=-1, keepdims=True)
        xc = x - mean
        var = jnp.mean(xc * xc, axis=-1, keepdims=True)
        xn = xc * jax.lax.rsqrt(var + EPS) * gamma + beta
        return (jnp.dot(xn, w_ref[w_idx], preferred_element_type=jnp.float32)
                + b_ref[b_row:b_row + 1, :])

    # Input projections; 1/sqrt(dh) already folded into Wq / bq at param-prep time.
    qp = ln_proj(0, 0, 2)
    kp = ln_proj(1, 1, 3)
    vp = ln_proj(2, 2, 4)

    # Per-head lane masks: head h occupies lanes [h*dh, (h+1)*dh).
    lane = jax.lax.broadcasted_iota(jnp.int32, (1, d), 1)

    att = jnp.zeros((bs, d), jnp.float32)
    for h in range(NUM_HEADS):                               # static unroll over 4 heads
        hm = ((lane >= h * dh) & (lane < (h + 1) * dh)).astype(jnp.float32)
        # score[i, j] = sum_{c in head h} qp[i, c] * kp[j, c]   over all B*S rows at once
        s = jax.lax.dot_general(qp * hm, kp, (((1,), (1,)), ((), ())),
                                preferred_element_type=jnp.float32)      # [BS, BS]
        s = s + mask_ref[...]                                # block-diag additive mask (re-read)
        m = jnp.max(s, axis=-1, keepdims=True)
        p = jnp.exp(s - m)
        denom = jnp.sum(p, axis=-1, keepdims=True)
        p = p * pl.reciprocal(denom, approx=True)            # EUP approx recip
        # Head output lands in its own lanes; accumulating across heads == merging heads.
        att = att + jnp.dot(p, vp * hm, preferred_element_type=jnp.float32)

    out = jnp.dot(att, w_ref[3], preferred_element_type=jnp.float32) + b_ref[5:6, :]
    # TODO(synk): dropout(p=0.1) is identity at inference; training-mode dropout would need
    #             in-kernel PRNG (pltpu.prng_seed / prng_random_bits).
    o_ref[...] = qkv_ref[0] + out                            # residual re-read at store point


def prepare_params(params):
    """One-time parameter packing: fold 1/sqrt(dh) into Wq/bq, stack weights & vectors."""
    scale = jnp.float32(1.0 / math.sqrt(DH))
    w_pack = jnp.stack(
        [params["wq"] * scale, params["wk"], params["wv"], params["wo"]]
    ).astype(jnp.float32)                                    # [4, D, D]
    zeros = jnp.zeros((D,), jnp.float32)
    b_pack = jnp.stack(
        [params["gamma"], params["beta"], params["bq"] * scale,
         params["bk"], params["bv"], params["bo"], zeros, zeros]
    ).astype(jnp.float32)                                    # [8, D]
    return w_pack, b_pack


def multihead(q, k, v, mask, w_pack, b_pack):
    """q, k, v: [B, S, D] f32; mask: [B, 1, S, S] bool (True = masked). Returns [B, S, D]."""
    b, s, d = q.shape
    bs = b * s

    qkv = jnp.stack([q.reshape(bs, d), k.reshape(bs, d), v.reshape(bs, d)])   # [3, BS, D]

    # Block-diagonal additive mask over the fused batch axis:
    #   within-batch: 0 (valid) / -1e30 (masked); cross-batch: -1e30.
    add = jnp.where(mask.reshape(b, s, s), jnp.float32(NEG_BIG), jnp.float32(0.0))
    full = jnp.full((b, s, b, s), jnp.float32(NEG_BIG))
    full = full.at[jnp.arange(b), :, jnp.arange(b), :].set(add)
    add_mask = full.reshape(bs, bs)

    def fullspec(shape):
        return pl.BlockSpec(shape, lambda *_: (0,) * len(shape))

    out2 = pl.pallas_call(
        multihead_kernel,
        out_shape=jax.ShapeDtypeStruct((bs, d), jnp.float32),
        grid=(),
        in_specs=[fullspec((3, bs, d)), fullspec((bs, bs)),
                  fullspec((4, d, d)), fullspec((8, d))],
        out_specs=fullspec((bs, d)),
    )(qkv, add_mask, w_pack, b_pack)
    return out2.reshape(b, s, d)


def multihead_reference(q, k, v, mask, params):
    """Pure-JAX mirror of the torch MultiHead forward (eval mode)."""
    gamma, beta = params["gamma"], params["beta"]

    def ln(x):
        mean = x.mean(-1, keepdims=True)
        var = ((x - mean) ** 2).mean(-1, keepdims=True)
        return (x - mean) / jnp.sqrt(var + EPS) * gamma + beta

    b = q.shape[0]
    qn, kn, vn = ln(q), ln(k), ln(v)
    qp = qn @ params["wq"] + params["bq"]
    kp = kn @ params["wk"] + params["bk"]
    vp = vn @ params["wv"] + params["bv"]

    def split(x):
        return x.reshape(b, S, NUM_HEADS, DH).transpose(0, 2, 1, 3)   # [B, H, S, DH]

    qh, kh, vh = split(qp), split(kp), split(vp)
    score = jnp.einsum("bhsd,bhtd->bhst", qh, kh) / math.sqrt(DH)
    score = jnp.where(mask, -jnp.inf, score)          # mask [B,1,S,S] broadcasts over heads
    prob = jax.nn.softmax(score, axis=-1)
    out = jnp.einsum("bhst,bhtd->bhsd", prob, vh)
    out = out.transpose(0, 2, 1, 3).reshape(b, S, D)
    out = out @ params["wo"] + params["bo"]
    return q + out


if __name__ == "__main__":
    key = jax.random.PRNGKey(0)
    ks = jax.random.split(key, 13)

    q = jax.random.normal(ks[0], (B, S, D), jnp.float32)
    k = jax.random.normal(ks[1], (B, S, D), jnp.float32)
    v = jax.random.normal(ks[2], (B, S, D), jnp.float32)

    # Causal mask, [B, 1, S, S] bool, True = masked (matches torch masked_fill_ semantics).
    causal = jnp.triu(jnp.ones((S, S), jnp.bool_), k=1)
    mask = jnp.broadcast_to(causal[None, None, :, :], (B, 1, S, S))

    lim = 1.0 / math.sqrt(D)

    def unif(kk, shape):
        return jax.random.uniform(kk, shape, jnp.float32, -lim, lim)

    params = {
        "gamma": 1.0 + 0.1 * jax.random.normal(ks[3], (D,), jnp.float32),
        "beta": 0.1 * jax.random.normal(ks[4], (D,), jnp.float32),
        "wq": unif(ks[5], (D, D)), "bq": unif(ks[6], (D,)),
        "wk": unif(ks[7], (D, D)), "bk": unif(ks[8], (D,)),
        "wv": unif(ks[9], (D, D)), "bv": unif(ks[10], (D,)),
        "wo": unif(ks[11], (D, D)), "bo": unif(ks[12], (D,)),
    }

    # One-time parameter preparation (scale folding + packing), outside the per-call path.
    w_pack, b_pack = prepare_params(params)

    out = multihead(q, k, v, mask, w_pack, b_pack)
    out = jax.block_until_ready(out)

    ref = multihead_reference(q, k, v, mask, params)
    assert out.shape == (B, S, D)
    max_err = float(jnp.max(jnp.abs(out - ref)))
    assert jnp.allclose(out, ref, atol=1e-3, rtol=1e-3), \
        f"mismatch vs reference, max err {max_err}"

    print("KERNEL_OK")
</pallas_src>

<mosaic_0001>
module attributes {stable_mosaic.version = 11 : i64} {
  func.func @multihead_kernel(%arg0: memref<3x100x32xf32, #tpu.memory_space<vmem>>, %arg1: memref<100x100xf32, #tpu.memory_space<vmem>>, %arg2: memref<4x32x32xf32, #tpu.memory_space<vmem>>, %arg3: memref<8x32xf32, #tpu.memory_space<vmem>>, %arg4: memref<100x32xf32, #tpu.memory_space<vmem>>) attributes {dimension_semantics = [], scalar_prefetch = 0 : i64, scratch_operands = 0 : i64, tpu.core_type = #tpu.core_type<tc>} {
    %c0 = arith.constant 0 : index
    %c0_0 = arith.constant 0 : index
    %0 = vector.load %arg3[%c0, %c0_0] : memref<8x32xf32, #tpu.memory_space<vmem>>, vector<1x32xf32>
    %c1 = arith.constant 1 : index
    %c0_1 = arith.constant 0 : index
    %1 = vector.load %arg3[%c1, %c0_1] : memref<8x32xf32, #tpu.memory_space<vmem>>, vector<1x32xf32>
    %c0_2 = arith.constant 0 : index
    %c0_3 = arith.constant 0 : index
    %c0_4 = arith.constant 0 : index
    %2 = vector.load %arg0[%c0_2, %c0_3, %c0_4] : memref<3x100x32xf32, #tpu.memory_space<vmem>>, vector<1x100x32xf32>
    %3 = vector.shape_cast %2 : vector<1x100x32xf32> to vector<100x32xf32>
    %cst = arith.constant dense<0.000000e+00> : vector<100xf32>
    %4 = vector.multi_reduction <add>, %3, %cst [1] : vector<100x32xf32> to vector<100xf32>
    %5 = vector.shape_cast %4 : vector<100xf32> to vector<100x1xf32>
    %cst_5 = arith.constant 3.200000e+01 : f32
    %6 = vector.broadcast %cst_5 : f32 to vector<100x1xf32>
    %7 = arith.divf %5, %6 : vector<100x1xf32>
    %8 = vector.broadcast %7 : vector<100x1xf32> to vector<100x32xf32>
    %9 = arith.subf %3, %8 : vector<100x32xf32>
    %10 = arith.mulf %9, %9 : vector<100x32xf32>
    %cst_6 = arith.constant dense<0.000000e+00> : vector<100xf32>
    %11 = vector.multi_reduction <add>, %10, %cst_6 [1] : vector<100x32xf32> to vector<100xf32>
    %12 = vector.shape_cast %11 : vector<100xf32> to vector<100x1xf32>
    %cst_7 = arith.constant 3.200000e+01 : f32
    %13 = vector.broadcast %cst_7 : f32 to vector<100x1xf32>
    %14 = arith.divf %12, %13 : vector<100x1xf32>
    %cst_8 = arith.constant 9.99999974E-6 : f32
    %15 = vector.broadcast %cst_8 : f32 to vector<100x1xf32>
    %16 = arith.addf %14, %15 : vector<100x1xf32>
    %17 = math.rsqrt %16 : vector<100x1xf32>
    %18 = vector.broadcast %17 : vector<100x1xf32> to vector<100x32xf32>
    %19 = arith.mulf %9, %18 : vector<100x32xf32>
    %20 = vector.broadcast %0 : vector<1x32xf32> to vector<100x32xf32>
    %21 = arith.mulf %19, %20 : vector<100x32xf32>
    %22 = vector.broadcast %1 : vector<1x32xf32> to vector<100x32xf32>
    %23 = arith.addf %21, %22 : vector<100x32xf32>
    %c0_9 = arith.constant 0 : index
    %c0_10 = arith.constant 0 : index
    %c0_11 = arith.constant 0 : index
    %24 = vector.load %arg2[%c0_9, %c0_10, %c0_11] : memref<4x32x32xf32, #tpu.memory_space<vmem>>, vector<1x32x32xf32>
    %25 = vector.shape_cast %24 : vector<1x32x32xf32> to vector<32x32xf32>
    %cst_12 = arith.constant dense<0.000000e+00> : vector<100x32xf32>
    %26 = tpu.matmul %23, %25, %cst_12 {dimension_numbers = #tpu.dot_dimension_numbers<[1], [0], [0], [1], [0, 0, 1, 1], [], []>} : vector<100x32xf32>, vector<32x32xf32>, vector<100x32xf32> -> vector<100x32xf32>
    %c2 = arith.constant 2 : index
    %c0_13 = arith.constant 0 : index
    %27 = vector.load %arg3[%c2, %c0_13] : memref<8x32xf32, #tpu.memory_space<vmem>>, vector<1x32xf32>
    %28 = vector.broadcast %27 : vector<1x32xf32> to vector<100x32xf32>
    %29 = arith.addf %26, %28 : vector<100x32xf32>
    %c1_14 = arith.constant 1 : index
    %c0_15 = arith.constant 0 : index
    %c0_16 = arith.constant 0 : index
    %30 = vector.load %arg0[%c1_14, %c0_15, %c0_16] : memref<3x100x32xf32, #tpu.memory_space<vmem>>, vector<1x100x32xf32>
    %31 = vector.shape_cast %30 : vector<1x100x32xf32> to vector<100x32xf32>
    %cst_17 = arith.constant dense<0.000000e+00> : vector<100xf32>
    %32 = vector.multi_reduction <add>, %31, %cst_17 [1] : vector<100x32xf32> to vector<100xf32>
    %33 = vector.shape_cast %32 : vector<100xf32> to vector<100x1xf32>
    %cst_18 = arith.constant 3.200000e+01 : f32
    %34 = vector.broadcast %cst_18 : f32 to vector<100x1xf32>
    %35 = arith.divf %33, %34 : vector<100x1xf32>
    %36 = vector.broadcast %35 : vector<100x1xf32> to vector<100x32xf32>
    %37 = arith.subf %31, %36 : vector<100x32xf32>
    %38 = arith.mulf %37, %37 : vector<100x32xf32>
    %cst_19 = arith.constant dense<0.000000e+00> : vector<100xf32>
    %39 = vector.multi_reduction <add>, %38, %cst_19 [1] : vector<100x32xf32> to vector<100xf32>
    %40 = vector.shape_cast %39 : vector<100xf32> to vector<100x1xf32>
    %cst_20 = arith.constant 3.200000e+01 : f32
    %41 = vector.broadcast %cst_20 : f32 to vector<100x1xf32>
    %42 = arith.divf %40, %41 : vector<100x1xf32>
    %cst_21 = arith.constant 9.99999974E-6 : f32
    %43 = vector.broadcast %cst_21 : f32 to vector<100x1xf32>
    %44 = arith.addf %42, %43 : vector<100x1xf32>
    %45 = math.rsqrt %44 : vector<100x1xf32>
    %46 = vector.broadcast %45 : vector<100x1xf32> to vector<100x32xf32>
    %47 = arith.mulf %37, %46 : vector<100x32xf32>
    %48 = vector.broadcast %0 : vector<1x32xf32> to vector<100x32xf32>
    %49 = arith.mulf %47, %48 : vector<100x32xf32>
    %50 = vector.broadcast %1 : vector<1x32xf32> to vector<100x32xf32>
    %51 = arith.addf %49, %50 : vector<100x32xf32>
    %c1_22 = arith.constant 1 : index
    %c0_23 = arith.constant 0 : index
    %c0_24 = arith.constant 0 : index
    %52 = vector.load %arg2[%c1_22, %c0_23, %c0_24] : memref<4x32x32xf32, #tpu.memory_space<vmem>>, vector<1x32x32xf32>
    %53 = vector.shape_cast %52 : vector<1x32x32xf32> to vector<32x32xf32>
    %cst_25 = arith.constant dense<0.000000e+00> : vector<100x32xf32>
    %54 = tpu.matmul %51, %53, %cst_25 {dimension_numbers = #tpu.dot_dimension_numbers<[1], [0], [0], [1], [0, 0, 1, 1], [], []>} : vector<100x32xf32>, vector<32x32xf32>, vector<100x32xf32> -> vector<100x32xf32>
    %c3 = arith.constant 3 : index
    %c0_26 = arith.constant 0 : index
    %55 = vector.load %arg3[%c3, %c0_26] : memref<8x32xf32, #tpu.memory_space<vmem>>, vector<1x32xf32>
    %56 = vector.broadcast %55 : vector<1x32xf32> to vector<100x32xf32>
    %57 = arith.addf %54, %56 : vector<100x32xf32>
    %c2_27 = arith.constant 2 : index
    %c0_28 = arith.constant 0 : index
    %c0_29 = arith.constant 0 : index
    %58 = vector.load %arg0[%c2_27, %c0_28, %c0_29] : memref<3x100x32xf32, #tpu.memory_space<vmem>>, vector<1x100x32xf32>
    %59 = vector.shape_cast %58 : vector<1x100x32xf32> to vector<100x32xf32>
    %cst_30 = arith.constant dense<0.000000e+00> : vector<100xf32>
    %60 = vector.multi_reduction <add>, %59, %cst_30 [1] : vector<100x32xf32> to vector<100xf32>
    %61 = vector.shape_cast %60 : vector<100xf32> to vector<100x1xf32>
    %cst_31 = arith.constant 3.200000e+01 : f32
    %62 = vector.broadcast %cst_31 : f32 to vector<100x1xf32>
    %63 = arith.divf %61, %62 : vector<100x1xf32>
    %64 = vector.broadcast %63 : vector<100x1xf32> to vector<100x32xf32>
    %65 = arith.subf %59, %64 : vector<100x32xf32>
    %66 = arith.mulf %65, %65 : vector<100x32xf32>
    %cst_32 = arith.constant dense<0.000000e+00> : vector<100xf32>
    %67 = vector.multi_reduction <add>, %66, %cst_32 [1] : vector<100x32xf32> to vector<100xf32>
    %68 = vector.shape_cast %67 : vector<100xf32> to vector<100x1xf32>
    %cst_33 = arith.constant 3.200000e+01 : f32
    %69 = vector.broadcast %cst_33 : f32 to vector<100x1xf32>
    %70 = arith.divf %68, %69 : vector<100x1xf32>
    %cst_34 = arith.constant 9.99999974E-6 : f32
    %71 = vector.broadcast %cst_34 : f32 to vector<100x1xf32>
    %72 = arith.addf %70, %71 : vector<100x1xf32>
    %73 = math.rsqrt %72 : vector<100x1xf32>
    %74 = vector.broadcast %73 : vector<100x1xf32> to vector<100x32xf32>
    %75 = arith.mulf %65, %74 : vector<100x32xf32>
    %76 = vector.broadcast %0 : vector<1x32xf32> to vector<100x32xf32>
    %77 = arith.mulf %75, %76 : vector<100x32xf32>
    %78 = vector.broadcast %1 : vector<1x32xf32> to vector<100x32xf32>
    %79 = arith.addf %77, %78 : vector<100x32xf32>
    %c2_35 = arith.constant 2 : index
    %c0_36 = arith.constant 0 : index
    %c0_37 = arith.constant 0 : index
    %80 = vector.load %arg2[%c2_35, %c0_36, %c0_37] : memref<4x32x32xf32, #tpu.memory_space<vmem>>, vector<1x32x32xf32>
    %81 = vector.shape_cast %80 : vector<1x32x32xf32> to vector<32x32xf32>
    %cst_38 = arith.constant dense<0.000000e+00> : vector<100x32xf32>
    %82 = tpu.matmul %79, %81, %cst_38 {dimension_numbers = #tpu.dot_dimension_numbers<[1], [0], [0], [1], [0, 0, 1, 1], [], []>} : vector<100x32xf32>, vector<32x32xf32>, vector<100x32xf32> -> vector<100x32xf32>
    %c4 = arith.constant 4 : index
    %c0_39 = arith.constant 0 : index
    %83 = vector.load %arg3[%c4, %c0_39] : memref<8x32xf32, #tpu.memory_space<vmem>>, vector<1x32xf32>
    %84 = vector.broadcast %83 : vector<1x32xf32> to vector<100x32xf32>
    %85 = arith.addf %82, %84 : vector<100x32xf32>
    %86 = tpu.iota {dimensions = array<i32: 1>} : vector<1x32xi32>
    %cst_40 = arith.constant 0.000000e+00 : f32
    %87 = vector.broadcast %cst_40 : f32 to vector<100x32xf32>
    %c0_i32 = arith.constant 0 : i32
    %88 = vector.broadcast %c0_i32 : i32 to vector<1x32xi32>
    %89 = arith.cmpi sge, %86, %88 : vector<1x32xi32>
    %c8_i32 = arith.constant 8 : i32
    %90 = vector.broadcast %c8_i32 : i32 to vector<1x32xi32>
    %91 = arith.cmpi slt, %86, %90 : vector<1x32xi32>
    %92 = arith.andi %89, %91 : vector<1x32xi1>
    %93 = arith.extui %92 : vector<1x32xi1> to vector<1x32xi32>
    %94 = arith.sitofp %93 : vector<1x32xi32> to vector<1x32xf32>
    %95 = vector.broadcast %94 : vector<1x32xf32> to vector<100x32xf32>
    %96 = arith.mulf %29, %95 : vector<100x32xf32>
    %cst_41 = arith.constant dense<0.000000e+00> : vector<100x100xf32>
    %97 = tpu.matmul %96, %57, %cst_41 {dimension_numbers = #tpu.dot_dimension_numbers<[1], [1], [0], [0], [0, 0, 1, 0], [], []>} : vector<100x32xf32>, vector<100x32xf32>, vector<100x100xf32> -> vector<100x100xf32>
    %c0_42 = arith.constant 0 : index
    %c0_43 = arith.constant 0 : index
    %98 = vector.load %arg1[%c0_42, %c0_43] : memref<100x100xf32, #tpu.memory_space<vmem>>, vector<100x100xf32>
    %99 = arith.addf %97, %98 : vector<100x100xf32>
    %cst_44 = arith.constant dense<0xFF800000> : vector<100xf32>
    %100 = vector.multi_reduction <maximumf>, %99, %cst_44 [1] : vector<100x100xf32> to vector<100xf32>
    %101 = vector.shape_cast %100 : vector<100xf32> to vector<100x1xf32>
    %102 = vector.broadcast %101 : vector<100x1xf32> to vector<100x100xf32>
    %103 = arith.subf %99, %102 : vector<100x100xf32>
    %104 = math.exp %103 : vector<100x100xf32>
    %cst_45 = arith.constant dense<0.000000e+00> : vector<100xf32>
    %105 = vector.multi_reduction <add>, %104, %cst_45 [1] : vector<100x100xf32> to vector<100xf32>
    %106 = vector.shape_cast %105 : vector<100xf32> to vector<100x1xf32>
    %107 = tpu.reciprocal %106 {approx = true} : vector<100x1xf32> -> vector<100x1xf32>
    %108 = vector.broadcast %107 : vector<100x1xf32> to vector<100x100xf32>
    %109 = arith.mulf %104, %108 : vector<100x100xf32>
    %110 = vector.broadcast %94 : vector<1x32xf32> to vector<100x32xf32>
    %111 = arith.mulf %85, %110 : vector<100x32xf32>
    %cst_46 = arith.constant dense<0.000000e+00> : vector<100x32xf32>
    %112 = tpu.matmul %109, %111, %cst_46 {dimension_numbers = #tpu.dot_dimension_numbers<[1], [0], [0], [1], [0, 0, 1, 1], [], []>} : vector<100x100xf32>, vector<100x32xf32>, vector<100x32xf32> -> vector<100x32xf32>
    %113 = arith.addf %87, %112 : vector<100x32xf32>
    %c8_i32_47 = arith.constant 8 : i32
    %114 = vector.broadcast %c8_i32_47 : i32 to vector<1x32xi32>
    %115 = arith.cmpi sge, %86, %114 : vector<1x32xi32>
    %c16_i32 = arith.constant 16 : i32
    %116 = vector.broadcast %c16_i32 : i32 to vector<1x32xi32>
    %117 = arith.cmpi slt, %86, %116 : vector<1x32xi32>
    %118 = arith.andi %115, %117 : vector<1x32xi1>
    %119 = arith.extui %118 : vector<1x32xi1> to vector<1x32xi32>
    %120 = arith.sitofp %119 : vector<1x32xi32> to vector<1x32xf32>
    %121 = vector.broadcast %120 : vector<1x32xf32> to vector<100x32xf32>
    %122 = arith.mulf %29, %121 : vector<100x32xf32>
    %cst_48 = arith.constant dense<0.000000e+00> : vector<100x100xf32>
    %123 = tpu.matmul %122, %57, %cst_48 {dimension_numbers = #tpu.dot_dimension_numbers<[1], [1], [0], [0], [0, 0, 1, 0], [], []>} : vector<100x32xf32>, vector<100x32xf32>, vector<100x100xf32> -> vector<100x100xf32>
    %c0_49 = arith.constant 0 : index
    %c0_50 = arith.constant 0 : index
    %124 = vector.load %arg1[%c0_49, %c0_50] : memref<100x100xf32, #tpu.memory_space<vmem>>, vector<100x100xf32>
    %125 = arith.addf %123, %124 : vector<100x100xf32>
    %cst_51 = arith.constant dense<0xFF800000> : vector<100xf32>
    %126 = vector.multi_reduction <maximumf>, %125, %cst_51 [1] : vector<100x100xf32> to vector<100xf32>
    %127 = vector.shape_cast %126 : vector<100xf32> to vector<100x1xf32>
    %128 = vector.broadcast %127 : vector<100x1xf32> to vector<100x100xf32>
    %129 = arith.subf %125, %128 : vector<100x100xf32>
    %130 = math.exp %129 : vector<100x100xf32>
    %cst_52 = arith.constant dense<0.000000e+00> : vector<100xf32>
    %131 = vector.multi_reduction <add>, %130, %cst_52 [1] : vector<100x100xf32> to vector<100xf32>
    %132 = vector.shape_cast %131 : vector<100xf32> to vector<100x1xf32>
    %133 = tpu.reciprocal %132 {approx = true} : vector<100x1xf32> -> vector<100x1xf32>
    %134 = vector.broadcast %133 : vector<100x1xf32> to vector<100x100xf32>
    %135 = arith.mulf %130, %134 : vector<100x100xf32>
    %136 = vector.broadcast %120 : vector<1x32xf32> to vector<100x32xf32>
    %137 = arith.mulf %85, %136 : vector<100x32xf32>
    %cst_53 = arith.constant dense<0.000000e+00> : vector<100x32xf32>
    %138 = tpu.matmul %135, %137, %cst_53 {dimension_numbers = #tpu.dot_dimension_numbers<[1], [0], [0], [1], [0, 0, 1, 1], [], []>} : vector<100x100xf32>, vector<100x32xf32>, vector<100x32xf32> -> vector<100x32xf32>
    %139 = arith.addf %113, %138 : vector<100x32xf32>
    %c16_i32_54 = arith.constant 16 : i32
    %140 = vector.broadcast %c16_i32_54 : i32 to vector<1x32xi32>
    %141 = arith.cmpi sge, %86, %140 : vector<1x32xi32>
    %c24_i32 = arith.constant 24 : i32
    %142 = vector.broadcast %c24_i32 : i32 to vector<1x32xi32>
    %143 = arith.cmpi slt, %86, %142 : vector<1x32xi32>
    %144 = arith.andi %141, %143 : vector<1x32xi1>
    %145 = arith.extui %144 : vector<1x32xi1> to vector<1x32xi32>
    %146 = arith.sitofp %145 : vector<1x32xi32> to vector<1x32xf32>
    %147 = vector.broadcast %146 : vector<1x32xf32> to vector<100x32xf32>
    %148 = arith.mulf %29, %147 : vector<100x32xf32>
    %cst_55 = arith.constant dense<0.000000e+00> : vector<100x100xf32>
    %149 = tpu.matmul %148, %57, %cst_55 {dimension_numbers = #tpu.dot_dimension_numbers<[1], [1], [0], [0], [0, 0, 1, 0], [], []>} : vector<100x32xf32>, vector<100x32xf32>, vector<100x100xf32> -> vector<100x100xf32>
    %c0_56 = arith.constant 0 : index
    %c0_57 = arith.constant 0 : index
    %150 = vector.load %arg1[%c0_56, %c0_57] : memref<100x100xf32, #tpu.memory_space<vmem>>, vector<100x100xf32>
    %151 = arith.addf %149, %150 : vector<100x100xf32>
    %cst_58 = arith.constant dense<0xFF800000> : vector<100xf32>
    %152 = vector.multi_reduction <maximumf>, %151, %cst_58 [1] : vector<100x100xf32> to vector<100xf32>
    %153 = vector.shape_cast %152 : vector<100xf32> to vector<100x1xf32>
    %154 = vector.broadcast %153 : vector<100x1xf32> to vector<100x100xf32>
    %155 = arith.subf %151, %154 : vector<100x100xf32>
    %156 = math.exp %155 : vector<100x100xf32>
    %cst_59 = arith.constant dense<0.000000e+00> : vector<100xf32>
    %157 = vector.multi_reduction <add>, %156, %cst_59 [1] : vector<100x100xf32> to vector<100xf32>
    %158 = vector.shape_cast %157 : vector<100xf32> to vector<100x1xf32>
    %159 = tpu.reciprocal %158 {approx = true} : vector<100x1xf32> -> vector<100x1xf32>
    %160 = vector.broadcast %159 : vector<100x1xf32> to vector<100x100xf32>
    %161 = arith.mulf %156, %160 : vector<100x100xf32>
    %162 = vector.broadcast %146 : vector<1x32xf32> to vector<100x32xf32>
    %163 = arith.mulf %85, %162 : vector<100x32xf32>
    %cst_60 = arith.constant dense<0.000000e+00> : vector<100x32xf32>
    %164 = tpu.matmul %161, %163, %cst_60 {dimension_numbers = #tpu.dot_dimension_numbers<[1], [0], [0], [1], [0, 0, 1, 1], [], []>} : vector<100x100xf32>, vector<100x32xf32>, vector<100x32xf32> -> vector<100x32xf32>
    %165 = arith.addf %139, %164 : vector<100x32xf32>
    %c24_i32_61 = arith.constant 24 : i32
    %166 = vector.broadcast %c24_i32_61 : i32 to vector<1x32xi32>
    %167 = arith.cmpi sge, %86, %166 : vector<1x32xi32>
    %c32_i32 = arith.constant 32 : i32
    %168 = vector.broadcast %c32_i32 : i32 to vector<1x32xi32>
    %169 = arith.cmpi slt, %86, %168 : vector<1x32xi32>
    %170 = arith.andi %167, %169 : vector<1x32xi1>
    %171 = arith.extui %170 : vector<1x32xi1> to vector<1x32xi32>
    %172 = arith.sitofp %171 : vector<1x32xi32> to vector<1x32xf32>
    %173 = vector.broadcast %172 : vector<1x32xf32> to vector<100x32xf32>
    %174 = arith.mulf %29, %173 : vector<100x32xf32>
    %cst_62 = arith.constant dense<0.000000e+00> : vector<100x100xf32>
    %175 = tpu.matmul %174, %57, %cst_62 {dimension_numbers = #tpu.dot_dimension_numbers<[1], [1], [0], [0], [0, 0, 1, 0], [], []>} : vector<100x32xf32>, vector<100x32xf32>, vector<100x100xf32> -> vector<100x100xf32>
    %c0_63 = arith.constant 0 : index
    %c0_64 = arith.constant 0 : index
    %176 = vector.load %arg1[%c0_63, %c0_64] : memref<100x100xf32, #tpu.memory_space<vmem>>, vector<100x100xf32>
    %177 = arith.addf %175, %176 : vector<100x100xf32>
    %cst_65 = arith.constant dense<0xFF800000> : vector<100xf32>
    %178 = vector.multi_reduction <maximumf>, %177, %cst_65 [1] : vector<100x100xf32> to vector<100xf32>
    %179 = vector.shape_cast %178 : vector<100xf32> to vector<100x1xf32>
    %180 = vector.broadcast %179 : vector<100x1xf32> to vector<100x100xf32>
    %181 = arith.subf %177, %180 : vector<100x100xf32>
    %182 = math.exp %181 : vector<100x100xf32>
    %cst_66 = arith.constant dense<0.000000e+00> : vector<100xf32>
    %183 = vector.multi_reduction <add>, %182, %cst_66 [1] : vector<100x100xf32> to vector<100xf32>
    %184 = vector.shape_cast %183 : vector<100xf32> to vector<100x1xf32>
    %185 = tpu.reciprocal %184 {approx = true} : vector<100x1xf32> -> vector<100x1xf32>
    %186 = vector.broadcast %185 : vector<100x1xf32> to vector<100x100xf32>
    %187 = arith.mulf %182, %186 : vector<100x100xf32>
    %188 = vector.broadcast %172 : vector<1x32xf32> to vector<100x32xf32>
    %189 = arith.mulf %85, %188 : vector<100x32xf32>
    %cst_67 = arith.constant dense<0.000000e+00> : vector<100x32xf32>
    %190 = tpu.matmul %187, %189, %cst_67 {dimension_numbers = #tpu.dot_dimension_numbers<[1], [0], [0], [1], [0, 0, 1, 1], [], []>} : vector<100x100xf32>, vector<100x32xf32>, vector<100x32xf32> -> vector<100x32xf32>
    %191 = arith.addf %165, %190 : vector<100x32xf32>
    %c3_68 = arith.constant 3 : index
    %c0_69 = arith.constant 0 : index
    %c0_70 = arith.constant 0 : index
    %192 = vector.load %arg2[%c3_68, %c0_69, %c0_70] : memref<4x32x32xf32, #tpu.memory_space<vmem>>, vector<1x32x32xf32>
    %193 = vector.shape_cast %192 : vector<1x32x32xf32> to vector<32x32xf32>
    %cst_71 = arith.constant dense<0.000000e+00> : vector<100x32xf32>
    %194 = tpu.matmul %191, %193, %cst_71 {dimension_numbers = #tpu.dot_dimension_numbers<[1], [0], [0], [1], [0, 0, 1, 1], [], []>} : vector<100x32xf32>, vector<32x32xf32>, vector<100x32xf32> -> vector<100x32xf32>
    %c5 = arith.constant 5 : index
    %c0_72 = arith.constant 0 : index
    %195 = vector.load %arg3[%c5, %c0_72] : memref<8x32xf32, #tpu.memory_space<vmem>>, vector<1x32xf32>
    %196 = vector.broadcast %195 : vector<1x32xf32> to vector<100x32xf32>
    %197 = arith.addf %194, %196 : vector<100x32xf32>
    %c0_73 = arith.constant 0 : index
    %c0_74 = arith.constant 0 : index
    %c0_75 = arith.constant 0 : index
    %198 = vector.load %arg0[%c0_73, %c0_74, %c0_75] : memref<3x100x32xf32, #tpu.memory_space<vmem>>, vector<1x100x32xf32>
    %199 = vector.shape_cast %198 : vector<1x100x32xf32> to vector<100x32xf32>
    %200 = arith.addf %199, %197 : vector<100x32xf32>
    %c0_76 = arith.constant 0 : index
    %c0_77 = arith.constant 0 : index
    %201 = vector.load %arg4[%c0_76, %c0_77] : memref<100x32xf32, #tpu.memory_space<vmem>>, vector<100x32xf32>
    tpu.vector_store %arg4[%c0_76, %c0_77], %200 {strides = array<i32>} : memref<100x32xf32, #tpu.memory_space<vmem>>, vector<100x32xf32>,
    return
  }
}

</mosaic_0001>

<llo_original>
// kernel: tpu_custom_call.1
$region0: #{tpu_custom_call.1}
  #allocation0 [shape = 'u32[]', space=smem, size = 0x4, offset = 0x4, fixed_abs, tag = 'smem constant byte address 0x4 - core index']
  #allocation1 [shape = 'u32[144,128]{1,0:T(1,128)}', space=vmem, size = 0x12000, scoped, tag = 'internal scratch']
  %s0 = inlined_call_operand.vmem [shape: f32[3,100,32], index: 0, kind: input, shape index: {}]
  %s1 = inlined_call_operand.vmem [shape: f32[100,100], index: 1, kind: input, shape index: {}]
  %s2 = inlined_call_operand.vmem [shape: f32[4,32,32], index: 2, kind: input, shape index: {}]
  %s3 = inlined_call_operand.vmem [shape: f32[8,32], index: 3, kind: input, shape index: {}]
  %s4 = inlined_call_operand.vmem [shape: f32[100,32], index: 4, kind: output, shape index: {}]
  %s5 = sld [smem:[#allocation0]]
  $region26: #{tpu_custom_call.1} parent=0
    _
  %s7 = ssub.s32 1, %s5
  %s8 = scalar_select 0, %s7, %s5
  // Predicated region
  $region2: #{tpu_custom_call.1} parent=0 // pred_check
    _
  $region3: #{tpu_custom_call.1} parent=0 // pred_check_branch
    %10 = sbr.rel (0) target = $region5
  $region4: #{tpu_custom_call.1} parent=0 // pred_region
    _
  $region5: #{tpu_custom_call.1} parent=0 // pred_fallthru
    _
  // Predicated region
  $region6: #{tpu_custom_call.1} parent=0 // pred_check
    _
  $region7: #{tpu_custom_call.1} parent=0 // pred_check_branch
    %12 = sbr.rel (0) target = $region9
  $region8: #{tpu_custom_call.1} parent=0 // pred_region
    _
  $region9: #{tpu_custom_call.1} parent=0 // pred_fallthru
    _
  // Predicated region
  $region10: #{tpu_custom_call.1} parent=0 // pred_check
    _
  $region11: #{tpu_custom_call.1} parent=0 // pred_check_branch
    %14 = sbr.rel (0) target = $region13
  $region12: #{tpu_custom_call.1} parent=0 // pred_region
    _
  $region13: #{tpu_custom_call.1} parent=0 // pred_fallthru
    _
  // Predicated region
  $region14: #{tpu_custom_call.1} parent=0 // pred_check
    _
  $region15: #{tpu_custom_call.1} parent=0 // pred_check_branch
    %16 = sbr.rel (0) target = $region17
  $region16: #{tpu_custom_call.1} parent=0 // pred_region
    _
  $region17: #{tpu_custom_call.1} parent=0 // pred_fallthru
    _
  %v17 = vld [vmem:[%s3] sm:$0x1]
  %v18 = vld [vmem:[%s3 + $0x1] sm:$0x1]
  %v19 = vld [vmem:[%s0] sm:$0xff]
  %v20 = vld [vmem:[%s0 + $0x8] sm:$0xff]
  %v21 = vld [vmem:[%s0 + $0x10] sm:$0xff]
  %v22 = vld [vmem:[%s0 + $0x18] sm:$0xff]
  %v23 = vld [vmem:[%s0 + $0x20] sm:$0xff]
  %v24 = vld [vmem:[%s0 + $0x28] sm:$0xff]
  %v25 = vld [vmem:[%s0 + $0x30] sm:$0xff]
  %v26 = vld [vmem:[%s0 + $0x38] sm:$0xff]
  %v27 = vld [vmem:[%s0 + $0x40] sm:$0xff]
  %v28 = vld [vmem:[%s0 + $0x48] sm:$0xff]
  %v29 = vld [vmem:[%s0 + $0x50] sm:$0xff]
  %v30 = vld [vmem:[%s0 + $0x58] sm:$0xff]
  %v31 = vld [vmem:[%s0 + $0x60] sm:$0xf]
  %vm32 = vcmask 261120
  %v33 = vsel %vm32, %v19, 0.0
  %34 = vadd.xlane.f32.xlu0 %v33
  %v35 = vpop.xlane.xlu0 %34
  %v36 = vsel %vm32, %v20, 0.0
  %37 = vadd.xlane.f32.xlu0 %v36
  %v38 = vpop.xlane.xlu0 %37
  %v39 = vsel %vm32, %v21, 0.0
  %40 = vadd.xlane.f32.xlu0 %v39
  %v41 = vpop.xlane.xlu0 %40
  %v42 = vsel %vm32, %v22, 0.0
  %43 = vadd.xlane.f32.xlu0 %v42
  %v44 = vpop.xlane.xlu0 %43
  %v45 = vsel %vm32, %v23, 0.0
  %46 = vadd.xlane.f32.xlu0 %v45
  %v47 = vpop.xlane.xlu0 %46
  %v48 = vsel %vm32, %v24, 0.0
  %49 = vadd.xlane.f32.xlu0 %v48
  %v50 = vpop.xlane.xlu0 %49
  %v51 = vsel %vm32, %v25, 0.0
  %52 = vadd.xlane.f32.xlu0 %v51
  %v53 = vpop.xlane.xlu0 %52
  %v54 = vsel %vm32, %v26, 0.0
  %55 = vadd.xlane.f32.xlu0 %v54
  %v56 = vpop.xlane.xlu0 %55
  %v57 = vsel %vm32, %v27, 0.0
  %58 = vadd.xlane.f32.xlu0 %v57
  %v59 = vpop.xlane.xlu0 %58
  %v60 = vsel %vm32, %v28, 0.0
  %61 = vadd.xlane.f32.xlu0 %v60
  %v62 = vpop.xlane.xlu0 %61
  %v63 = vsel %vm32, %v29, 0.0
  %64 = vadd.xlane.f32.xlu0 %v63
  %v65 = vpop.xlane.xlu0 %64
  %v66 = vsel %vm32, %v30, 0.0
  %67 = vadd.xlane.f32.xlu0 %v66
  %v68 = vpop.xlane.xlu0 %67
  %vm69 = vcmask 257024
  %v70 = vsel %vm69, %v31, 0.0
  %71 = vadd.xlane.f32.xlu0 %v70
  %v72 = vpop.xlane.xlu0 %71
  %v73 = vrcp.pop 32.0
  %v74 = vmul.f32 %v35, %v73
  %v75 = vmul.f32 %v38, %v73
  %v76 = vmul.f32 %v41, %v73
  %v77 = vmul.f32 %v44, %v73
  %v78 = vmul.f32 %v47, %v73
  %v79 = vmul.f32 %v50, %v73
  %v80 = vmul.f32 %v53, %v73
  %v81 = vmul.f32 %v56, %v73
  %v82 = vmul.f32 %v59, %v73
  %v83 = vmul.f32 %v62, %v73
  %v84 = vmul.f32 %v65, %v73
  %v85 = vmul.f32 %v68, %v73
  %v86 = vmul.f32 %v72, %v73
  %v87 = vsub.f32 %v19, %v74
  %v88 = vsub.f32 %v20, %v75
  %v89 = vsub.f32 %v21, %v76
  %v90 = vsub.f32 %v22, %v77
  %v91 = vsub.f32 %v23, %v78
  %v92 = vsub.f32 %v24, %v79
  %v93 = vsub.f32 %v25, %v80
  %v94 = vsub.f32 %v26, %v81
  %v95 = vsub.f32 %v27, %v82
  %v96 = vsub.f32 %v28, %v83
  %v97 = vsub.f32 %v29, %v84
  %v98 = vsub.f32 %v30, %v85
  %v99 = vsub.f32 %v31, %v86
  %v100 = vmul.f32 %v87, %v87
  %v101 = vmul.f32 %v88, %v88
  %v102 = vmul.f32 %v89, %v89
  %v103 = vmul.f32 %v90, %v90
  %v104 = vmul.f32 %v91, %v91
  %v105 = vmul.f32 %v92, %v92
  %v106 = vmul.f32 %v93, %v93
  %v107 = vmul.f32 %v94, %v94
  %v108 = vmul.f32 %v95, %v95
  %v109 = vmul.f32 %v96, %v96
  %v110 = vmul.f32 %v97, %v97
  %v111 = vmul.f32 %v98, %v98
  %v112 = vmul.f32 %v99, %v99
  %v113 = vsel %vm32, %v100, 0.0
  %114 = vadd.xlane.f32.xlu0 %v113
  %v115 = vpop.xlane.xlu0 %114
  %v116 = vsel %vm32, %v101, 0.0
  %117 = vadd.xlane.f32.xlu0 %v116
  %v118 = vpop.xlane.xlu0 %117
  %v119 = vsel %vm32, %v102, 0.0
  %120 = vadd.xlane.f32.xlu0 %v119
  %v121 = vpop.xlane.xlu0 %120
  %v122 = vsel %vm32, %v103, 0.0
  %123 = vadd.xlane.f32.xlu0 %v122
  %v124 = vpop.xlane.xlu0 %123
  %v125 = vsel %vm32, %v104, 0.0
  %126 = vadd.xlane.f32.xlu0 %v125
  %v127 = vpop.xlane.xlu0 %126
  %v128 = vsel %vm32, %v105, 0.0
  %129 = vadd.xlane.f32.xlu0 %v128
  %v130 = vpop.xlane.xlu0 %129
  %v131 = vsel %vm32, %v106, 0.0
  %132 = vadd.xlane.f32.xlu0 %v131
  %v133 = vpop.xlane.xlu0 %132
  %v134 = vsel %vm32, %v107, 0.0
  %135 = vadd.xlane.f32.xlu0 %v134
  %v136 = vpop.xlane.xlu0 %135
  %v137 = vsel %vm32, %v108, 0.0
  %138 = vadd.xlane.f32.xlu0 %v137
  %v139 = vpop.xlane.xlu0 %138
  %v140 = vsel %vm32, %v109, 0.0
  %141 = vadd.xlane.f32.xlu0 %v140
  %v142 = vpop.xlane.xlu0 %141
  %v143 = vsel %vm32, %v110, 0.0
  %144 = vadd.xlane.f32.xlu0 %v143
  %v145 = vpop.xlane.xlu0 %144
  %v146 = vsel %vm32, %v111, 0.0
  %147 = vadd.xlane.f32.xlu0 %v146
  %v148 = vpop.xlane.xlu0 %147
  %v149 = vsel %vm69, %v112, 0.0
  %150 = vadd.xlane.f32.xlu0 %v149
  %v151 = vpop.xlane.xlu0 %150
  %v152 = vmul.f32 %v115, %v73
  %v153 = vmul.f32 %v118, %v73
  %v154 = vmul.f32 %v121, %v73
  %v155 = vmul.f32 %v124, %v73
  %v156 = vmul.f32 %v127, %v73
  %v157 = vmul.f32 %v130, %v73
  %v158 = vmul.f32 %v133, %v73
  %v159 = vmul.f32 %v136, %v73
  %v160 = vmul.f32 %v139, %v73
  %v161 = vmul.f32 %v142, %v73
  %v162 = vmul.f32 %v145, %v73
  %v163 = vmul.f32 %v148, %v73
  %v164 = vmul.f32 %v151, %v73
  %v165 = vadd.f32 %v152, 1e-05
  %v166 = vadd.f32 %v153, 1e-05
  %v167 = vadd.f32 %v154, 1e-05
  %v168 = vadd.f32 %v155, 1e-05
  %v169 = vadd.f32 %v156, 1e-05
  %v170 = vadd.f32 %v157, 1e-05
  %v171 = vadd.f32 %v158, 1e-05
  %v172 = vadd.f32 %v159, 1e-05
  %v173 = vadd.f32 %v160, 1e-05
  %v174 = vadd.f32 %v161, 1e-05
  %v175 = vadd.f32 %v162, 1e-05
  %v176 = vadd.f32 %v163, 1e-05
  %v177 = vadd.f32 %v164, 1e-05
  %v178 = vrsqrt.pop %v165
  %v179 = vrsqrt.pop %v166
  %v180 = vrsqrt.pop %v167
  %v181 = vrsqrt.pop %v168
  %v182 = vrsqrt.pop %v169
  %v183 = vrsqrt.pop %v170
  %v184 = vrsqrt.pop %v171
  %v185 = vrsqrt.pop %v172
  %v186 = vrsqrt.pop %v173
  %v187 = vrsqrt.pop %v174
  %v188 = vrsqrt.pop %v175
  %v189 = vrsqrt.pop %v176
  %v190 = vrsqrt.pop %v177
  %v191 = vmul.f32 %v87, %v178
  %v192 = vmul.f32 %v88, %v179
  %v193 = vmul.f32 %v89, %v180
  %v194 = vmul.f32 %v90, %v181
  %v195 = vmul.f32 %v91, %v182
  %v196 = vmul.f32 %v92, %v183
  %v197 = vmul.f32 %v93, %v184
  %v198 = vmul.f32 %v94, %v185
  %v199 = vmul.f32 %v95, %v186
  %v200 = vmul.f32 %v96, %v187
  %v201 = vmul.f32 %v97, %v188
  %v202 = vmul.f32 %v98, %v189
  %v203 = vmul.f32 %v99, %v190
  %v204 = vlaneseq
  %v205 = vshrl.u32 %v204, 7
  %v206 = vsub.s32 0, %v205
  %v207 = vrot.slane %v17, %v206
  %v208 = vmul.f32 %v191, %v207
  %v209 = vmul.f32 %v192, %v207
  %v210 = vmul.f32 %v193, %v207
  %v211 = vmul.f32 %v194, %v207
  %v212 = vmul.f32 %v195, %v207
  %v213 = vmul.f32 %v196, %v207
  %v214 = vmul.f32 %v197, %v207
  %v215 = vmul.f32 %v198, %v207
  %v216 = vmul.f32 %v199, %v207
  %v217 = vmul.f32 %v200, %v207
  %v218 = vmul.f32 %v201, %v207
  %v219 = vmul.f32 %v202, %v207
  %v220 = vmul.f32 %v203, %v207
  %v221 = vlaneseq
  %v222 = vshrl.u32 %v221, 7
  %v223 = vsub.s32 0, %v222
  %v224 = vrot.slane %v18, %v223
  %v225 = vadd.f32 %v208, %v224
  %v226 = vadd.f32 %v209, %v224
  %v227 = vadd.f32 %v210, %v224
  %v228 = vadd.f32 %v211, %v224
  %v229 = vadd.f32 %v212, %v224
  %v230 = vadd.f32 %v213, %v224
  %v231 = vadd.f32 %v214, %v224
  %v232 = vadd.f32 %v215, %v224
  %v233 = vadd.f32 %v216, %v224
  %v234 = vadd.f32 %v217, %v224
  %v235 = vadd.f32 %v218, %v224
  %v236 = vadd.f32 %v219, %v224
  %v237 = vadd.f32 %v220, %v224
  %v238 = vld [vmem:[%s2] sm:$0xff]
  %v239 = vld [vmem:[%s2 + $0x8] sm:$0xff]
  %v240 = vld [vmem:[%s2 + $0x10] sm:$0xff]
  %v241 = vld [vmem:[%s2 + $0x18] sm:$0xff]
  %v242 = vld [vmem:[%s3 + $0x2] sm:$0x1]
  %v243 = vlaneseq
  %v244 = vshrl.u32 %v243, 7
  %v245 = vsub.s32 0, %v244
  %v246 = vrot.slane %v242, %v245
  %v248 = vsel %vm32, %v225, 0
  %v251 = vsel %vm32, %v226, 0
  %v254 = vsel %vm32, %v227, 0
  %v257 = vsel %vm32, %v228, 0
  %v260 = vsel %vm32, %v229, 0
  %v263 = vsel %vm32, %v230, 0
  %v266 = vsel %vm32, %v231, 0
  %v269 = vsel %vm32, %v232, 0
  %v272 = vsel %vm32, %v233, 0
  %v275 = vsel %vm32, %v234, 0
  %v278 = vsel %vm32, %v235, 0
  %v281 = vsel %vm32, %v236, 0
  %v284 = vsel %vm32, %v237, 0
  %286 = vmatprep.subr.mxu0 0.0
  %287 = vmatpush1.msra.mxu0 %v238
  %288 = vmatprep.subr.mxu0 0.0
  %289 = vmatpush1.msra.mxu0 %v239
  %290 = vmatprep.subr.mxu0 0.0
  %291 = vmatpush1.msra.mxu0 %v240
  %292 = vmatprep.subr.mxu0 0.0
  %293 = vmatpush1.msra.mxu0 %v241
  %294 = vmatprep.subr.mxu0 0.0
  %295 = vmatpush1.msra.mxu0 0.0
  %296 = vmatprep.subr.mxu0 0.0
  %297 = vmatpush1.msra.mxu0 0.0
  %298 = vmatprep.subr.mxu0 0.0
  %299 = vmatpush1.msra.mxu0 0.0
  %300 = vmatprep.subr.mxu0 0.0
  %301 = vmatpush1.msra.mxu0 0.0
  %302 = vmatprep.subr.mxu0 0.0
  %303 = vmatpush1.msra.mxu0 0.0
  %304 = vmatprep.subr.mxu0 0.0
  %305 = vmatpush1.msra.mxu0 0.0
  %306 = vmatprep.subr.mxu0 0.0
  %307 = vmatpush1.msra.mxu0 0.0
  %308 = vmatprep.subr.mxu0 0.0
  %309 = vmatpush1.msra.mxu0 0.0
  %310 = vmatprep.subr.mxu0 0.0
  %311 = vmatpush1.msra.mxu0 0.0
  %312 = vmatprep.subr.mxu0 0.0
  %313 = vmatpush1.msra.mxu0 0.0
  %314 = vmatprep.subr.mxu0 0.0
  %315 = vmatpush1.msra.mxu0 0.0
  %316 = vmatprep.subr.mxu0 0.0
  %317 = vmatpush1.msra.mxu0 0.0
  %318 = vmatprep.subr.mxu0 0.0
  %319 = vmatpush1.msra.mxu0 0.0
  %320 = vmatprep.subr.mxu0 0.0
  %321 = vmatpush1.msra.mxu0 0.0
  %322 = vmatprep.subr.mxu0 0.0
  %323 = vmatpush1.msra.mxu0 0.0
  %324 = vmatprep.subr.mxu0 0.0
  %325 = vmatpush1.msra.mxu0 0.0
  %326 = vmatprep.subr.mxu0 0.0
  %327 = vmatpush1.msra.mxu0 0.0
  %328 = vmatprep.subr.mxu0 0.0
  %329 = vmatpush1.msra.mxu0 0.0
  %330 = vmatprep.subr.mxu0 0.0
  %331 = vmatpush1.msra.mxu0 0.0
  %332 = vmatprep.subr.mxu0 0.0
  %333 = vmatpush1.msra.mxu0 0.0
  %334 = vmatprep.subr.mxu0 0.0
  %335 = vmatpush1.msra.mxu0 0.0
  %336 = vmatprep.subr.mxu0 0.0
  %337 = vmatpush1.msra.mxu0 0.0
  %338 = vmatprep.subr.mxu0 0.0
  %339 = vmatpush1.msra.mxu0 0.0
  %340 = vmatprep.subr.mxu0 0.0
  %341 = vmatpush1.msra.mxu0 0.0
  %342 = vmatprep.subr.mxu0 0.0
  %343 = vmatpush1.msra.mxu0 0.0
  %344 = vmatprep.subr.mxu0 0.0
  %345 = vmatpush1.msra.mxu0 0.0
  %346 = vmatprep.subr.mxu0 0.0
  %347 = vmatpush1.msra.mxu0 0.0
  %348 = vmatprep.subr.mxu0 0.0
  %349 = vmatpush1.msra.mxu0 0.0
  %350 = vmatprep.mubr.f32.mxu0 0.0
  %351 = vmatmul.mubr.f32.gmra.mrb[0].mxu0 %v248
  %v352 = vpop.f32.mrb[0].mxu0
  %v353 = vadd.f32 %v246, %v352
  %v354 = vpop.f32.mrb[0].mxu0
  %355 = vmatprep.mubr.f32.mxu0 0.0
  %356 = vmatmul.mubr.f32.gmra.mrb[0].mxu0 %v251
  %v357 = vpop.f32.mrb[0].mxu0
  %v358 = vadd.f32 %v246, %v357
  %v359 = vpop.f32.mrb[0].mxu0
  %360 = vmatprep.mubr.f32.mxu0 0.0
  %361 = vmatmul.mubr.f32.gmra.mrb[0].mxu0 %v254
  %v362 = vpop.f32.mrb[0].mxu0
  %v363 = vadd.f32 %v246, %v362
  %v364 = vpop.f32.mrb[0].mxu0
  %365 = vmatprep.mubr.f32.mxu0 0.0
  %366 = vmatmul.mubr.f32.gmra.mrb[0].mxu0 %v257
  %v367 = vpop.f32.mrb[0].mxu0
  %v368 = vadd.f32 %v246, %v367
  %v369 = vpop.f32.mrb[0].mxu0
  %370 = vmatprep.mubr.f32.mxu0 0.0
  %371 = vmatmul.mubr.f32.gmra.mrb[0].mxu0 %v260
  %v372 = vpop.f32.mrb[0].mxu0
  %v373 = vadd.f32 %v246, %v372
  %v374 = vpop.f32.mrb[0].mxu0
  %375 = vmatprep.mubr.f32.mxu0 0.0
  %376 = vmatmul.mubr.f32.gmra.mrb[0].mxu0 %v263
  %v377 = vpop.f32.mrb[0].mxu0
  %v378 = vadd.f32 %v246, %v377
  %v379 = vpop.f32.mrb[0].mxu0
  %380 = vmatprep.mubr.f32.mxu0 0.0
  %381 = vmatmul.mubr.f32.gmra.mrb[0].mxu0 %v266
  %v382 = vpop.f32.mrb[0].mxu0
  %v383 = vadd.f32 %v246, %v382
  %v384 = vpop.f32.mrb[0].mxu0
  %385 = vmatprep.mubr.f32.mxu0 0.0
  %386 = vmatmul.mubr.f32.gmra.mrb[0].mxu0 %v269
  %v387 = vpop.f32.mrb[0].mxu0
  %v388 = vadd.f32 %v246, %v387
  %v389 = vpop.f32.mrb[0].mxu0
  %390 = vmatprep.mubr.f32.mxu0 0.0
  %391 = vmatmul.mubr.f32.gmra.mrb[0].mxu0 %v272
  %v392 = vpop.f32.mrb[0].mxu0
  %v393 = vadd.f32 %v246, %v392
  %v394 = vpop.f32.mrb[0].mxu0
  %395 = vmatprep.mubr.f32.mxu0 0.0
  %396 = vmatmul.mubr.f32.gmra.mrb[0].mxu0 %v275
  %v397 = vpop.f32.mrb[0].mxu0
  %v398 = vadd.f32 %v246, %v397
  %v399 = vpop.f32.mrb[0].mxu0
  %400 = vmatprep.mubr.f32.mxu0 0.0
  %401 = vmatmul.mubr.f32.gmra.mrb[0].mxu0 %v278
  %v402 = vpop.f32.mrb[0].mxu0
  %v403 = vadd.f32 %v246, %v402
  %v404 = vpop.f32.mrb[0].mxu0
  %405 = vmatprep.mubr.f32.mxu0 0.0
  %406 = vmatmul.mubr.f32.gmra.mrb[0].mxu0 %v281
  %v407 = vpop.f32.mrb[0].mxu0
  %v408 = vadd.f32 %v246, %v407
  %v409 = vpop.f32.mrb[0].mxu0
  %410 = vmatprep.mubr.f32.mxu0 0.0
  %411 = vmatmul.mubr.f32.gmra.mrb[0].mxu0 %v284
  %v412 = vpop.f32.mrb[0].mxu0
  %v413 = vadd.f32 %v246, %v412
  %v414 = vpop.f32.mrb[0].mxu0
  %415 = vdwg.mxu0
  %s416 = scalar_lea.vmem %s0, 104
  %v417 = vld [vmem:[%s416] sm:$0xff]
  %v418 = vld [vmem:[%s416 + $0x8] sm:$0xff]
  %v419 = vld [vmem:[%s416 + $0x10] sm:$0xff]
  %v420 = vld [vmem:[%s416 + $0x18] sm:$0xff]
  %v421 = vld [vmem:[%s416 + $0x20] sm:$0xff]
  %v422 = vld [vmem:[%s416 + $0x28] sm:$0xff]
  %v423 = vld [vmem:[%s416 + $0x30] sm:$0xff]
  %v424 = vld [vmem:[%s416 + $0x38] sm:$0xff]
  %v425 = vld [vmem:[%s416 + $0x40] sm:$0xff]
  %v426 = vld [vmem:[%s416 + $0x48] sm:$0xff]
  %v427 = vld [vmem:[%s416 + $0x50] sm:$0xff]
  %v428 = vld [vmem:[%s416 + $0x58] sm:$0xff]
  %v429 = vld [vmem:[%s416 + $0x60] sm:$0xf]
  %v430 = vsel %vm32, %v417, 0.0
  %431 = vadd.xlane.f32.xlu0 %v430
  %v432 = vpop.xlane.xlu0 %431
  %v433 = vsel %vm32, %v418, 0.0
  %434 = vadd.xlane.f32.xlu0 %v433
  %v435 = vpop.xlane.xlu0 %434
  %v436 = vsel %vm32, %v419, 0.0
  %437 = vadd.xlane.f32.xlu0 %v436
  %v438 = vpop.xlane.xlu0 %437
  %v439 = vsel %vm32, %v420, 0.0
  %440 = vadd.xlane.f32.xlu0 %v439
  %v441 = vpop.xlane.xlu0 %440
  %v442 = vsel %vm32, %v421, 0.0
  %443 = vadd.xlane.f32.xlu0 %v442
  %v444 = vpop.xlane.xlu0 %443
  %v445 = vsel %vm32, %v422, 0.0
  %446 = vadd.xlane.f32.xlu0 %v445
  %v447 = vpop.xlane.xlu0 %446
  %v448 = vsel %vm32, %v423, 0.0
  %449 = vadd.xlane.f32.xlu0 %v448
  %v450 = vpop.xlane.xlu0 %449
  %v451 = vsel %vm32, %v424, 0.0
  %452 = vadd.xlane.f32.xlu0 %v451
  %v453 = vpop.xlane.xlu0 %452
  %v454 = vsel %vm32, %v425, 0.0
  %455 = vadd.xlane.f32.xlu0 %v454
  %v456 = vpop.xlane.xlu0 %455
  %v457 = vsel %vm32, %v426, 0.0
  %458 = vadd.xlane.f32.xlu0 %v457
  %v459 = vpop.xlane.xlu0 %458
  %v460 = vsel %vm32, %v427, 0.0
  %461 = vadd.xlane.f32.xlu0 %v460
  %v462 = vpop.xlane.xlu0 %461
  %v463 = vsel %vm32, %v428, 0.0
  %464 = vadd.xlane.f32.xlu0 %v463
  %v465 = vpop.xlane.xlu0 %464
  %v466 = vsel %vm69, %v429, 0.0
  %467 = vadd.xlane.f32.xlu0 %v466
  %v468 = vpop.xlane.xlu0 %467
  %v469 = vmul.f32 %v432, %v73
  %v470 = vmul.f32 %v435, %v73
  %v471 = vmul.f32 %v438, %v73
  %v472 = vmul.f32 %v441, %v73
  %v473 = vmul.f32 %v444, %v73
  %v474 = vmul.f32 %v447, %v73
  %v475 = vmul.f32 %v450, %v73
  %v476 = vmul.f32 %v453, %v73
  %v477 = vmul.f32 %v456, %v73
  %v478 = vmul.f32 %v459, %v73
  %v479 = vmul.f32 %v462, %v73
  %v480 = vmul.f32 %v465, %v73
  %v481 = vmul.f32 %v468, %v73
  %v482 = vsub.f32 %v417, %v469
  %v483 = vsub.f32 %v418, %v470
  %v484 = vsub.f32 %v419, %v471
  %v485 = vsub.f32 %v420, %v472
  %v486 = vsub.f32 %v421, %v473
  %v487 = vsub.f32 %v422, %v474
  %v488 = vsub.f32 %v423, %v475
  %v489 = vsub.f32 %v424, %v476
  %v490 = vsub.f32 %v425, %v477
  %v491 = vsub.f32 %v426, %v478
  %v492 = vsub.f32 %v427, %v479
  %v493 = vsub.f32 %v428, %v480
  %v494 = vsub.f32 %v429, %v481
  %v495 = vmul.f32 %v482, %v482
  %v496 = vmul.f32 %v483, %v483
  %v497 = vmul.f32 %v484, %v484
  %v498 = vmul.f32 %v485, %v485
  %v499 = vmul.f32 %v486, %v486
  %v500 = vmul.f32 %v487, %v487
  %v501 = vmul.f32 %v488, %v488
  %v502 = vmul.f32 %v489, %v489
  %v503 = vmul.f32 %v490, %v490
  %v504 = vmul.f32 %v491, %v491
  %v505 = vmul.f32 %v492, %v492
  %v506 = vmul.f32 %v493, %v493
  %v507 = vmul.f32 %v494, %v494
  %v508 = vsel %vm32, %v495, 0.0
  %509 = vadd.xlane.f32.xlu0 %v508
  %v510 = vpop.xlane.xlu0 %509
  %v511 = vsel %vm32, %v496, 0.0
  %512 = vadd.xlane.f32.xlu0 %v511
  %v513 = vpop.xlane.xlu0 %512
  %v514 = vsel %vm32, %v497, 0.0
  %515 = vadd.xlane.f32.xlu0 %v514
  %v516 = vpop.xlane.xlu0 %515
  %v517 = vsel %vm32, %v498, 0.0
  %518 = vadd.xlane.f32.xlu0 %v517
  %v519 = vpop.xlane.xlu0 %518
  %v520 = vsel %vm32, %v499, 0.0
  %521 = vadd.xlane.f32.xlu0 %v520
  %v522 = vpop.xlane.xlu0 %521
  %v523 = vsel %vm32, %v500, 0.0
  %524 = vadd.xlane.f32.xlu0 %v523
  %v525 = vpop.xlane.xlu0 %524
  %v526 = vsel %vm32, %v501, 0.0
  %527 = vadd.xlane.f32.xlu0 %v526
  %v528 = vpop.xlane.xlu0 %527
  %v529 = vsel %vm32, %v502, 0.0
  %530 = vadd.xlane.f32.xlu0 %v529
  %v531 = vpop.xlane.xlu0 %530
  %v532 = vsel %vm32, %v503, 0.0
  %533 = vadd.xlane.f32.xlu0 %v532
  %v534 = vpop.xlane.xlu0 %533
  %v535 = vsel %vm32, %v504, 0.0
  %536 = vadd.xlane.f32.xlu0 %v535
  %v537 = vpop.xlane.xlu0 %536
  %v538 = vsel %vm32, %v505, 0.0
  %539 = vadd.xlane.f32.xlu0 %v538
  %v540 = vpop.xlane.xlu0 %539
  %v541 = vsel %vm32, %v506, 0.0
  %542 = vadd.xlane.f32.xlu0 %v541
  %v543 = vpop.xlane.xlu0 %542
  %v544 = vsel %vm69, %v507, 0.0
  %545 = vadd.xlane.f32.xlu0 %v544
  %v546 = vpop.xlane.xlu0 %545
  %v547 = vmul.f32 %v510, %v73
  %v548 = vmul.f32 %v513, %v73
  %v549 = vmul.f32 %v516, %v73
  %v550 = vmul.f32 %v519, %v73
  %v551 = vmul.f32 %v522, %v73
  %v552 = vmul.f32 %v525, %v73
  %v553 = vmul.f32 %v528, %v73
  %v554 = vmul.f32 %v531, %v73
  %v555 = vmul.f32 %v534, %v73
  %v556 = vmul.f32 %v537, %v73
  %v557 = vmul.f32 %v540, %v73
  %v558 = vmul.f32 %v543, %v73
  %v559 = vmul.f32 %v546, %v73
  %v560 = vadd.f32 %v547, 1e-05
  %v561 = vadd.f32 %v548, 1e-05
  %v562 = vadd.f32 %v549, 1e-05
  %v563 = vadd.f32 %v550, 1e-05
  %v564 = vadd.f32 %v551, 1e-05
  %v565 = vadd.f32 %v552, 1e-05
  %v566 = vadd.f32 %v553, 1e-05
  %v567 = vadd.f32 %v554, 1e-05
  %v568 = vadd.f32 %v555, 1e-05
  %v569 = vadd.f32 %v556, 1e-05
  %v570 = vadd.f32 %v557, 1e-05
  %v571 = vadd.f32 %v558, 1e-05
  %v572 = vadd.f32 %v559, 1e-05
  %v573 = vrsqrt.pop %v560
  %v574 = vrsqrt.pop %v561
  %v575 = vrsqrt.pop %v562
  %v576 = vrsqrt.pop %v563
  %v577 = vrsqrt.pop %v564
  %v578 = vrsqrt.pop %v565
  %v579 = vrsqrt.pop %v566
  %v580 = vrsqrt.pop %v567
  %v581 = vrsqrt.pop %v568
  %v582 = vrsqrt.pop %v569
  %v583 = vrsqrt.pop %v570
  %v584 = vrsqrt.pop %v571
  %v585 = vrsqrt.pop %v572
  %v586 = vmul.f32 %v482, %v573
  %v587 = vmul.f32 %v483, %v574
  %v588 = vmul.f32 %v484, %v575
  %v589 = vmul.f32 %v485, %v576
  %v590 = vmul.f32 %v486, %v577
  %v591 = vmul.f32 %v487, %v578
  %v592 = vmul.f32 %v488, %v579
  %v593 = vmul.f32 %v489, %v580
  %v594 = vmul.f32 %v490, %v581
  %v595 = vmul.f32 %v491, %v582
  %v596 = vmul.f32 %v492, %v583
  %v597 = vmul.f32 %v493, %v584
  %v598 = vmul.f32 %v494, %v585
  %v599 = vmul.f32 %v586, %v207
  %v600 = vmul.f32 %v587, %v207
  %v601 = vmul.f32 %v588, %v207
  %v602 = vmul.f32 %v589, %v207
  %v603 = vmul.f32 %v590, %v207
  %v604 = vmul.f32 %v591, %v207
  %v605 = vmul.f32 %v592, %v207
  %v606 = vmul.f32 %v593, %v207
  %v607 = vmul.f32 %v594, %v207
  %v608 = vmul.f32 %v595, %v207
  %v609 = vmul.f32 %v596, %v207
  %v610 = vmul.f32 %v597, %v207
  %v611 = vmul.f32 %v598, %v207
  %v612 = vadd.f32 %v599, %v224
  %v613 = vadd.f32 %v600, %v224
  %v614 = vadd.f32 %v601, %v224
  %v615 = vadd.f32 %v602, %v224
  %v616 = vadd.f32 %v603, %v224
  %v617 = vadd.f32 %v604, %v224
  %v618 = vadd.f32 %v605, %v224
  %v619 = vadd.f32 %v606, %v224
  %v620 = vadd.f32 %v607, %v224
  %v621 = vadd.f32 %v608, %v224
  %v622 = vadd.f32 %v609, %v224
  %v623 = vadd.f32 %v610, %v224
  %v624 = vadd.f32 %v611, %v224
  %s625 = scalar_lea.vmem %s2, 32
  %v626 = vld [vmem:[%s625] sm:$0xff]
  %v627 = vld [vmem:[%s625 + $0x8] sm:$0xff]
  %v628 = vld [vmem:[%s625 + $0x10] sm:$0xff]
  %v629 = vld [vmem:[%s625 + $0x18] sm:$0xff]
  %v630 = vld [vmem:[%s3 + $0x3] sm:$0x1]
  %v631 = vlaneseq
  %v632 = vshrl.u32 %v631, 7
  %v633 = vsub.s32 0, %v632
  %v634 = vrot.slane %v630, %v633
  %v636 = vsel %vm32, %v612, 0
  %v639 = vsel %vm32, %v613, 0
  %v642 = vsel %vm32, %v614, 0
  %v645 = vsel %vm32, %v615, 0
  %v648 = vsel %vm32, %v616, 0
  %v651 = vsel %vm32, %v617, 0
  %v654 = vsel %vm32, %v618, 0
  %v657 = vsel %vm32, %v619, 0
  %v660 = vsel %vm32, %v620, 0
  %v663 = vsel %vm32, %v621, 0
  %v666 = vsel %vm32, %v622, 0
  %v669 = vsel %vm32, %v623, 0
  %v672 = vsel %vm32, %v624, 0
  %674 = vmatprep.subr.mxu0 0.0
  %675 = vmatpush1.msra.mxu0 %v626
  %676 = vmatprep.subr.mxu0 0.0
  %677 = vmatpush1.msra.mxu0 %v627
  %678 = vmatprep.subr.mxu0 0.0
  %679 = vmatpush1.msra.mxu0 %v628
  %680 = vmatprep.subr.mxu0 0.0
  %681 = vmatpush1.msra.mxu0 %v629
  %682 = vmatprep.subr.mxu0 0.0
  %683 = vmatpush1.msra.mxu0 0.0
  %684 = vmatprep.subr.mxu0 0.0
  %685 = vmatpush1.msra.mxu0 0.0
  %686 = vmatprep.subr.mxu0 0.0
  %687 = vmatpush1.msra.mxu0 0.0
  %688 = vmatprep.subr.mxu0 0.0
  %689 = vmatpush1.msra.mxu0 0.0
  %690 = vmatprep.subr.mxu0 0.0
  %691 = vmatpush1.msra.mxu0 0.0
  %692 = vmatprep.subr.mxu0 0.0
  %693 = vmatpush1.msra.mxu0 0.0
  %694 = vmatprep.subr.mxu0 0.0
  %695 = vmatpush1.msra.mxu0 0.0
  %696 = vmatprep.subr.mxu0 0.0
  %697 = vmatpush1.msra.mxu0 0.0
  %698 = vmatprep.subr.mxu0 0.0
  %699 = vmatpush1.msra.mxu0 0.0
  %700 = vmatprep.subr.mxu0 0.0
  %701 = vmatpush1.msra.mxu0 0.0
  %702 = vmatprep.subr.mxu0 0.0
  %703 = vmatpush1.msra.mxu0 0.0
  %704 = vmatprep.subr.mxu0 0.0
  %705 = vmatpush1.msra.mxu0 0.0
  %706 = vmatprep.subr.mxu0 0.0
  %707 = vmatpush1.msra.mxu0 0.0
  %708 = vmatprep.subr.mxu0 0.0
  %709 = vmatpush1.msra.mxu0 0.0
  %710 = vmatprep.subr.mxu0 0.0
  %711 = vmatpush1.msra.mxu0 0.0
  %712 = vmatprep.subr.mxu0 0.0
  %713 = vmatpush1.msra.mxu0 0.0
  %714 = vmatprep.subr.mxu0 0.0
  %715 = vmatpush1.msra.mxu0 0.0
  %716 = vmatprep.subr.mxu0 0.0
  %717 = vmatpush1.msra.mxu0 0.0
  %718 = vmatprep.subr.mxu0 0.0
  %719 = vmatpush1.msra.mxu0 0.0
  %720 = vmatprep.subr.mxu0 0.0
  %721 = vmatpush1.msra.mxu0 0.0
  %722 = vmatprep.subr.mxu0 0.0
  %723 = vmatpush1.msra.mxu0 0.0
  %724 = vmatprep.subr.mxu0 0.0
  %725 = vmatpush1.msra.mxu0 0.0
  %726 = vmatprep.subr.mxu0 0.0
  %727 = vmatpush1.msra.mxu0 0.0
  %728 = vmatprep.subr.mxu0 0.0
  %729 = vmatpush1.msra.mxu0 0.0
  %730 = vmatprep.subr.mxu0 0.0
  %731 = vmatpush1.msra.mxu0 0.0
  %732 = vmatprep.subr.mxu0 0.0
  %733 = vmatpush1.msra.mxu0 0.0
  %734 = vmatprep.subr.mxu0 0.0
  %735 = vmatpush1.msra.mxu0 0.0
  %736 = vmatprep.subr.mxu0 0.0
  %737 = vmatpush1.msra.mxu0 0.0
  %738 = vmatprep.mubr.f32.mxu0 0.0
  %739 = vmatmul.mubr.f32.gmra.mrb[0].mxu0 %v636
  %v740 = vpop.f32.mrb[0].mxu0
  %v741 = vadd.f32 %v634, %v740
  %v742 = vpop.f32.mrb[0].mxu0
  %743 = vmatprep.mubr.f32.mxu0 0.0
  %744 = vmatmul.mubr.f32.gmra.mrb[0].mxu0 %v639
  %v745 = vpop.f32.mrb[0].mxu0
  %v746 = vadd.f32 %v634, %v745
  %v747 = vpop.f32.mrb[0].mxu0
  %748 = vmatprep.mubr.f32.mxu0 0.0
  %749 = vmatmul.mubr.f32.gmra.mrb[0].mxu0 %v642
  %v750 = vpop.f32.mrb[0].mxu0
  %v751 = vadd.f32 %v634, %v750
  %v752 = vpop.f32.mrb[0].mxu0
  %753 = vmatprep.mubr.f32.mxu0 0.0
  %754 = vmatmul.mubr.f32.gmra.mrb[0].mxu0 %v645
  %v755 = vpop.f32.mrb[0].mxu0
  %v756 = vadd.f32 %v634, %v755
  %v757 = vpop.f32.mrb[0].mxu0
  %758 = vmatprep.mubr.f32.mxu0 0.0
  %759 = vmatmul.mubr.f32.gmra.mrb[0].mxu0 %v648
  %v760 = vpop.f32.mrb[0].mxu0
  %v761 = vadd.f32 %v634, %v760
  %v762 = vpop.f32.mrb[0].mxu0
  %763 = vmatprep.mubr.f32.mxu0 0.0
  %764 = vmatmul.mubr.f32.gmra.mrb[0].mxu0 %v651
  %v765 = vpop.f32.mrb[0].mxu0
  %v766 = vadd.f32 %v634, %v765
  %v767 = vpop.f32.mrb[0].mxu0
  %768 = vmatprep.mubr.f32.mxu0 0.0
  %769 = vmatmul.mubr.f32.gmra.mrb[0].mxu0 %v654
  %v770 = vpop.f32.mrb[0].mxu0
  %v771 = vadd.f32 %v634, %v770
  %v772 = vpop.f32.mrb[0].mxu0
  %773 = vmatprep.mubr.f32.mxu0 0.0
  %774 = vmatmul.mubr.f32.gmra.mrb[0].mxu0 %v657
  %v775 = vpop.f32.mrb[0].mxu0
  %v776 = vadd.f32 %v634, %v775
  %v777 = vpop.f32.mrb[0].mxu0
  %778 = vmatprep.mubr.f32.mxu0 0.0
  %779 = vmatmul.mubr.f32.gmra.mrb[0].mxu0 %v660
  %v780 = vpop.f32.mrb[0].mxu0
  %v781 = vadd.f32 %v634, %v780
  %v782 = vpop.f32.mrb[0].mxu0
  %783 = vmatprep.mubr.f32.mxu0 0.0
  %784 = vmatmul.mubr.f32.gmra.mrb[0].mxu0 %v663
  %v785 = vpop.f32.mrb[0].mxu0
  %v786 = vadd.f32 %v634, %v785
  %v787 = vpop.f32.mrb[0].mxu0
  %788 = vmatprep.mubr.f32.mxu0 0.0
  %789 = vmatmul.mubr.f32.gmra.mrb[0].mxu0 %v666
  %v790 = vpop.f32.mrb[0].mxu0
  %v791 = vadd.f32 %v634, %v790
  %v792 = vpop.f32.mrb[0].mxu0
  %793 = vmatprep.mubr.f32.mxu0 0.0
  %794 = vmatmul.mubr.f32.gmra.mrb[0].mxu0 %v669
  %v795 = vpop.f32.mrb[0].mxu0
  %v796 = vadd.f32 %v634, %v795
  %v797 = vpop.f32.mrb[0].mxu0
  %798 = vmatprep.mubr.f32.mxu0 0.0
  %799 = vmatmul.mubr.f32.gmra.mrb[0].mxu0 %v672
  %v800 = vpop.f32.mrb[0].mxu0
  %v801 = vadd.f32 %v634, %v800
  %v802 = vpop.f32.mrb[0].mxu0
  %803 = vdwg.mxu0
  %s804 = scalar_lea.vmem %s0, 208
  %v805 = vld [vmem:[%s804] sm:$0xff]
  %v806 = vld [vmem:[%s804 + $0x8] sm:$0xff]
  %v807 = vld [vmem:[%s804 + $0x10] sm:$0xff]
  %v808 = vld [vmem:[%s804 + $0x18] sm:$0xff]
  %v809 = vld [vmem:[%s804 + $0x20] sm:$0xff]
  %v810 = vld [vmem:[%s804 + $0x28] sm:$0xff]
  %v811 = vld [vmem:[%s804 + $0x30] sm:$0xff]
  %v812 = vld [vmem:[%s804 + $0x38] sm:$0xff]
  %v813 = vld [vmem:[%s804 + $0x40] sm:$0xff]
  %v814 = vld [vmem:[%s804 + $0x48] sm:$0xff]
  %v815 = vld [vmem:[%s804 + $0x50] sm:$0xff]
  %v816 = vld [vmem:[%s804 + $0x58] sm:$0xff]
  %v817 = vld [vmem:[%s804 + $0x60] sm:$0xf]
  %v818 = vsel %vm32, %v805, 0.0
  %819 = vadd.xlane.f32.xlu0 %v818
  %v820 = vpop.xlane.xlu0 %819
  %v821 = vsel %vm32, %v806, 0.0
  %822 = vadd.xlane.f32.xlu0 %v821
  %v823 = vpop.xlane.xlu0 %822
  %v824 = vsel %vm32, %v807, 0.0
  %825 = vadd.xlane.f32.xlu0 %v824
  %v826 = vpop.xlane.xlu0 %825
  %v827 = vsel %vm32, %v808, 0.0
  %828 = vadd.xlane.f32.xlu0 %v827
  %v829 = vpop.xlane.xlu0 %828
  %v830 = vsel %vm32, %v809, 0.0
  %831 = vadd.xlane.f32.xlu0 %v830
  %v832 = vpop.xlane.xlu0 %831
  %v833 = vsel %vm32, %v810, 0.0
  %834 = vadd.xlane.f32.xlu0 %v833
  %v835 = vpop.xlane.xlu0 %834
  %v836 = vsel %vm32, %v811, 0.0
  %837 = vadd.xlane.f32.xlu0 %v836
  %v838 = vpop.xlane.xlu0 %837
  %v839 = vsel %vm32, %v812, 0.0
  %840 = vadd.xlane.f32.xlu0 %v839
  %v841 = vpop.xlane.xlu0 %840
  %v842 = vsel %vm32, %v813, 0.0
  %843 = vadd.xlane.f32.xlu0 %v842
  %v844 = vpop.xlane.xlu0 %843
  %v845 = vsel %vm32, %v814, 0.0
  %846 = vadd.xlane.f32.xlu0 %v845
  %v847 = vpop.xlane.xlu0 %846
  %v848 = vsel %vm32, %v815, 0.0
  %849 = vadd.xlane.f32.xlu0 %v848
  %v850 = vpop.xlane.xlu0 %849
  %v851 = vsel %vm32, %v816, 0.0
  %852 = vadd.xlane.f32.xlu0 %v851
  %v853 = vpop.xlane.xlu0 %852
  %v854 = vsel %vm69, %v817, 0.0
  %855 = vadd.xlane.f32.xlu0 %v854
  %v856 = vpop.xlane.xlu0 %855
  %v857 = vmul.f32 %v820, %v73
  %v858 = vmul.f32 %v823, %v73
  %v859 = vmul.f32 %v826, %v73
  %v860 = vmul.f32 %v829, %v73
  %v861 = vmul.f32 %v832, %v73
  %v862 = vmul.f32 %v835, %v73
  %v863 = vmul.f32 %v838, %v73
  %v864 = vmul.f32 %v841, %v73
  %v865 = vmul.f32 %v844, %v73
  %v866 = vmul.f32 %v847, %v73
  %v867 = vmul.f32 %v850, %v73
  %v868 = vmul.f32 %v853, %v73
  %v869 = vmul.f32 %v856, %v73
  %v870 = vsub.f32 %v805, %v857
  %v871 = vsub.f32 %v806, %v858
  %v872 = vsub.f32 %v807, %v859
  %v873 = vsub.f32 %v808, %v860
  %v874 = vsub.f32 %v809, %v861
  %v875 = vsub.f32 %v810, %v862
  %v876 = vsub.f32 %v811, %v863
  %v877 = vsub.f32 %v812, %v864
  %v878 = vsub.f32 %v813, %v865
  %v879 = vsub.f32 %v814, %v866
  %v880 = vsub.f32 %v815, %v867
  %v881 = vsub.f32 %v816, %v868
  %v882 = vsub.f32 %v817, %v869
  %v883 = vmul.f32 %v870, %v870
  %v884 = vmul.f32 %v871, %v871
  %v885 = vmul.f32 %v872, %v872
  %v886 = vmul.f32 %v873, %v873
  %v887 = vmul.f32 %v874, %v874
  %v888 = vmul.f32 %v875, %v875
  %v889 = vmul.f32 %v876, %v876
  %v890 = vmul.f32 %v877, %v877
  %v891 = vmul.f32 %v878, %v878
  %v892 = vmul.f32 %v879, %v879
  %v893 = vmul.f32 %v880, %v880
  %v894 = vmul.f32 %v881, %v881
  %v895 = vmul.f32 %v882, %v882
  %v896 = vsel %vm32, %v883, 0.0
  %897 = vadd.xlane.f32.xlu0 %v896
  %v898 = vpop.xlane.xlu0 %897
  %v899 = vsel %vm32, %v884, 0.0
  %900 = vadd.xlane.f32.xlu0 %v899
  %v901 = vpop.xlane.xlu0 %900
  %v902 = vsel %vm32, %v885, 0.0
  %903 = vadd.xlane.f32.xlu0 %v902
  %v904 = vpop.xlane.xlu0 %903
  %v905 = vsel %vm32, %v886, 0.0
  %906 = vadd.xlane.f32.xlu0 %v905
  %v907 = vpop.xlane.xlu0 %906
  %v908 = vsel %vm32, %v887, 0.0
  %909 = vadd.xlane.f32.xlu0 %v908
  %v910 = vpop.xlane.xlu0 %909
  %v911 = vsel %vm32, %v888, 0.0
  %912 = vadd.xlane.f32.xlu0 %v911
  %v913 = vpop.xlane.xlu0 %912
  %v914 = vsel %vm32, %v889, 0.0
  %915 = vadd.xlane.f32.xlu0 %v914
  %v916 = vpop.xlane.xlu0 %915
  %v917 = vsel %vm32, %v890, 0.0
  %918 = vadd.xlane.f32.xlu0 %v917
  %v919 = vpop.xlane.xlu0 %918
  %v920 = vsel %vm32, %v891, 0.0
  %921 = vadd.xlane.f32.xlu0 %v920
  %v922 = vpop.xlane.xlu0 %921
  %v923 = vsel %vm32, %v892, 0.0
  %924 = vadd.xlane.f32.xlu0 %v923
  %v925 = vpop.xlane.xlu0 %924
  %v926 = vsel %vm32, %v893, 0.0
  %927 = vadd.xlane.f32.xlu0 %v926
  %v928 = vpop.xlane.xlu0 %927
  %v929 = vsel %vm32, %v894, 0.0
  %930 = vadd.xlane.f32.xlu0 %v929
  %v931 = vpop.xlane.xlu0 %930
  %v932 = vsel %vm69, %v895, 0.0
  %933 = vadd.xlane.f32.xlu0 %v932
  %v934 = vpop.xlane.xlu0 %933
  %v935 = vmul.f32 %v898, %v73
  %v936 = vmul.f32 %v901, %v73
  %v937 = vmul.f32 %v904, %v73
  %v938 = vmul.f32 %v907, %v73
  %v939 = vmul.f32 %v910, %v73
  %v940 = vmul.f32 %v913, %v73
  %v941 = vmul.f32 %v916, %v73
  %v942 = vmul.f32 %v919, %v73
  %v943 = vmul.f32 %v922, %v73
  %v944 = vmul.f32 %v925, %v73
  %v945 = vmul.f32 %v928, %v73
  %v946 = vmul.f32 %v931, %v73
  %v947 = vmul.f32 %v934, %v73
  %v948 = vadd.f32 %v935, 1e-05
  %v949 = vadd.f32 %v936, 1e-05
  %v950 = vadd.f32 %v937, 1e-05
  %v951 = vadd.f32 %v938, 1e-05
  %v952 = vadd.f32 %v939, 1e-05
  %v953 = vadd.f32 %v940, 1e-05
  %v954 = vadd.f32 %v941, 1e-05
  %v955 = vadd.f32 %v942, 1e-05
  %v956 = vadd.f32 %v943, 1e-05
  %v957 = vadd.f32 %v944, 1e-05
  %v958 = vadd.f32 %v945, 1e-05
  %v959 = vadd.f32 %v946, 1e-05
  %v960 = vadd.f32 %v947, 1e-05
  %v961 = vrsqrt.pop %v948
  %v962 = vrsqrt.pop %v949
  %v963 = vrsqrt.pop %v950
  %v964 = vrsqrt.pop %v951
  %v965 = vrsqrt.pop %v952
  %v966 = vrsqrt.pop %v953
  %v967 = vrsqrt.pop %v954
  %v968 = vrsqrt.pop %v955
  %v969 = vrsqrt.pop %v956
  %v970 = vrsqrt.pop %v957
  %v971 = vrsqrt.pop %v958
  %v972 = vrsqrt.pop %v959
  %v973 = vrsqrt.pop %v960
  %v974 = vmul.f32 %v870, %v961
  %v975 = vmul.f32 %v871, %v962
  %v976 = vmul.f32 %v872, %v963
  %v977 = vmul.f32 %v873, %v964
  %v978 = vmul.f32 %v874, %v965
  %v979 = vmul.f32 %v875, %v966
  %v980 = vmul.f32 %v876, %v967
  %v981 = vmul.f32 %v877, %v968
  %v982 = vmul.f32 %v878, %v969
  %v983 = vmul.f32 %v879, %v970
  %v984 = vmul.f32 %v880, %v971
  %v985 = vmul.f32 %v881, %v972
  %v986 = vmul.f32 %v882, %v973
  %v987 = vmul.f32 %v974, %v207
  %v988 = vmul.f32 %v975, %v207
  %v989 = vmul.f32 %v976, %v207
  %v990 = vmul.f32 %v977, %v207
  %v991 = vmul.f32 %v978, %v207
  %v992 = vmul.f32 %v979, %v207
  %v993 = vmul.f32 %v980, %v207
  %v994 = vmul.f32 %v981, %v207
  %v995 = vmul.f32 %v982, %v207
  %v996 = vmul.f32 %v983, %v207
  %v997 = vmul.f32 %v984, %v207
  %v998 = vmul.f32 %v985, %v207
  %v999 = vmul.f32 %v986, %v207
  %v1000 = vadd.f32 %v987, %v224
  %v1001 = vadd.f32 %v988, %v224
  %v1002 = vadd.f32 %v989, %v224
  %v1003 = vadd.f32 %v990, %v224
  %v1004 = vadd.f32 %v991, %v224
  %v1005 = vadd.f32 %v992, %v224
  %v1006 = vadd.f32 %v993, %v224
  %v1007 = vadd.f32 %v994, %v224
  %v1008 = vadd.f32 %v995, %v224
  %v1009 = vadd.f32 %v996, %v224
  %v1010 = vadd.f32 %v997, %v224
  %v1011 = vadd.f32 %v998, %v224
  %v1012 = vadd.f32 %v999, %v224
  %s1013 = scalar_lea.vmem %s2, 64
  %v1014 = vld [vmem:[%s1013] sm:$0xff]
  %v1015 = vld [vmem:[%s1013 + $0x8] sm:$0xff]
  %v1016 = vld [vmem:[%s1013 + $0x10] sm:$0xff]
  %v1017 = vld [vmem:[%s1013 + $0x18] sm:$0xff]
  %v1018 = vld [vmem:[%s3 + $0x4] sm:$0x1]
  %v1019 = vlaneseq
  %v1020 = vshrl.u32 %v1019, 7
  %v1021 = vsub.s32 0, %v1020
  %v1022 = vrot.slane %v1018, %v1021
  %v1024 = vsel %vm32, %v1000, 0
  %v1027 = vsel %vm32, %v1001, 0
  %v1030 = vsel %vm32, %v1002, 0
  %v1033 = vsel %vm32, %v1003, 0
  %v1036 = vsel %vm32, %v1004, 0
  %v1039 = vsel %vm32, %v1005, 0
  %v1042 = vsel %vm32, %v1006, 0
  %v1045 = vsel %vm32, %v1007, 0
  %v1048 = vsel %vm32, %v1008, 0
  %v1051 = vsel %vm32, %v1009, 0
  %v1054 = vsel %vm32, %v1010, 0
  %v1057 = vsel %vm32, %v1011, 0
  %v1060 = vsel %vm32, %v1012, 0
  %1062 = vmatprep.subr.mxu0 0.0
  %1063 = vmatpush1.msra.mxu0 %v1014
  %1064 = vmatprep.subr.mxu0 0.0
  %1065 = vmatpush1.msra.mxu0 %v1015
  %1066 = vmatprep.subr.mxu0 0.0
  %1067 = vmatpush1.msra.mxu0 %v1016
  %1068 = vmatprep.subr.mxu0 0.0
  %1069 = vmatpush1.msra.mxu0 %v1017
  %1070 = vmatprep.subr.mxu0 0.0
  %1071 = vmatpush1.msra.mxu0 0.0
  %1072 = vmatprep.subr.mxu0 0.0
  %1073 = vmatpush1.msra.mxu0 0.0
  %1074 = vmatprep.subr.mxu0 0.0
  %1075 = vmatpush1.msra.mxu0 0.0
  %1076 = vmatprep.subr.mxu0 0.0
  %1077 = vmatpush1.msra.mxu0 0.0
  %1078 = vmatprep.subr.mxu0 0.0
  %1079 = vmatpush1.msra.mxu0 0.0
  %1080 = vmatprep.subr.mxu0 0.0
  %1081 = vmatpush1.msra.mxu0 0.0
  %1082 = vmatprep.subr.mxu0 0.0
  %1083 = vmatpush1.msra.mxu0 0.0
  %1084 = vmatprep.subr.mxu0 0.0
  %1085 = vmatpush1.msra.mxu0 0.0
  %1086 = vmatprep.subr.mxu0 0.0
  %1087 = vmatpush1.msra.mxu0 0.0
  %1088 = vmatprep.subr.mxu0 0.0
  %1089 = vmatpush1.msra.mxu0 0.0
  %1090 = vmatprep.subr.mxu0 0.0
  %1091 = vmatpush1.msra.mxu0 0.0
  %1092 = vmatprep.subr.mxu0 0.0
  %1093 = vmatpush1.msra.mxu0 0.0
  %1094 = vmatprep.subr.mxu0 0.0
  %1095 = vmatpush1.msra.mxu0 0.0
  %1096 = vmatprep.subr.mxu0 0.0
  %1097 = vmatpush1.msra.mxu0 0.0
  %1098 = vmatprep.subr.mxu0 0.0
  %1099 = vmatpush1.msra.mxu0 0.0
  %1100 = vmatprep.subr.mxu0 0.0
  %1101 = vmatpush1.msra.mxu0 0.0
  %1102 = vmatprep.subr.mxu0 0.0
  %1103 = vmatpush1.msra.mxu0 0.0
  %1104 = vmatprep.subr.mxu0 0.0
  %1105 = vmatpush1.msra.mxu0 0.0
  %1106 = vmatprep.subr.mxu0 0.0
  %1107 = vmatpush1.msra.mxu0 0.0
  %1108 = vmatprep.subr.mxu0 0.0
  %1109 = vmatpush1.msra.mxu0 0.0
  %1110 = vmatprep.subr.mxu0 0.0
  %1111 = vmatpush1.msra.mxu0 0.0
  %1112 = vmatprep.subr.mxu0 0.0
  %1113 = vmatpush1.msra.mxu0 0.0
  %1114 = vmatprep.subr.mxu0 0.0
  %1115 = vmatpush1.msra.mxu0 0.0
  %1116 = vmatprep.subr.mxu0 0.0
  %1117 = vmatpush1.msra.mxu0 0.0
  %1118 = vmatprep.subr.mxu0 0.0
  %1119 = vmatpush1.msra.mxu0 0.0
  %1120 = vmatprep.subr.mxu0 0.0
  %1121 = vmatpush1.msra.mxu0 0.0
  %1122 = vmatprep.subr.mxu0 0.0
  %1123 = vmatpush1.msra.mxu0 0.0
  %1124 = vmatprep.subr.mxu0 0.0
  %1125 = vmatpush1.msra.mxu0 0.0
  %1126 = vmatprep.mubr.f32.mxu0 0.0
  %1127 = vmatmul.mubr.f32.gmra.mrb[0].mxu0 %v1024
  %v1128 = vpop.f32.mrb[0].mxu0
  %v1129 = vadd.f32 %v1022, %v1128
  %v1130 = vpop.f32.mrb[0].mxu0
  %1131 = vmatprep.mubr.f32.mxu0 0.0
  %1132 = vmatmul.mubr.f32.gmra.mrb[0].mxu0 %v1027
  %v1133 = vpop.f32.mrb[0].mxu0
  %v1134 = vadd.f32 %v1022, %v1133
  %v1135 = vpop.f32.mrb[0].mxu0
  %1136 = vmatprep.mubr.f32.mxu0 0.0
  %1137 = vmatmul.mubr.f32.gmra.mrb[0].mxu0 %v1030
  %v1138 = vpop.f32.mrb[0].mxu0
  %v1139 = vadd.f32 %v1022, %v1138
  %v1140 = vpop.f32.mrb[0].mxu0
  %1141 = vmatprep.mubr.f32.mxu0 0.0
  %1142 = vmatmul.mubr.f32.gmra.mrb[0].mxu0 %v1033
  %v1143 = vpop.f32.mrb[0].mxu0
  %v1144 = vadd.f32 %v1022, %v1143
  %v1145 = vpop.f32.mrb[0].mxu0
  %1146 = vmatprep.mubr.f32.mxu0 0.0
  %1147 = vmatmul.mubr.f32.gmra.mrb[0].mxu0 %v1036
  %v1148 = vpop.f32.mrb[0].mxu0
  %v1149 = vadd.f32 %v1022, %v1148
  %v1150 = vpop.f32.mrb[0].mxu0
  %1151 = vmatprep.mubr.f32.mxu0 0.0
  %1152 = vmatmul.mubr.f32.gmra.mrb[0].mxu0 %v1039
  %v1153 = vpop.f32.mrb[0].mxu0
  %v1154 = vadd.f32 %v1022, %v1153
  %v1155 = vpop.f32.mrb[0].mxu0
  %1156 = vmatprep.mubr.f32.mxu0 0.0
  %1157 = vmatmul.mubr.f32.gmra.mrb[0].mxu0 %v1042
  %v1158 = vpop.f32.mrb[0].mxu0
  %v1159 = vadd.f32 %v1022, %v1158
  %v1160 = vpop.f32.mrb[0].mxu0
  %1161 = vmatprep.mubr.f32.mxu0 0.0
  %1162 = vmatmul.mubr.f32.gmra.mrb[0].mxu0 %v1045
  %v1163 = vpop.f32.mrb[0].mxu0
  %v1164 = vadd.f32 %v1022, %v1163
  %v1165 = vpop.f32.mrb[0].mxu0
  %1166 = vmatprep.mubr.f32.mxu0 0.0
  %1167 = vmatmul.mubr.f32.gmra.mrb[0].mxu0 %v1048
  %v1168 = vpop.f32.mrb[0].mxu0
  %v1169 = vadd.f32 %v1022, %v1168
  %v1170 = vpop.f32.mrb[0].mxu0
  %1171 = vmatprep.mubr.f32.mxu0 0.0
  %1172 = vmatmul.mubr.f32.gmra.mrb[0].mxu0 %v1051
  %v1173 = vpop.f32.mrb[0].mxu0
  %v1174 = vadd.f32 %v1022, %v1173
  %v1175 = vpop.f32.mrb[0].mxu0
  %1176 = vmatprep.mubr.f32.mxu0 0.0
  %1177 = vmatmul.mubr.f32.gmra.mrb[0].mxu0 %v1054
  %v1178 = vpop.f32.mrb[0].mxu0
  %v1179 = vadd.f32 %v1022, %v1178
  %v1180 = vpop.f32.mrb[0].mxu0
  %1181 = vmatprep.mubr.f32.mxu0 0.0
  %1182 = vmatmul.mubr.f32.gmra.mrb[0].mxu0 %v1057
  %v1183 = vpop.f32.mrb[0].mxu0
  %v1184 = vadd.f32 %v1022, %v1183
  %v1185 = vpop.f32.mrb[0].mxu0
  %1186 = vmatprep.mubr.f32.mxu0 0.0
  %1187 = vmatmul.mubr.f32.gmra.mrb[0].mxu0 %v1060
  %v1188 = vpop.f32.mrb[0].mxu0
  %v1189 = vadd.f32 %v1022, %v1188
  %v1190 = vpop.f32.mrb[0].mxu0
  %1191 = vdwg.mxu0
  %v1192 = vlaneseq
  %v1193 = vand.u32 %v1192, 127
  %vm1194 = vcmp.ge.s32.totalorder %v1193, 0
  %vm1195 = vcmp.lt.s32.totalorder %v1193, 8
  %vm1196 = vmand %vm1194, %vm1195
  %v1197 = vsel %vm1196, 1, 0
  %v1198 = vcvt.s32.f32 %v1197
  %v1199 = vmul.f32 %v353, %v1198
  %v1200 = vmul.f32 %v358, %v1198
  %v1201 = vmul.f32 %v363, %v1198
  %v1202 = vmul.f32 %v368, %v1198
  %v1203 = vmul.f32 %v373, %v1198
  %v1204 = vmul.f32 %v378, %v1198
  %v1205 = vmul.f32 %v383, %v1198
  %v1206 = vmul.f32 %v388, %v1198
  %v1207 = vmul.f32 %v393, %v1198
  %v1208 = vmul.f32 %v398, %v1198
  %v1209 = vmul.f32 %v403, %v1198
  %v1210 = vmul.f32 %v408, %v1198
  %v1211 = vmul.f32 %v413, %v1198
  %v1212 = vld [vmem:[%s1] sm:$0xff]
  %v1213 = vld [vmem:[%s1 + $0x8] sm:$0xff]
  %v1214 = vld [vmem:[%s1 + $0x10] sm:$0xff]
  %v1215 = vld [vmem:[%s1 + $0x18] sm:$0xff]
  %v1216 = vld [vmem:[%s1 + $0x20] sm:$0xff]
  %v1217 = vld [vmem:[%s1 + $0x28] sm:$0xff]
  %v1218 = vld [vmem:[%s1 + $0x30] sm:$0xff]
  %v1219 = vld [vmem:[%s1 + $0x38] sm:$0xff]
  %v1220 = vld [vmem:[%s1 + $0x40] sm:$0xff]
  %v1221 = vld [vmem:[%s1 + $0x48] sm:$0xff]
  %v1222 = vld [vmem:[%s1 + $0x50] sm:$0xff]
  %v1223 = vld [vmem:[%s1 + $0x58] sm:$0xff]
  %v1224 = vld [vmem:[%s1 + $0x60] sm:$0xf]
  %v1226 = vsel %vm32, %v1199, 0
  %v1229 = vsel %vm32, %v1200, 0
  %v1232 = vsel %vm32, %v1201, 0
  %v1235 = vsel %vm32, %v1202, 0
  %v1238 = vsel %vm32, %v1203, 0
  %v1241 = vsel %vm32, %v1204, 0
  %v1244 = vsel %vm32, %v1205, 0
  %v1247 = vsel %vm32, %v1206, 0
  %v1250 = vsel %vm32, %v1207, 0
  %v1253 = vsel %vm32, %v1208, 0
  %v1256 = vsel %vm32, %v1209, 0
  %v1259 = vsel %vm32, %v1210, 0
  %v1262 = vsel %vm32, %v1211, 0
  %v1265 = vsel %vm32, %v741, 0
  %v1268 = vsel %vm32, %v746, 0
  %v1271 = vsel %vm32, %v751, 0
  %v1274 = vsel %vm32, %v756, 0
  %v1277 = vsel %vm32, %v761, 0
  %v1280 = vsel %vm32, %v766, 0
  %v1283 = vsel %vm32, %v771, 0
  %v1286 = vsel %vm32, %v776, 0
  %v1289 = vsel %vm32, %v781, 0
  %v1292 = vsel %vm32, %v786, 0
  %v1295 = vsel %vm32, %v791, 0
  %v1298 = vsel %vm32, %v796, 0
  %v1301 = vsel %vm32, %v801, 0
  %1303 = vmatprep.subr.mxu0 0.0
  %1304 = vmatpush1.xpose.msra.mxu0 %v1265
  %1305 = vmatprep.subr.mxu0 0.0
  %1306 = vmatpush1.xpose.msra.mxu0 %v1268
  %1307 = vmatprep.subr.mxu0 0.0
  %1308 = vmatpush1.xpose.msra.mxu0 %v1271
  %1309 = vmatprep.subr.mxu0 0.0
  %1310 = vmatpush1.xpose.msra.mxu0 %v1274
  %1311 = vmatprep.subr.mxu0 0.0
  %1312 = vmatpush1.xpose.msra.mxu0 %v1277
  %1313 = vmatprep.subr.mxu0 0.0
  %1314 = vmatpush1.xpose.msra.mxu0 %v1280
  %1315 = vmatprep.subr.mxu0 0.0
  %1316 = vmatpush1.xpose.msra.mxu0 %v1283
  %1317 = vmatprep.subr.mxu0 0.0
  %1318 = vmatpush1.xpose.msra.mxu0 %v1286
  %1319 = vmatprep.subr.mxu0 0.0
  %1320 = vmatpush1.xpose.msra.mxu0 %v1289
  %1321 = vmatprep.subr.mxu0 0.0
  %1322 = vmatpush1.xpose.msra.mxu0 %v1292
  %1323 = vmatprep.subr.mxu0 0.0
  %1324 = vmatpush1.xpose.msra.mxu0 %v1295
  %1325 = vmatprep.subr.mxu0 0.0
  %1326 = vmatpush1.xpose.msra.mxu0 %v1298
  %1327 = vmatprep.subr.mxu0 0.0
  %1328 = vmatpush1.xpose.msra.mxu0 %v1301
  %1329 = vmatprep.subr.mxu0 0.0
  %1330 = vmatpush1.xpose.msra.mxu0 0.0
  %1331 = vmatprep.subr.mxu0 0.0
  %1332 = vmatpush1.xpose.msra.mxu0 0.0
  %1333 = vmatprep.subr.mxu0 0.0
  %1334 = vmatpush1.xpose.msra.mxu0 0.0
  %1335 = vmatprep.subr.mxu0 0.0
  %1336 = vmatpush1.xpose.msra.mxu0 0.0
  %1337 = vmatprep.subr.mxu0 0.0
  %1338 = vmatpush1.xpose.msra.mxu0 0.0
  %1339 = vmatprep.subr.mxu0 0.0
  %1340 = vmatpush1.xpose.msra.mxu0 0.0
  %1341 = vmatprep.subr.mxu0 0.0
  %1342 = vmatpush1.xpose.msra.mxu0 0.0
  %1343 = vmatprep.subr.mxu0 0.0
  %1344 = vmatpush1.xpose.msra.mxu0 0.0
  %1345 = vmatprep.subr.mxu0 0.0
  %1346 = vmatpush1.xpose.msra.mxu0 0.0
  %1347 = vmatprep.subr.mxu0 0.0
  %1348 = vmatpush1.xpose.msra.mxu0 0.0
  %1349 = vmatprep.subr.mxu0 0.0
  %1350 = vmatpush1.xpose.msra.mxu0 0.0
  %1351 = vmatprep.subr.mxu0 0.0
  %1352 = vmatpush1.xpose.msra.mxu0 0.0
  %1353 = vmatprep.subr.mxu0 0.0
  %1354 = vmatpush1.xpose.msra.mxu0 0.0
  %1355 = vmatprep.subr.mxu0 0.0
  %1356 = vmatpush1.xpose.msra.mxu0 0.0
  %1357 = vmatprep.subr.mxu0 0.0
  %1358 = vmatpush1.xpose.msra.mxu0 0.0
  %1359 = vmatprep.subr.mxu0 0.0
  %1360 = vmatpush1.xpose.msra.mxu0 0.0
  %1361 = vmatprep.subr.mxu0 0.0
  %1362 = vmatpush1.xpose.msra.mxu0 0.0
  %1363 = vmatprep.subr.mxu0 0.0
  %1364 = vmatpush1.xpose.msra.mxu0 0.0
  %1365 = vmatprep.subr.mxu0 0.0
  %1366 = vmatpush1.xpose.msra.mxu0 0.0
  %1367 = vmatprep.mubr.f32.mxu0 0.0
  %1368 = vmatmul.mubr.f32.gmra.mrb[0].mxu0 %v1226
  %v1369 = vpop.f32.mrb[0].mxu0
  %v1370 = vadd.f32 %v1212, %v1369
  %v1371 = vpop.f32.mrb[0].mxu0
  %1372 = vmatprep.mubr.f32.mxu0 0.0
  %1373 = vmatmul.mubr.f32.gmra.mrb[0].mxu0 %v1229
  %v1374 = vpop.f32.mrb[0].mxu0
  %v1375 = vadd.f32 %v1213, %v1374
  %v1376 = vpop.f32.mrb[0].mxu0
  %1377 = vmatprep.mubr.f32.mxu0 0.0
  %1378 = vmatmul.mubr.f32.gmra.mrb[0].mxu0 %v1232
  %v1379 = vpop.f32.mrb[0].mxu0
  %v1380 = vadd.f32 %v1214, %v1379
  %v1381 = vpop.f32.mrb[0].mxu0
  %1382 = vmatprep.mubr.f32.mxu0 0.0
  %1383 = vmatmul.mubr.f32.gmra.mrb[0].mxu0 %v1235
  %v1384 = vpop.f32.mrb[0].mxu0
  %v1385 = vadd.f32 %v1215, %v1384
  %v1386 = vpop.f32.mrb[0].mxu0
  %1387 = vmatprep.mubr.f32.mxu0 0.0
  %1388 = vmatmul.mubr.f32.gmra.mrb[0].mxu0 %v1238
  %v1389 = vpop.f32.mrb[0].mxu0
  %v1390 = vadd.f32 %v1216, %v1389
  %v1391 = vpop.f32.mrb[0].mxu0
  %1392 = vmatprep.mubr.f32.mxu0 0.0
  %1393 = vmatmul.mubr.f32.gmra.mrb[0].mxu0 %v1241
  %v1394 = vpop.f32.mrb[0].mxu0
  %v1395 = vadd.f32 %v1217, %v1394
  %v1396 = vpop.f32.mrb[0].mxu0
  %1397 = vmatprep.mubr.f32.mxu0 0.0
  %1398 = vmatmul.mubr.f32.gmra.mrb[0].mxu0 %v1244
  %v1399 = vpop.f32.mrb[0].mxu0
  %v1400 = vadd.f32 %v1218, %v1399
  %v1401 = vpop.f32.mrb[0].mxu0
  %1402 = vmatprep.mubr.f32.mxu0 0.0
  %1403 = vmatmul.mubr.f32.gmra.mrb[0].mxu0 %v1247
  %v1404 = vpop.f32.mrb[0].mxu0
  %v1405 = vadd.f32 %v1219, %v1404
  %v1406 = vpop.f32.mrb[0].mxu0
  %1407 = vmatprep.mubr.f32.mxu0 0.0
  %1408 = vmatmul.mubr.f32.gmra.mrb[0].mxu0 %v1250
  %v1409 = vpop.f32.mrb[0].mxu0
  %v1410 = vadd.f32 %v1220, %v1409
  %v1411 = vpop.f32.mrb[0].mxu0
  %1412 = vmatprep.mubr.f32.mxu0 0.0
  %1413 = vmatmul.mubr.f32.gmra.mrb[0].mxu0 %v1253
  %v1414 = vpop.f32.mrb[0].mxu0
  %v1415 = vadd.f32 %v1221, %v1414
  %v1416 = vpop.f32.mrb[0].mxu0
  %1417 = vmatprep.mubr.f32.mxu0 0.0
  %1418 = vmatmul.mubr.f32.gmra.mrb[0].mxu0 %v1256
  %v1419 = vpop.f32.mrb[0].mxu0
  %v1420 = vadd.f32 %v1222, %v1419
  %v1421 = vpop.f32.mrb[0].mxu0
  %1422 = vmatprep.mubr.f32.mxu0 0.0
  %1423 = vmatmul.mubr.f32.gmra.mrb[0].mxu0 %v1259
  %v1424 = vpop.f32.mrb[0].mxu0
  %v1425 = vadd.f32 %v1223, %v1424
  %v1426 = vpop.f32.mrb[0].mxu0
  %1427 = vmatprep.mubr.f32.mxu0 0.0
  %1428 = vmatmul.mubr.f32.gmra.mrb[0].mxu0 %v1262
  %v1429 = vpop.f32.mrb[0].mxu0
  %v1430 = vadd.f32 %v1224, %v1429
  %v1431 = vpop.f32.mrb[0].mxu0
  %1432 = vdwg.mxu0
  %vm1433 = vcmask 818176
  %v1434 = vsel %vm1433, %v1370, -inf
  %1435 = vmax.xlane.f32.xlu0 %v1434
  %v1436 = vpop.xlane.xlu0 %1435
  %v1437 = vsel %vm1433, %v1375, -inf
  %1438 = vmax.xlane.f32.xlu0 %v1437
  %v1439 = vpop.xlane.xlu0 %1438
  %v1440 = vsel %vm1433, %v1380, -inf
  %1441 = vmax.xlane.f32.xlu0 %v1440
  %v1442 = vpop.xlane.xlu0 %1441
  %v1443 = vsel %vm1433, %v1385, -inf
  %1444 = vmax.xlane.f32.xlu0 %v1443
  %v1445 = vpop.xlane.xlu0 %1444
  %v1446 = vsel %vm1433, %v1390, -inf
  %1447 = vmax.xlane.f32.xlu0 %v1446
  %v1448 = vpop.xlane.xlu0 %1447
  %v1449 = vsel %vm1433, %v1395, -inf
  %1450 = vmax.xlane.f32.xlu0 %v1449
  %v1451 = vpop.xlane.xlu0 %1450
  %v1452 = vsel %vm1433, %v1400, -inf
  %1453 = vmax.xlane.f32.xlu0 %v1452
  %v1454 = vpop.xlane.xlu0 %1453
  %v1455 = vsel %vm1433, %v1405, -inf
  %1456 = vmax.xlane.f32.xlu0 %v1455
  %v1457 = vpop.xlane.xlu0 %1456
  %v1458 = vsel %vm1433, %v1410, -inf
  %1459 = vmax.xlane.f32.xlu0 %v1458
  %v1460 = vpop.xlane.xlu0 %1459
  %v1461 = vsel %vm1433, %v1415, -inf
  %1462 = vmax.xlane.f32.xlu0 %v1461
  %v1463 = vpop.xlane.xlu0 %1462
  %v1464 = vsel %vm1433, %v1420, -inf
  %1465 = vmax.xlane.f32.xlu0 %v1464
  %v1466 = vpop.xlane.xlu0 %1465
  %v1467 = vsel %vm1433, %v1425, -inf
  %1468 = vmax.xlane.f32.xlu0 %v1467
  %v1469 = vpop.xlane.xlu0 %1468
  %vm1470 = vcmask 814080
  %v1471 = vsel %vm1470, %v1430, -inf
  %1472 = vmax.xlane.f32.xlu0 %v1471
  %v1473 = vpop.xlane.xlu0 %1472
  %v1474 = vsub.f32 %v1370, %v1436
  %v1475 = vsub.f32 %v1375, %v1439
  %v1476 = vsub.f32 %v1380, %v1442
  %v1477 = vsub.f32 %v1385, %v1445
  %v1478 = vsub.f32 %v1390, %v1448
  %v1479 = vsub.f32 %v1395, %v1451
  %v1480 = vsub.f32 %v1400, %v1454
  %v1481 = vsub.f32 %v1405, %v1457
  %v1482 = vsub.f32 %v1410, %v1460
  %v1483 = vsub.f32 %v1415, %v1463
  %v1484 = vsub.f32 %v1420, %v1466
  %v1485 = vsub.f32 %v1425, %v1469
  %v1486 = vsub.f32 %v1430, %v1473
  %v1487 = vmul.f32 %v1474, 1.442695
  %v1488 = vpow.pop %v1487
  %v1489 = vmul.f32 %v1475, 1.442695
  %v1490 = vpow.pop %v1489
  %v1491 = vmul.f32 %v1476, 1.442695
  %v1492 = vpow.pop %v1491
  %v1493 = vmul.f32 %v1477, 1.442695
  %v1494 = vpow.pop %v1493
  %v1495 = vmul.f32 %v1478, 1.442695
  %v1496 = vpow.pop %v1495
  %v1497 = vmul.f32 %v1479, 1.442695
  %v1498 = vpow.pop %v1497
  %v1499 = vmul.f32 %v1480, 1.442695
  %v1500 = vpow.pop %v1499
  %v1501 = vmul.f32 %v1481, 1.442695
  %v1502 = vpow.pop %v1501
  %v1503 = vmul.f32 %v1482, 1.442695
  %v1504 = vpow.pop %v1503
  %v1505 = vmul.f32 %v1483, 1.442695
  %v1506 = vpow.pop %v1505
  %v1507 = vmul.f32 %v1484, 1.442695
  %v1508 = vpow.pop %v1507
  %v1509 = vmul.f32 %v1485, 1.442695
  %v1510 = vpow.pop %v1509
  %v1511 = vmul.f32 %v1486, 1.442695
  %v1512 = vpow.pop %v1511
  %v1513 = vsel %vm1433, %v1488, 0.0
  %1514 = vadd.xlane.f32.xlu0 %v1513
  %v1515 = vpop.xlane.xlu0 %1514
  %v1516 = vsel %vm1433, %v1490, 0.0
  %1517 = vadd.xlane.f32.xlu0 %v1516
  %v1518 = vpop.xlane.xlu0 %1517
  %v1519 = vsel %vm1433, %v1492, 0.0
  %1520 = vadd.xlane.f32.xlu0 %v1519
  %v1521 = vpop.xlane.xlu0 %1520
  %v1522 = vsel %vm1433, %v1494, 0.0
  %1523 = vadd.xlane.f32.xlu0 %v1522
  %v1524 = vpop.xlane.xlu0 %1523
  %v1525 = vsel %vm1433, %v1496, 0.0
  %1526 = vadd.xlane.f32.xlu0 %v1525
  %v1527 = vpop.xlane.xlu0 %1526
  %v1528 = vsel %vm1433, %v1498, 0.0
  %1529 = vadd.xlane.f32.xlu0 %v1528
  %v1530 = vpop.xlane.xlu0 %1529
  %v1531 = vsel %vm1433, %v1500, 0.0
  %1532 = vadd.xlane.f32.xlu0 %v1531
  %v1533 = vpop.xlane.xlu0 %1532
  %v1534 = vsel %vm1433, %v1502, 0.0
  %1535 = vadd.xlane.f32.xlu0 %v1534
  %v1536 = vpop.xlane.xlu0 %1535
  %v1537 = vsel %vm1433, %v1504, 0.0
  %1538 = vadd.xlane.f32.xlu0 %v1537
  %v1539 = vpop.xlane.xlu0 %1538
  %v1540 = vsel %vm1433, %v1506, 0.0
  %1541 = vadd.xlane.f32.xlu0 %v1540
  %v1542 = vpop.xlane.xlu0 %1541
  %v1543 = vsel %vm1433, %v1508, 0.0
  %1544 = vadd.xlane.f32.xlu0 %v1543
  %v1545 = vpop.xlane.xlu0 %1544
  %v1546 = vsel %vm1433, %v1510, 0.0
  %1547 = vadd.xlane.f32.xlu0 %v1546
  %v1548 = vpop.xlane.xlu0 %1547
  %v1549 = vsel %vm1470, %v1512, 0.0
  %1550 = vadd.xlane.f32.xlu0 %v1549
  %v1551 = vpop.xlane.xlu0 %1550
  %v1552 = vrcp.pop %v1515
  %v1553 = vrcp.pop %v1518
  %v1554 = vrcp.pop %v1521
  %v1555 = vrcp.pop %v1524
  %v1556 = vrcp.pop %v1527
  %v1557 = vrcp.pop %v1530
  %v1558 = vrcp.pop %v1533
  %v1559 = vrcp.pop %v1536
  %v1560 = vrcp.pop %v1539
  %v1561 = vrcp.pop %v1542
  %v1562 = vrcp.pop %v1545
  %v1563 = vrcp.pop %v1548
  %v1564 = vrcp.pop %v1551
  %v1565 = vmul.f32 %v1488, %v1552
  %v1566 = vmul.f32 %v1490, %v1553
  %v1567 = vmul.f32 %v1492, %v1554
  %v1568 = vmul.f32 %v1494, %v1555
  %v1569 = vmul.f32 %v1496, %v1556
  %v1570 = vmul.f32 %v1498, %v1557
  %v1571 = vmul.f32 %v1500, %v1558
  %v1572 = vmul.f32 %v1502, %v1559
  %v1573 = vmul.f32 %v1504, %v1560
  %v1574 = vmul.f32 %v1506, %v1561
  %v1575 = vmul.f32 %v1508, %v1562
  %v1576 = vmul.f32 %v1510, %v1563
  %v1577 = vmul.f32 %v1512, %v1564
  %v1578 = vmul.f32 %v1129, %v1198
  %v1579 = vmul.f32 %v1134, %v1198
  %v1580 = vmul.f32 %v1139, %v1198
  %v1581 = vmul.f32 %v1144, %v1198
  %v1582 = vmul.f32 %v1149, %v1198
  %v1583 = vmul.f32 %v1154, %v1198
  %v1584 = vmul.f32 %v1159, %v1198
  %v1585 = vmul.f32 %v1164, %v1198
  %v1586 = vmul.f32 %v1169, %v1198
  %v1587 = vmul.f32 %v1174, %v1198
  %v1588 = vmul.f32 %v1179, %v1198
  %v1589 = vmul.f32 %v1184, %v1198
  %v1590 = vmul.f32 %v1189, %v1198
  %vm1591 = vcmp.ge.s32.totalorder %v1193, 8
  %vm1592 = vcmp.lt.s32.totalorder %v1193, 16
  %vm1593 = vmand %vm1591, %vm1592
  %v1594 = vsel %vm1593, 1, 0
  %v1595 = vcvt.s32.f32 %v1594
  %v1596 = vmul.f32 %v353, %v1595
  %v1597 = vmul.f32 %v358, %v1595
  %v1598 = vmul.f32 %v363, %v1595
  %v1599 = vmul.f32 %v368, %v1595
  %v1600 = vmul.f32 %v373, %v1595
  %v1601 = vmul.f32 %v378, %v1595
  %v1602 = vmul.f32 %v383, %v1595
  %v1603 = vmul.f32 %v388, %v1595
  %v1604 = vmul.f32 %v393, %v1595
  %v1605 = vmul.f32 %v398, %v1595
  %v1606 = vmul.f32 %v403, %v1595
  %v1607 = vmul.f32 %v408, %v1595
  %v1608 = vmul.f32 %v413, %v1595
  %v1610 = vsel %vm32, %v1596, 0
  %v1613 = vsel %vm32, %v1597, 0
  %v1616 = vsel %vm32, %v1598, 0
  %v1619 = vsel %vm32, %v1599, 0
  %v1622 = vsel %vm32, %v1600, 0
  %v1625 = vsel %vm32, %v1601, 0
  %v1628 = vsel %vm32, %v1602, 0
  %v1631 = vsel %vm32, %v1603, 0
  %v1634 = vsel %vm32, %v1604, 0
  %v1637 = vsel %vm32, %v1605, 0
  %v1640 = vsel %vm32, %v1606, 0
  %v1643 = vsel %vm32, %v1607, 0
  %v1646 = vsel %vm32, %v1608, 0
  %1648 = vmatprep.subr.mxu0 0.0
  %1649 = vmatpush1.xpose.msra.mxu0 %v1265
  %1650 = vmatprep.subr.mxu0 0.0
  %1651 = vmatpush1.xpose.msra.mxu0 %v1268
  %1652 = vmatprep.subr.mxu0 0.0
  %1653 = vmatpush1.xpose.msra.mxu0 %v1271
  %1654 = vmatprep.subr.mxu0 0.0
  %1655 = vmatpush1.xpose.msra.mxu0 %v1274
  %1656 = vmatprep.subr.mxu0 0.0
  %1657 = vmatpush1.xpose.msra.mxu0 %v1277
  %1658 = vmatprep.subr.mxu0 0.0
  %1659 = vmatpush1.xpose.msra.mxu0 %v1280
  %1660 = vmatprep.subr.mxu0 0.0
  %1661 = vmatpush1.xpose.msra.mxu0 %v1283
  %1662 = vmatprep.subr.mxu0 0.0
  %1663 = vmatpush1.xpose.msra.mxu0 %v1286
  %1664 = vmatprep.subr.mxu0 0.0
  %1665 = vmatpush1.xpose.msra.mxu0 %v1289
  %1666 = vmatprep.subr.mxu0 0.0
  %1667 = vmatpush1.xpose.msra.mxu0 %v1292
  %1668 = vmatprep.subr.mxu0 0.0
  %1669 = vmatpush1.xpose.msra.mxu0 %v1295
  %1670 = vmatprep.subr.mxu0 0.0
  %1671 = vmatpush1.xpose.msra.mxu0 %v1298
  %1672 = vmatprep.subr.mxu0 0.0
  %1673 = vmatpush1.xpose.msra.mxu0 %v1301
  %1674 = vmatprep.subr.mxu0 0.0
  %1675 = vmatpush1.xpose.msra.mxu0 0.0
  %1676 = vmatprep.subr.mxu0 0.0
  %1677 = vmatpush1.xpose.msra.mxu0 0.0
  %1678 = vmatprep.subr.mxu0 0.0
  %1679 = vmatpush1.xpose.msra.mxu0 0.0
  %1680 = vmatprep.subr.mxu0 0.0
  %1681 = vmatpush1.xpose.msra.mxu0 0.0
  %1682 = vmatprep.subr.mxu0 0.0
  %1683 = vmatpush1.xpose.msra.mxu0 0.0
  %1684 = vmatprep.subr.mxu0 0.0
  %1685 = vmatpush1.xpose.msra.mxu0 0.0
  %1686 = vmatprep.subr.mxu0 0.0
  %1687 = vmatpush1.xpose.msra.mxu0 0.0
  %1688 = vmatprep.subr.mxu0 0.0
  %1689 = vmatpush1.xpose.msra.mxu0 0.0
  %1690 = vmatprep.subr.mxu0 0.0
  %1691 = vmatpush1.xpose.msra.mxu0 0.0
  %1692 = vmatprep.subr.mxu0 0.0
  %1693 = vmatpush1.xpose.msra.mxu0 0.0
  %1694 = vmatprep.subr.mxu0 0.0
  %1695 = vmatpush1.xpose.msra.mxu0 0.0
  %1696 = vmatprep.subr.mxu0 0.0
  %1697 = vmatpush1.xpose.msra.mxu0 0.0
  %1698 = vmatprep.subr.mxu0 0.0
  %1699 = vmatpush1.xpose.msra.mxu0 0.0
  %1700 = vmatprep.subr.mxu0 0.0
  %1701 = vmatpush1.xpose.msra.mxu0 0.0
  %1702 = vmatprep.subr.mxu0 0.0
  %1703 = vmatpush1.xpose.msra.mxu0 0.0
  %1704 = vmatprep.subr.mxu0 0.0
  %1705 = vmatpush1.xpose.msra.mxu0 0.0
  %1706 = vmatprep.subr.mxu0 0.0
  %1707 = vmatpush1.xpose.msra.mxu0 0.0
  %1708 = vmatprep.subr.mxu0 0.0
  %1709 = vmatpush1.xpose.msra.mxu0 0.0
  %1710 = vmatprep.subr.mxu0 0.0
  %1711 = vmatpush1.xpose.msra.mxu0 0.0
  %1712 = vmatprep.mubr.f32.mxu0 0.0
  %1713 = vmatmul.mubr.f32.gmra.mrb[0].mxu0 %v1610
  %v1714 = vpop.f32.mrb[0].mxu0
  %v1715 = vadd.f32 %v1212, %v1714
  %v1716 = vpop.f32.mrb[0].mxu0
  %1717 = vmatprep.mubr.f32.mxu0 0.0
  %1718 = vmatmul.mubr.f32.gmra.mrb[0].mxu0 %v1613
  %v1719 = vpop.f32.mrb[0].mxu0
  %v1720 = vadd.f32 %v1213, %v1719
  %v1721 = vpop.f32.mrb[0].mxu0
  %1722 = vmatprep.mubr.f32.mxu0 0.0
  %1723 = vmatmul.mubr.f32.gmra.mrb[0].mxu0 %v1616
  %v1724 = vpop.f32.mrb[0].mxu0
  %v1725 = vadd.f32 %v1214, %v1724
  %v1726 = vpop.f32.mrb[0].mxu0
  %1727 = vmatprep.mubr.f32.mxu0 0.0
  %1728 = vmatmul.mubr.f32.gmra.mrb[0].mxu0 %v1619
  %v1729 = vpop.f32.mrb[0].mxu0
  %v1730 = vadd.f32 %v1215, %v1729
  %v1731 = vpop.f32.mrb[0].mxu0
  %1732 = vmatprep.mubr.f32.mxu0 0.0
  %1733 = vmatmul.mubr.f32.gmra.mrb[0].mxu0 %v1622
  %v1734 = vpop.f32.mrb[0].mxu0
  %v1735 = vadd.f32 %v1216, %v1734
  %v1736 = vpop.f32.mrb[0].mxu0
  %1737 = vmatprep.mubr.f32.mxu0 0.0
  %1738 = vmatmul.mubr.f32.gmra.mrb[0].mxu0 %v1625
  %v1739 = vpop.f32.mrb[0].mxu0
  %v1740 = vadd.f32 %v1217, %v1739
  %v1741 = vpop.f32.mrb[0].mxu0
  %1742 = vmatprep.mubr.f32.mxu0 0.0
  %1743 = vmatmul.mubr.f32.gmra.mrb[0].mxu0 %v1628
  %v1744 = vpop.f32.mrb[0].mxu0
  %v1745 = vadd.f32 %v1218, %v1744
  %v1746 = vpop.f32.mrb[0].mxu0
  %1747 = vmatprep.mubr.f32.mxu0 0.0
  %1748 = vmatmul.mubr.f32.gmra.mrb[0].mxu0 %v1631
  %v1749 = vpop.f32.mrb[0].mxu0
  %v1750 = vadd.f32 %v1219, %v1749
  %v1751 = vpop.f32.mrb[0].mxu0
  %1752 = vmatprep.mubr.f32.mxu0 0.0
  %1753 = vmatmul.mubr.f32.gmra.mrb[0].mxu0 %v1634
  %v1754 = vpop.f32.mrb[0].mxu0
  %v1755 = vadd.f32 %v1220, %v1754
  %v1756 = vpop.f32.mrb[0].mxu0
  %1757 = vmatprep.mubr.f32.mxu0 0.0
  %1758 = vmatmul.mubr.f32.gmra.mrb[0].mxu0 %v1637
  %v1759 = vpop.f32.mrb[0].mxu0
  %v1760 = vadd.f32 %v1221, %v1759
  %v1761 = vpop.f32.mrb[0].mxu0
  %1762 = vmatprep.mubr.f32.mxu0 0.0
  %1763 = vmatmul.mubr.f32.gmra.mrb[0].mxu0 %v1640
  %v1764 = vpop.f32.mrb[0].mxu0
  %v1765 = vadd.f32 %v1222, %v1764
  %v1766 = vpop.f32.mrb[0].mxu0
  %1767 = vmatprep.mubr.f32.mxu0 0.0
  %1768 = vmatmul.mubr.f32.gmra.mrb[0].mxu0 %v1643
  %v1769 = vpop.f32.mrb[0].mxu0
  %v1770 = vadd.f32 %v1223, %v1769
  %v1771 = vpop.f32.mrb[0].mxu0
  %1772 = vmatprep.mubr.f32.mxu0 0.0
  %1773 = vmatmul.mubr.f32.gmra.mrb[0].mxu0 %v1646
  %v1774 = vpop.f32.mrb[0].mxu0
  %v1775 = vadd.f32 %v1224, %v1774
  %v1776 = vpop.f32.mrb[0].mxu0
  %1777 = vdwg.mxu0
  %v1778 = vsel %vm1433, %v1715, -inf
  %1779 = vmax.xlane.f32.xlu0 %v1778
  %v1780 = vpop.xlane.xlu0 %1779
  %v1781 = vsel %vm1433, %v1720, -inf
  %1782 = vmax.xlane.f32.xlu0 %v1781
  %v1783 = vpop.xlane.xlu0 %1782
  %v1784 = vsel %vm1433, %v1725, -inf
  %1785 = vmax.xlane.f32.xlu0 %v1784
  %v1786 = vpop.xlane.xlu0 %1785
  %v1787 = vsel %vm1433, %v1730, -inf
  %1788 = vmax.xlane.f32.xlu0 %v1787
  %v1789 = vpop.xlane.xlu0 %1788
  %v1790 = vsel %vm1433, %v1735, -inf
  %1791 = vmax.xlane.f32.xlu0 %v1790
  %v1792 = vpop.xlane.xlu0 %1791
  %v1793 = vsel %vm1433, %v1740, -inf
  %1794 = vmax.xlane.f32.xlu0 %v1793
  %v1795 = vpop.xlane.xlu0 %1794
  %v1796 = vsel %vm1433, %v1745, -inf
  %1797 = vmax.xlane.f32.xlu0 %v1796
  %v1798 = vpop.xlane.xlu0 %1797
  %v1799 = vsel %vm1433, %v1750, -inf
  %1800 = vmax.xlane.f32.xlu0 %v1799
  %v1801 = vpop.xlane.xlu0 %1800
  %v1802 = vsel %vm1433, %v1755, -inf
  %1803 = vmax.xlane.f32.xlu0 %v1802
  %v1804 = vpop.xlane.xlu0 %1803
  %v1805 = vsel %vm1433, %v1760, -inf
  %1806 = vmax.xlane.f32.xlu0 %v1805
  %v1807 = vpop.xlane.xlu0 %1806
  %v1808 = vsel %vm1433, %v1765, -inf
  %1809 = vmax.xlane.f32.xlu0 %v1808
  %v1810 = vpop.xlane.xlu0 %1809
  %v1811 = vsel %vm1433, %v1770, -inf
  %1812 = vmax.xlane.f32.xlu0 %v1811
  %v1813 = vpop.xlane.xlu0 %1812
  %v1814 = vsel %vm1470, %v1775, -inf
  %1815 = vmax.xlane.f32.xlu0 %v1814
  %v1816 = vpop.xlane.xlu0 %1815
  %v1817 = vsub.f32 %v1715, %v1780
  %v1818 = vsub.f32 %v1720, %v1783
  %v1819 = vsub.f32 %v1725, %v1786
  %v1820 = vsub.f32 %v1730, %v1789
  %v1821 = vsub.f32 %v1735, %v1792
  %v1822 = vsub.f32 %v1740, %v1795
  %v1823 = vsub.f32 %v1745, %v1798
  %v1824 = vsub.f32 %v1750, %v1801
  %v1825 = vsub.f32 %v1755, %v1804
  %v1826 = vsub.f32 %v1760, %v1807
  %v1827 = vsub.f32 %v1765, %v1810
  %v1828 = vsub.f32 %v1770, %v1813
  %v1829 = vsub.f32 %v1775, %v1816
  %v1830 = vmul.f32 %v1817, 1.442695
  %v1831 = vpow.pop %v1830
  %v1832 = vmul.f32 %v1818, 1.442695
  %v1833 = vpow.pop %v1832
  %v1834 = vmul.f32 %v1819, 1.442695
  %v1835 = vpow.pop %v1834
  %v1836 = vmul.f32 %v1820, 1.442695
  %v1837 = vpow.pop %v1836
  %v1838 = vmul.f32 %v1821, 1.442695
  %v1839 = vpow.pop %v1838
  %v1840 = vmul.f32 %v1822, 1.442695
  %v1841 = vpow.pop %v1840
  %v1842 = vmul.f32 %v1823, 1.442695
  %v1843 = vpow.pop %v1842
  %v1844 = vmul.f32 %v1824, 1.442695
  %v1845 = vpow.pop %v1844
  %v1846 = vmul.f32 %v1825, 1.442695
  %v1847 = vpow.pop %v1846
  %v1848 = vmul.f32 %v1826, 1.442695
  %v1849 = vpow.pop %v1848
  %v1850 = vmul.f32 %v1827, 1.442695
  %v1851 = vpow.pop %v1850
  %v1852 = vmul.f32 %v1828, 1.442695
  %v1853 = vpow.pop %v1852
  %v1854 = vmul.f32 %v1829, 1.442695
  %v1855 = vpow.pop %v1854
  %v1856 = vsel %vm1433, %v1831, 0.0
  %1857 = vadd.xlane.f32.xlu0 %v1856
  %v1858 = vpop.xlane.xlu0 %1857
  %v1859 = vsel %vm1433, %v1833, 0.0
  %1860 = vadd.xlane.f32.xlu0 %v1859
  %v1861 = vpop.xlane.xlu0 %1860
  %v1862 = vsel %vm1433, %v1835, 0.0
  %1863 = vadd.xlane.f32.xlu0 %v1862
  %v1864 = vpop.xlane.xlu0 %1863
  %v1865 = vsel %vm1433, %v1837, 0.0
  %1866 = vadd.xlane.f32.xlu0 %v1865
  %v1867 = vpop.xlane.xlu0 %1866
  %v1868 = vsel %vm1433, %v1839, 0.0
  %1869 = vadd.xlane.f32.xlu0 %v1868
  %v1870 = vpop.xlane.xlu0 %1869
  %v1871 = vsel %vm1433, %v1841, 0.0
  %1872 = vadd.xlane.f32.xlu0 %v1871
  %v1873 = vpop.xlane.xlu0 %1872
  %v1874 = vsel %vm1433, %v1843, 0.0
  %1875 = vadd.xlane.f32.xlu0 %v1874
  %v1876 = vpop.xlane.xlu0 %1875
  %v1877 = vsel %vm1433, %v1845, 0.0
  %1878 = vadd.xlane.f32.xlu0 %v1877
  %v1879 = vpop.xlane.xlu0 %1878
  %v1880 = vsel %vm1433, %v1847, 0.0
  %1881 = vadd.xlane.f32.xlu0 %v1880
  %v1882 = vpop.xlane.xlu0 %1881
  %v1883 = vsel %vm1433, %v1849, 0.0
  %1884 = vadd.xlane.f32.xlu0 %v1883
  %v1885 = vpop.xlane.xlu0 %1884
  %v1886 = vsel %vm1433, %v1851, 0.0
  %1887 = vadd.xlane.f32.xlu0 %v1886
  %v1888 = vpop.xlane.xlu0 %1887
  %v1889 = vsel %vm1433, %v1853, 0.0
  %1890 = vadd.xlane.f32.xlu0 %v1889
  %v1891 = vpop.xlane.xlu0 %1890
  %v1892 = vsel %vm1470, %v1855, 0.0
  %1893 = vadd.xlane.f32.xlu0 %v1892
  %v1894 = vpop.xlane.xlu0 %1893
  %v1895 = vrcp.pop %v1858
  %v1896 = vrcp.pop %v1861
  %v1897 = vrcp.pop %v1864
  %v1898 = vrcp.pop %v1867
  %v1899 = vrcp.pop %v1870
  %v1900 = vrcp.pop %v1873
  %v1901 = vrcp.pop %v1876
  %v1902 = vrcp.pop %v1879
  %v1903 = vrcp.pop %v1882
  %v1904 = vrcp.pop %v1885
  %v1905 = vrcp.pop %v1888
  %v1906 = vrcp.pop %v1891
  %v1907 = vrcp.pop %v1894
  %v1908 = vmul.f32 %v1831, %v1895
  %v1909 = vmul.f32 %v1833, %v1896
  %v1910 = vmul.f32 %v1835, %v1897
  %v1911 = vmul.f32 %v1837, %v1898
  %v1912 = vmul.f32 %v1839, %v1899
  %v1913 = vmul.f32 %v1841, %v1900
  %v1914 = vmul.f32 %v1843, %v1901
  %v1915 = vmul.f32 %v1845, %v1902
  %v1916 = vmul.f32 %v1847, %v1903
  %v1917 = vmul.f32 %v1849, %v1904
  %v1918 = vmul.f32 %v1851, %v1905
  %v1919 = vmul.f32 %v1853, %v1906
  %v1920 = vmul.f32 %v1855, %v1907
  %v1921 = vmul.f32 %v1129, %v1595
  %v1922 = vmul.f32 %v1134, %v1595
  %v1923 = vmul.f32 %v1139, %v1595
  %v1924 = vmul.f32 %v1144, %v1595
  %v1925 = vmul.f32 %v1149, %v1595
  %v1926 = vmul.f32 %v1154, %v1595
  %v1927 = vmul.f32 %v1159, %v1595
  %v1928 = vmul.f32 %v1164, %v1595
  %v1929 = vmul.f32 %v1169, %v1595
  %v1930 = vmul.f32 %v1174, %v1595
  %v1931 = vmul.f32 %v1179, %v1595
  %v1932 = vmul.f32 %v1184, %v1595
  %v1933 = vmul.f32 %v1189, %v1595
  %v1935 = vsel %vm1433, %v1908, 0
  %v1938 = vsel %vm1433, %v1909, 0
  %v1941 = vsel %vm1433, %v1910, 0
  %v1944 = vsel %vm1433, %v1911, 0
  %v1947 = vsel %vm1433, %v1912, 0
  %v1950 = vsel %vm1433, %v1913, 0
  %v1953 = vsel %vm1433, %v1914, 0
  %v1956 = vsel %vm1433, %v1915, 0
  %v1959 = vsel %vm1433, %v1916, 0
  %v1962 = vsel %vm1433, %v1917, 0
  %v1965 = vsel %vm1433, %v1918, 0
  %v1968 = vsel %vm1433, %v1919, 0
  %v1971 = vsel %vm1433, %v1920, 0
  %vm1973 = vcmask 1043456
  %v1975 = vsel %vm1973, %v1933, 0
  %1977 = vmatprep.subr.mxu0 0.0
  %1978 = vmatpush1.msra.mxu0 %v1921
  %1979 = vmatprep.subr.mxu0 0.0
  %1980 = vmatpush1.msra.mxu0 %v1922
  %1981 = vmatprep.subr.mxu0 0.0
  %1982 = vmatpush1.msra.mxu0 %v1923
  %1983 = vmatprep.subr.mxu0 0.0
  %1984 = vmatpush1.msra.mxu0 %v1924
  %1985 = vmatprep.subr.mxu0 0.0
  %1986 = vmatpush1.msra.mxu0 %v1925
  %1987 = vmatprep.subr.mxu0 0.0
  %1988 = vmatpush1.msra.mxu0 %v1926
  %1989 = vmatprep.subr.mxu0 0.0
  %1990 = vmatpush1.msra.mxu0 %v1927
  %1991 = vmatprep.subr.mxu0 0.0
  %1992 = vmatpush1.msra.mxu0 %v1928
  %1993 = vmatprep.subr.mxu0 0.0
  %1994 = vmatpush1.msra.mxu0 %v1929
  %1995 = vmatprep.subr.mxu0 0.0
  %1996 = vmatpush1.msra.mxu0 %v1930
  %1997 = vmatprep.subr.mxu0 0.0
  %1998 = vmatpush1.msra.mxu0 %v1931
  %1999 = vmatprep.subr.mxu0 0.0
  %2000 = vmatpush1.msra.mxu0 %v1932
  %2001 = vmatprep.subr.mxu0 0.0
  %2002 = vmatpush1.msra.mxu0 %v1975
  %2003 = vmatprep.subr.mxu0 0.0
  %2004 = vmatpush1.msra.mxu0 0.0
  %2005 = vmatprep.subr.mxu0 0.0
  %2006 = vmatpush1.msra.mxu0 0.0
  %2007 = vmatprep.subr.mxu0 0.0
  %2008 = vmatpush1.msra.mxu0 0.0
  %2009 = vmatprep.subr.mxu0 0.0
  %2010 = vmatpush1.msra.mxu0 0.0
  %2011 = vmatprep.subr.mxu0 0.0
  %2012 = vmatpush1.msra.mxu0 0.0
  %2013 = vmatprep.subr.mxu0 0.0
  %2014 = vmatpush1.msra.mxu0 0.0
  %2015 = vmatprep.subr.mxu0 0.0
  %2016 = vmatpush1.msra.mxu0 0.0
  %2017 = vmatprep.subr.mxu0 0.0
  %2018 = vmatpush1.msra.mxu0 0.0
  %2019 = vmatprep.subr.mxu0 0.0
  %2020 = vmatpush1.msra.mxu0 0.0
  %2021 = vmatprep.subr.mxu0 0.0
  %2022 = vmatpush1.msra.mxu0 0.0
  %2023 = vmatprep.subr.mxu0 0.0
  %2024 = vmatpush1.msra.mxu0 0.0
  %2025 = vmatprep.subr.mxu0 0.0
  %2026 = vmatpush1.msra.mxu0 0.0
  %2027 = vmatprep.subr.mxu0 0.0
  %2028 = vmatpush1.msra.mxu0 0.0
  %2029 = vmatprep.subr.mxu0 0.0
  %2030 = vmatpush1.msra.mxu0 0.0
  %2031 = vmatprep.subr.mxu0 0.0
  %2032 = vmatpush1.msra.mxu0 0.0
  %2033 = vmatprep.subr.mxu0 0.0
  %2034 = vmatpush1.msra.mxu0 0.0
  %2035 = vmatprep.subr.mxu0 0.0
  %2036 = vmatpush1.msra.mxu0 0.0
  %2037 = vmatprep.subr.mxu0 0.0
  %2038 = vmatpush1.msra.mxu0 0.0
  %2039 = vmatprep.subr.mxu0 0.0
  %2040 = vmatpush1.msra.mxu0 0.0
  %2041 = vmatprep.mubr.f32.mxu0 0.0
  %2042 = vmatmul.mubr.f32.gmra.mrb[0].mxu0 %v1935
  %v2043 = vpop.f32.mrb[0].mxu0
  %v2044 = vadd.f32 0.0, %v2043
  %v2045 = vpop.f32.mrb[0].mxu0
  %2046 = vmatprep.mubr.f32.mxu0 0.0
  %2047 = vmatmul.mubr.f32.gmra.mrb[0].mxu0 %v1938
  %v2048 = vpop.f32.mrb[0].mxu0
  %v2049 = vadd.f32 0.0, %v2048
  %v2050 = vpop.f32.mrb[0].mxu0
  %2051 = vmatprep.mubr.f32.mxu0 0.0
  %2052 = vmatmul.mubr.f32.gmra.mrb[0].mxu0 %v1941
  %v2053 = vpop.f32.mrb[0].mxu0
  %v2054 = vadd.f32 0.0, %v2053
  %v2055 = vpop.f32.mrb[0].mxu0
  %2056 = vmatprep.mubr.f32.mxu0 0.0
  %2057 = vmatmul.mubr.f32.gmra.mrb[0].mxu0 %v1944
  %v2058 = vpop.f32.mrb[0].mxu0
  %v2059 = vadd.f32 0.0, %v2058
  %v2060 = vpop.f32.mrb[0].mxu0
  %2061 = vmatprep.mubr.f32.mxu0 0.0
  %2062 = vmatmul.mubr.f32.gmra.mrb[0].mxu0 %v1947
  %v2063 = vpop.f32.mrb[0].mxu0
  %v2064 = vadd.f32 0.0, %v2063
  %v2065 = vpop.f32.mrb[0].mxu0
  %2066 = vmatprep.mubr.f32.mxu0 0.0
  %2067 = vmatmul.mubr.f32.gmra.mrb[0].mxu0 %v1950
  %v2068 = vpop.f32.mrb[0].mxu0
  %v2069 = vadd.f32 0.0, %v2068
  %v2070 = vpop.f32.mrb[0].mxu0
  %2071 = vmatprep.mubr.f32.mxu0 0.0
  %2072 = vmatmul.mubr.f32.gmra.mrb[0].mxu0 %v1953
  %v2073 = vpop.f32.mrb[0].mxu0
  %v2074 = vadd.f32 0.0, %v2073
  %v2075 = vpop.f32.mrb[0].mxu0
  %2076 = vmatprep.mubr.f32.mxu0 0.0
  %2077 = vmatmul.mubr.f32.gmra.mrb[0].mxu0 %v1956
  %v2078 = vpop.f32.mrb[0].mxu0
  %v2079 = vadd.f32 0.0, %v2078
  %v2080 = vpop.f32.mrb[0].mxu0
  %2081 = vmatprep.mubr.f32.mxu0 0.0
  %2082 = vmatmul.mubr.f32.gmra.mrb[0].mxu0 %v1959
  %v2083 = vpop.f32.mrb[0].mxu0
  %v2084 = vadd.f32 0.0, %v2083
  %v2085 = vpop.f32.mrb[0].mxu0
  %2086 = vmatprep.mubr.f32.mxu0 0.0
  %2087 = vmatmul.mubr.f32.gmra.mrb[0].mxu0 %v1962
  %v2088 = vpop.f32.mrb[0].mxu0
  %v2089 = vadd.f32 0.0, %v2088
  %v2090 = vpop.f32.mrb[0].mxu0
  %2091 = vmatprep.mubr.f32.mxu0 0.0
  %2092 = vmatmul.mubr.f32.gmra.mrb[0].mxu0 %v1965
  %v2093 = vpop.f32.mrb[0].mxu0
  %v2094 = vadd.f32 0.0, %v2093
  %v2095 = vpop.f32.mrb[0].mxu0
  %2096 = vmatprep.mubr.f32.mxu0 0.0
  %2097 = vmatmul.mubr.f32.gmra.mrb[0].mxu0 %v1968
  %v2098 = vpop.f32.mrb[0].mxu0
  %v2099 = vadd.f32 0.0, %v2098
  %v2100 = vpop.f32.mrb[0].mxu0
  %2101 = vmatprep.mubr.f32.mxu0 0.0
  %2102 = vmatmul.mubr.f32.gmra.mrb[0].mxu0 %v1971
  %v2103 = vpop.f32.mrb[0].mxu0
  %v2104 = vadd.f32 0.0, %v2103
  %v2105 = vpop.f32.mrb[0].mxu0
  %2106 = vdwg.mxu0
  %v2108 = vsel %vm1433, %v1565, 0
  %v2111 = vsel %vm1433, %v1566, 0
  %v2114 = vsel %vm1433, %v1567, 0
  %v2117 = vsel %vm1433, %v1568, 0
  %v2120 = vsel %vm1433, %v1569, 0
  %v2123 = vsel %vm1433, %v1570, 0
  %v2126 = vsel %vm1433, %v1571, 0
  %v2129 = vsel %vm1433, %v1572, 0
  %v2132 = vsel %vm1433, %v1573, 0
  %v2135 = vsel %vm1433, %v1574, 0
  %v2138 = vsel %vm1433, %v1575, 0
  %v2141 = vsel %vm1433, %v1576, 0
  %v2144 = vsel %vm1433, %v1577, 0
  %v2147 = vsel %vm1973, %v1590, 0
  %2149 = vmatprep.subr.mxu0 0.0
  %2150 = vmatpush1.msra.mxu0 %v1578
  %2151 = vmatprep.subr.mxu0 0.0
  %2152 = vmatpush1.msra.mxu0 %v1579
  %2153 = vmatprep.subr.mxu0 0.0
  %2154 = vmatpush1.msra.mxu0 %v1580
  %2155 = vmatprep.subr.mxu0 0.0
  %2156 = vmatpush1.msra.mxu0 %v1581
  %2157 = vmatprep.subr.mxu0 0.0
  %2158 = vmatpush1.msra.mxu0 %v1582
  %2159 = vmatprep.subr.mxu0 0.0
  %2160 = vmatpush1.msra.mxu0 %v1583
  %2161 = vmatprep.subr.mxu0 0.0
  %2162 = vmatpush1.msra.mxu0 %v1584
  %2163 = vmatprep.subr.mxu0 0.0
  %2164 = vmatpush1.msra.mxu0 %v1585
  %2165 = vmatprep.subr.mxu0 0.0
  %2166 = vmatpush1.msra.mxu0 %v1586
  %2167 = vmatprep.subr.mxu0 0.0
  %2168 = vmatpush1.msra.mxu0 %v1587
  %2169 = vmatprep.subr.mxu0 0.0
  %2170 = vmatpush1.msra.mxu0 %v1588
  %2171 = vmatprep.subr.mxu0 0.0
  %2172 = vmatpush1.msra.mxu0 %v1589
  %2173 = vmatprep.subr.mxu0 0.0
  %2174 = vmatpush1.msra.mxu0 %v2147
  %2175 = vmatprep.subr.mxu0 0.0
  %2176 = vmatpush1.msra.mxu0 0.0
  %2177 = vmatprep.subr.mxu0 0.0
  %2178 = vmatpush1.msra.mxu0 0.0
  %2179 = vmatprep.subr.mxu0 0.0
  %2180 = vmatpush1.msra.mxu0 0.0
  %2181 = vmatprep.subr.mxu0 0.0
  %2182 = vmatpush1.msra.mxu0 0.0
  %2183 = vmatprep.subr.mxu0 0.0
  %2184 = vmatpush1.msra.mxu0 0.0
  %2185 = vmatprep.subr.mxu0 0.0
  %2186 = vmatpush1.msra.mxu0 0.0
  %2187 = vmatprep.subr.mxu0 0.0
  %2188 = vmatpush1.msra.mxu0 0.0
  %2189 = vmatprep.subr.mxu0 0.0
  %2190 = vmatpush1.msra.mxu0 0.0
  %2191 = vmatprep.subr.mxu0 0.0
  %2192 = vmatpush1.msra.mxu0 0.0
  %2193 = vmatprep.subr.mxu0 0.0
  %2194 = vmatpush1.msra.mxu0 0.0
  %2195 = vmatprep.subr.mxu0 0.0
  %2196 = vmatpush1.msra.mxu0 0.0
  %2197 = vmatprep.subr.mxu0 0.0
  %2198 = vmatpush1.msra.mxu0 0.0
  %2199 = vmatprep.subr.mxu0 0.0
  %2200 = vmatpush1.msra.mxu0 0.0
  %2201 = vmatprep.subr.mxu0 0.0
  %2202 = vmatpush1.msra.mxu0 0.0
  %2203 = vmatprep.subr.mxu0 0.0
  %2204 = vmatpush1.msra.mxu0 0.0
  %2205 = vmatprep.subr.mxu0 0.0
  %2206 = vmatpush1.msra.mxu0 0.0
  %2207 = vmatprep.subr.mxu0 0.0
  %2208 = vmatpush1.msra.mxu0 0.0
  %2209 = vmatprep.subr.mxu0 0.0
  %2210 = vmatpush1.msra.mxu0 0.0
  %2211 = vmatprep.subr.mxu0 0.0
  %2212 = vmatpush1.msra.mxu0 0.0
  %2213 = vmatprep.mubr.f32.mxu0 0.0
  %2214 = vmatmul.mubr.f32.gmra.mrb[0].mxu0 %v2108
  %v2215 = vpop.f32.mrb[0].mxu0
  %v2216 = vadd.f32 %v2044, %v2215
  %v2217 = vpop.f32.mrb[0].mxu0
  %2218 = vmatprep.mubr.f32.mxu0 0.0
  %2219 = vmatmul.mubr.f32.gmra.mrb[0].mxu0 %v2111
  %v2220 = vpop.f32.mrb[0].mxu0
  %v2221 = vadd.f32 %v2049, %v2220
  %v2222 = vpop.f32.mrb[0].mxu0
  %2223 = vmatprep.mubr.f32.mxu0 0.0
  %2224 = vmatmul.mubr.f32.gmra.mrb[0].mxu0 %v2114
  %v2225 = vpop.f32.mrb[0].mxu0
  %v2226 = vadd.f32 %v2054, %v2225
  %v2227 = vpop.f32.mrb[0].mxu0
  %2228 = vmatprep.mubr.f32.mxu0 0.0
  %2229 = vmatmul.mubr.f32.gmra.mrb[0].mxu0 %v2117
  %v2230 = vpop.f32.mrb[0].mxu0
  %v2231 = vadd.f32 %v2059, %v2230
  %v2232 = vpop.f32.mrb[0].mxu0
  %2233 = vmatprep.mubr.f32.mxu0 0.0
  %2234 = vmatmul.mubr.f32.gmra.mrb[0].mxu0 %v2120
  %v2235 = vpop.f32.mrb[0].mxu0
  %v2236 = vadd.f32 %v2064, %v2235
  %v2237 = vpop.f32.mrb[0].mxu0
  %2238 = vmatprep.mubr.f32.mxu0 0.0
  %2239 = vmatmul.mubr.f32.gmra.mrb[0].mxu0 %v2123
  %v2240 = vpop.f32.mrb[0].mxu0
  %v2241 = vadd.f32 %v2069, %v2240
  %v2242 = vpop.f32.mrb[0].mxu0
  %2243 = vmatprep.mubr.f32.mxu0 0.0
  %2244 = vmatmul.mubr.f32.gmra.mrb[0].mxu0 %v2126
  %v2245 = vpop.f32.mrb[0].mxu0
  %v2246 = vadd.f32 %v2074, %v2245
  %v2247 = vpop.f32.mrb[0].mxu0
  %2248 = vmatprep.mubr.f32.mxu0 0.0
  %2249 = vmatmul.mubr.f32.gmra.mrb[0].mxu0 %v2129
  %v2250 = vpop.f32.mrb[0].mxu0
  %v2251 = vadd.f32 %v2079, %v2250
  %v2252 = vpop.f32.mrb[0].mxu0
  %2253 = vmatprep.mubr.f32.mxu0 0.0
  %2254 = vmatmul.mubr.f32.gmra.mrb[0].mxu0 %v2132
  %v2255 = vpop.f32.mrb[0].mxu0
  %v2256 = vadd.f32 %v2084, %v2255
  %v2257 = vpop.f32.mrb[0].mxu0
  %2258 = vmatprep.mubr.f32.mxu0 0.0
  %2259 = vmatmul.mubr.f32.gmra.mrb[0].mxu0 %v2135
  %v2260 = vpop.f32.mrb[0].mxu0
  %v2261 = vadd.f32 %v2089, %v2260
  %v2262 = vpop.f32.mrb[0].mxu0
  %2263 = vmatprep.mubr.f32.mxu0 0.0
  %2264 = vmatmul.mubr.f32.gmra.mrb[0].mxu0 %v2138
  %v2265 = vpop.f32.mrb[0].mxu0
  %v2266 = vadd.f32 %v2094, %v2265
  %v2267 = vpop.f32.mrb[0].mxu0
  %2268 = vmatprep.mubr.f32.mxu0 0.0
  %2269 = vmatmul.mubr.f32.gmra.mrb[0].mxu0 %v2141
  %v2270 = vpop.f32.mrb[0].mxu0
  %v2271 = vadd.f32 %v2099, %v2270
  %v2272 = vpop.f32.mrb[0].mxu0
  %2273 = vmatprep.mubr.f32.mxu0 0.0
  %2274 = vmatmul.mubr.f32.gmra.mrb[0].mxu0 %v2144
  %v2275 = vpop.f32.mrb[0].mxu0
  %v2276 = vadd.f32 %v2104, %v2275
  %v2277 = vpop.f32.mrb[0].mxu0
  %2278 = vdwg.mxu0
  %vm2279 = vcmp.ge.s32.totalorder %v1193, 16
  %vm2280 = vcmp.lt.s32.totalorder %v1193, 24
  %vm2281 = vmand %vm2279, %vm2280
  %v2282 = vsel %vm2281, 1, 0
  %v2283 = vcvt.s32.f32 %v2282
  %v2284 = vmul.f32 %v353, %v2283
  %v2285 = vmul.f32 %v358, %v2283
  %v2286 = vmul.f32 %v363, %v2283
  %v2287 = vmul.f32 %v368, %v2283
  %v2288 = vmul.f32 %v373, %v2283
  %v2289 = vmul.f32 %v378, %v2283
  %v2290 = vmul.f32 %v383, %v2283
  %v2291 = vmul.f32 %v388, %v2283
  %v2292 = vmul.f32 %v393, %v2283
  %v2293 = vmul.f32 %v398, %v2283
  %v2294 = vmul.f32 %v403, %v2283
  %v2295 = vmul.f32 %v408, %v2283
  %v2296 = vmul.f32 %v413, %v2283
  %v2298 = vsel %vm32, %v2284, 0
  %v2301 = vsel %vm32, %v2285, 0
  %v2304 = vsel %vm32, %v2286, 0
  %v2307 = vsel %vm32, %v2287, 0
  %v2310 = vsel %vm32, %v2288, 0
  %v2313 = vsel %vm32, %v2289, 0
  %v2316 = vsel %vm32, %v2290, 0
  %v2319 = vsel %vm32, %v2291, 0
  %v2322 = vsel %vm32, %v2292, 0
  %v2325 = vsel %vm32, %v2293, 0
  %v2328 = vsel %vm32, %v2294, 0
  %v2331 = vsel %vm32, %v2295, 0
  %v2334 = vsel %vm32, %v2296, 0
  %2336 = vmatprep.subr.mxu0 0.0
  %2337 = vmatpush1.xpose.msra.mxu0 %v1265
  %2338 = vmatprep.subr.mxu0 0.0
  %2339 = vmatpush1.xpose.msra.mxu0 %v1268
  %2340 = vmatprep.subr.mxu0 0.0
  %2341 = vmatpush1.xpose.msra.mxu0 %v1271
  %2342 = vmatprep.subr.mxu0 0.0
  %2343 = vmatpush1.xpose.msra.mxu0 %v1274
  %2344 = vmatprep.subr.mxu0 0.0
  %2345 = vmatpush1.xpose.msra.mxu0 %v1277
  %2346 = vmatprep.subr.mxu0 0.0
  %2347 = vmatpush1.xpose.msra.mxu0 %v1280
  %2348 = vmatprep.subr.mxu0 0.0
  %2349 = vmatpush1.xpose.msra.mxu0 %v1283
  %2350 = vmatprep.subr.mxu0 0.0
  %2351 = vmatpush1.xpose.msra.mxu0 %v1286
  %2352 = vmatprep.subr.mxu0 0.0
  %2353 = vmatpush1.xpose.msra.mxu0 %v1289
  %2354 = vmatprep.subr.mxu0 0.0
  %2355 = vmatpush1.xpose.msra.mxu0 %v1292
  %2356 = vmatprep.subr.mxu0 0.0
  %2357 = vmatpush1.xpose.msra.mxu0 %v1295
  %2358 = vmatprep.subr.mxu0 0.0
  %2359 = vmatpush1.xpose.msra.mxu0 %v1298
  %2360 = vmatprep.subr.mxu0 0.0
  %2361 = vmatpush1.xpose.msra.mxu0 %v1301
  %2362 = vmatprep.subr.mxu0 0.0
  %2363 = vmatpush1.xpose.msra.mxu0 0.0
  %2364 = vmatprep.subr.mxu0 0.0
  %2365 = vmatpush1.xpose.msra.mxu0 0.0
  %2366 = vmatprep.subr.mxu0 0.0
  %2367 = vmatpush1.xpose.msra.mxu0 0.0
  %2368 = vmatprep.subr.mxu0 0.0
  %2369 = vmatpush1.xpose.msra.mxu0 0.0
  %2370 = vmatprep.subr.mxu0 0.0
  %2371 = vmatpush1.xpose.msra.mxu0 0.0
  %2372 = vmatprep.subr.mxu0 0.0
  %2373 = vmatpush1.xpose.msra.mxu0 0.0
  %2374 = vmatprep.subr.mxu0 0.0
  %2375 = vmatpush1.xpose.msra.mxu0 0.0
  %2376 = vmatprep.subr.mxu0 0.0
  %2377 = vmatpush1.xpose.msra.mxu0 0.0
  %2378 = vmatprep.subr.mxu0 0.0
  %2379 = vmatpush1.xpose.msra.mxu0 0.0
  %2380 = vmatprep.subr.mxu0 0.0
  %2381 = vmatpush1.xpose.msra.mxu0 0.0
  %2382 = vmatprep.subr.mxu0 0.0
  %2383 = vmatpush1.xpose.msra.mxu0 0.0
  %2384 = vmatprep.subr.mxu0 0.0
  %2385 = vmatpush1.xpose.msra.mxu0 0.0
  %2386 = vmatprep.subr.mxu0 0.0
  %2387 = vmatpush1.xpose.msra.mxu0 0.0
  %2388 = vmatprep.subr.mxu0 0.0
  %2389 = vmatpush1.xpose.msra.mxu0 0.0
  %2390 = vmatprep.subr.mxu0 0.0
  %2391 = vmatpush1.xpose.msra.mxu0 0.0
  %2392 = vmatprep.subr.mxu0 0.0
  %2393 = vmatpush1.xpose.msra.mxu0 0.0
  %2394 = vmatprep.subr.mxu0 0.0
  %2395 = vmatpush1.xpose.msra.mxu0 0.0
  %2396 = vmatprep.subr.mxu0 0.0
  %2397 = vmatpush1.xpose.msra.mxu0 0.0
  %2398 = vmatprep.subr.mxu0 0.0
  %2399 = vmatpush1.xpose.msra.mxu0 0.0
  %2400 = vmatprep.mubr.f32.mxu0 0.0
  %2401 = vmatmul.mubr.f32.gmra.mrb[0].mxu0 %v2298
  %v2402 = vpop.f32.mrb[0].mxu0
  %v2403 = vadd.f32 %v1212, %v2402
  %v2404 = vpop.f32.mrb[0].mxu0
  %2405 = vmatprep.mubr.f32.mxu0 0.0
  %2406 = vmatmul.mubr.f32.gmra.mrb[0].mxu0 %v2301
  %v2407 = vpop.f32.mrb[0].mxu0
  %v2408 = vadd.f32 %v1213, %v2407
  %v2409 = vpop.f32.mrb[0].mxu0
  %2410 = vmatprep.mubr.f32.mxu0 0.0
  %2411 = vmatmul.mubr.f32.gmra.mrb[0].mxu0 %v2304
  %v2412 = vpop.f32.mrb[0].mxu0
  %v2413 = vadd.f32 %v1214, %v2412
  %v2414 = vpop.f32.mrb[0].mxu0
  %2415 = vmatprep.mubr.f32.mxu0 0.0
  %2416 = vmatmul.mubr.f32.gmra.mrb[0].mxu0 %v2307
  %v2417 = vpop.f32.mrb[0].mxu0
  %v2418 = vadd.f32 %v1215, %v2417
  %v2419 = vpop.f32.mrb[0].mxu0
  %2420 = vmatprep.mubr.f32.mxu0 0.0
  %2421 = vmatmul.mubr.f32.gmra.mrb[0].mxu0 %v2310
  %v2422 = vpop.f32.mrb[0].mxu0
  %v2423 = vadd.f32 %v1216, %v2422
  %v2424 = vpop.f32.mrb[0].mxu0
  %2425 = vmatprep.mubr.f32.mxu0 0.0
  %2426 = vmatmul.mubr.f32.gmra.mrb[0].mxu0 %v2313
  %v2427 = vpop.f32.mrb[0].mxu0
  %v2428 = vadd.f32 %v1217, %v2427
  %v2429 = vpop.f32.mrb[0].mxu0
  %2430 = vmatprep.mubr.f32.mxu0 0.0
  %2431 = vmatmul.mubr.f32.gmra.mrb[0].mxu0 %v2316
  %v2432 = vpop.f32.mrb[0].mxu0
  %v2433 = vadd.f32 %v1218, %v2432
  %v2434 = vpop.f32.mrb[0].mxu0
  %2435 = vmatprep.mubr.f32.mxu0 0.0
  %2436 = vmatmul.mubr.f32.gmra.mrb[0].mxu0 %v2319
  %v2437 = vpop.f32.mrb[0].mxu0
  %v2438 = vadd.f32 %v1219, %v2437
  %v2439 = vpop.f32.mrb[0].mxu0
  %2440 = vmatprep.mubr.f32.mxu0 0.0
  %2441 = vmatmul.mubr.f32.gmra.mrb[0].mxu0 %v2322
  %v2442 = vpop.f32.mrb[0].mxu0
  %v2443 = vadd.f32 %v1220, %v2442
  %v2444 = vpop.f32.mrb[0].mxu0
  %2445 = vmatprep.mubr.f32.mxu0 0.0
  %2446 = vmatmul.mubr.f32.gmra.mrb[0].mxu0 %v2325
  %v2447 = vpop.f32.mrb[0].mxu0
  %v2448 = vadd.f32 %v1221, %v2447
  %v2449 = vpop.f32.mrb[0].mxu0
  %2450 = vmatprep.mubr.f32.mxu0 0.0
  %2451 = vmatmul.mubr.f32.gmra.mrb[0].mxu0 %v2328
  %v2452 = vpop.f32.mrb[0].mxu0
  %v2453 = vadd.f32 %v1222, %v2452
  %v2454 = vpop.f32.mrb[0].mxu0
  %2455 = vmatprep.mubr.f32.mxu0 0.0
  %2456 = vmatmul.mubr.f32.gmra.mrb[0].mxu0 %v2331
  %v2457 = vpop.f32.mrb[0].mxu0
  %v2458 = vadd.f32 %v1223, %v2457
  %v2459 = vpop.f32.mrb[0].mxu0
  %2460 = vmatprep.mubr.f32.mxu0 0.0
  %2461 = vmatmul.mubr.f32.gmra.mrb[0].mxu0 %v2334
  %v2462 = vpop.f32.mrb[0].mxu0
  %v2463 = vadd.f32 %v1224, %v2462
  %v2464 = vpop.f32.mrb[0].mxu0
  %2465 = vdwg.mxu0
  %v2466 = vsel %vm1433, %v2403, -inf
  %2467 = vmax.xlane.f32.xlu0 %v2466
  %v2468 = vpop.xlane.xlu0 %2467
  %v2469 = vsel %vm1433, %v2408, -inf
  %2470 = vmax.xlane.f32.xlu0 %v2469
  %v2471 = vpop.xlane.xlu0 %2470
  %v2472 = vsel %vm1433, %v2413, -inf
  %2473 = vmax.xlane.f32.xlu0 %v2472
  %v2474 = vpop.xlane.xlu0 %2473
  %v2475 = vsel %vm1433, %v2418, -inf
  %2476 = vmax.xlane.f32.xlu0 %v2475
  %v2477 = vpop.xlane.xlu0 %2476
  %v2478 = vsel %vm1433, %v2423, -inf
  %2479 = vmax.xlane.f32.xlu0 %v2478
  %v2480 = vpop.xlane.xlu0 %2479
  %v2481 = vsel %vm1433, %v2428, -inf
  %2482 = vmax.xlane.f32.xlu0 %v2481
  %v2483 = vpop.xlane.xlu0 %2482
  %v2484 = vsel %vm1433, %v2433, -inf
  %2485 = vmax.xlane.f32.xlu0 %v2484
  %v2486 = vpop.xlane.xlu0 %2485
  %v2487 = vsel %vm1433, %v2438, -inf
  %2488 = vmax.xlane.f32.xlu0 %v2487
  %v2489 = vpop.xlane.xlu0 %2488
  %v2490 = vsel %vm1433, %v2443, -inf
  %2491 = vmax.xlane.f32.xlu0 %v2490
  %v2492 = vpop.xlane.xlu0 %2491
  %v2493 = vsel %vm1433, %v2448, -inf
  %2494 = vmax.xlane.f32.xlu0 %v2493
  %v2495 = vpop.xlane.xlu0 %2494
  %v2496 = vsel %vm1433, %v2453, -inf
  %2497 = vmax.xlane.f32.xlu0 %v2496
  %v2498 = vpop.xlane.xlu0 %2497
  %v2499 = vsel %vm1433, %v2458, -inf
  %2500 = vmax.xlane.f32.xlu0 %v2499
  %v2501 = vpop.xlane.xlu0 %2500
  %v2502 = vsel %vm1470, %v2463, -inf
  %2503 = vmax.xlane.f32.xlu0 %v2502
  %v2504 = vpop.xlane.xlu0 %2503
  %v2505 = vsub.f32 %v2403, %v2468
  %v2506 = vsub.f32 %v2408, %v2471
  %v2507 = vsub.f32 %v2413, %v2474
  %v2508 = vsub.f32 %v2418, %v2477
  %v2509 = vsub.f32 %v2423, %v2480
  %v2510 = vsub.f32 %v2428, %v2483
  %v2511 = vsub.f32 %v2433, %v2486
  %v2512 = vsub.f32 %v2438, %v2489
  %v2513 = vsub.f32 %v2443, %v2492
  %v2514 = vsub.f32 %v2448, %v2495
  %v2515 = vsub.f32 %v2453, %v2498
  %v2516 = vsub.f32 %v2458, %v2501
  %v2517 = vsub.f32 %v2463, %v2504
  %v2518 = vmul.f32 %v2505, 1.442695
  %v2519 = vpow.pop %v2518
  %v2520 = vmul.f32 %v2506, 1.442695
  %v2521 = vpow.pop %v2520
  %v2522 = vmul.f32 %v2507, 1.442695
  %v2523 = vpow.pop %v2522
  %v2524 = vmul.f32 %v2508, 1.442695
  %v2525 = vpow.pop %v2524
  %v2526 = vmul.f32 %v2509, 1.442695
  %v2527 = vpow.pop %v2526
  %v2528 = vmul.f32 %v2510, 1.442695
  %v2529 = vpow.pop %v2528
  %v2530 = vmul.f32 %v2511, 1.442695
  %v2531 = vpow.pop %v2530
  %v2532 = vmul.f32 %v2512, 1.442695
  %v2533 = vpow.pop %v2532
  %v2534 = vmul.f32 %v2513, 1.442695
  %v2535 = vpow.pop %v2534
  %v2536 = vmul.f32 %v2514, 1.442695
  %v2537 = vpow.pop %v2536
  %v2538 = vmul.f32 %v2515, 1.442695
  %v2539 = vpow.pop %v2538
  %v2540 = vmul.f32 %v2516, 1.442695
  %v2541 = vpow.pop %v2540
  %v2542 = vmul.f32 %v2517, 1.442695
  %v2543 = vpow.pop %v2542
  %v2544 = vsel %vm1433, %v2519, 0.0
  %2545 = vadd.xlane.f32.xlu0 %v2544
  %v2546 = vpop.xlane.xlu0 %2545
  %v2547 = vsel %vm1433, %v2521, 0.0
  %2548 = vadd.xlane.f32.xlu0 %v2547
  %v2549 = vpop.xlane.xlu0 %2548
  %v2550 = vsel %vm1433, %v2523, 0.0
  %2551 = vadd.xlane.f32.xlu0 %v2550
  %v2552 = vpop.xlane.xlu0 %2551
  %v2553 = vsel %vm1433, %v2525, 0.0
  %2554 = vadd.xlane.f32.xlu0 %v2553
  %v2555 = vpop.xlane.xlu0 %2554
  %v2556 = vsel %vm1433, %v2527, 0.0
  %2557 = vadd.xlane.f32.xlu0 %v2556
  %v2558 = vpop.xlane.xlu0 %2557
  %v2559 = vsel %vm1433, %v2529, 0.0
  %2560 = vadd.xlane.f32.xlu0 %v2559
  %v2561 = vpop.xlane.xlu0 %2560
  %v2562 = vsel %vm1433, %v2531, 0.0
  %2563 = vadd.xlane.f32.xlu0 %v2562
  %v2564 = vpop.xlane.xlu0 %2563
  %v2565 = vsel %vm1433, %v2533, 0.0
  %2566 = vadd.xlane.f32.xlu0 %v2565
  %v2567 = vpop.xlane.xlu0 %2566
  %v2568 = vsel %vm1433, %v2535, 0.0
  %2569 = vadd.xlane.f32.xlu0 %v2568
  %v2570 = vpop.xlane.xlu0 %2569
  %v2571 = vsel %vm1433, %v2537, 0.0
  %2572 = vadd.xlane.f32.xlu0 %v2571
  %v2573 = vpop.xlane.xlu0 %2572
  %v2574 = vsel %vm1433, %v2539, 0.0
  %2575 = vadd.xlane.f32.xlu0 %v2574
  %v2576 = vpop.xlane.xlu0 %2575
  %v2577 = vsel %vm1433, %v2541, 0.0
  %2578 = vadd.xlane.f32.xlu0 %v2577
  %v2579 = vpop.xlane.xlu0 %2578
  %v2580 = vsel %vm1470, %v2543, 0.0
  %2581 = vadd.xlane.f32.xlu0 %v2580
  %v2582 = vpop.xlane.xlu0 %2581
  %v2583 = vrcp.pop %v2546
  %v2584 = vrcp.pop %v2549
  %v2585 = vrcp.pop %v2552
  %v2586 = vrcp.pop %v2555
  %v2587 = vrcp.pop %v2558
  %v2588 = vrcp.pop %v2561
  %v2589 = vrcp.pop %v2564
  %v2590 = vrcp.pop %v2567
  %v2591 = vrcp.pop %v2570
  %v2592 = vrcp.pop %v2573
  %v2593 = vrcp.pop %v2576
  %v2594 = vrcp.pop %v2579
  %v2595 = vrcp.pop %v2582
  %v2596 = vmul.f32 %v2519, %v2583
  %v2597 = vmul.f32 %v2521, %v2584
  %v2598 = vmul.f32 %v2523, %v2585
  %v2599 = vmul.f32 %v2525, %v2586
  %v2600 = vmul.f32 %v2527, %v2587
  %v2601 = vmul.f32 %v2529, %v2588
  %v2602 = vmul.f32 %v2531, %v2589
  %v2603 = vmul.f32 %v2533, %v2590
  %v2604 = vmul.f32 %v2535, %v2591
  %v2605 = vmul.f32 %v2537, %v2592
  %v2606 = vmul.f32 %v2539, %v2593
  %v2607 = vmul.f32 %v2541, %v2594
  %v2608 = vmul.f32 %v2543, %v2595
  %v2609 = vmul.f32 %v1129, %v2283
  %v2610 = vmul.f32 %v1134, %v2283
  %v2611 = vmul.f32 %v1139, %v2283
  %v2612 = vmul.f32 %v1144, %v2283
  %v2613 = vmul.f32 %v1149, %v2283
  %v2614 = vmul.f32 %v1154, %v2283
  %v2615 = vmul.f32 %v1159, %v2283
  %v2616 = vmul.f32 %v1164, %v2283
  %v2617 = vmul.f32 %v1169, %v2283
  %v2618 = vmul.f32 %v1174, %v2283
  %v2619 = vmul.f32 %v1179, %v2283
  %v2620 = vmul.f32 %v1184, %v2283
  %v2621 = vmul.f32 %v1189, %v2283
  %v2623 = vsel %vm1433, %v2596, 0
  %v2626 = vsel %vm1433, %v2597, 0
  %v2629 = vsel %vm1433, %v2598, 0
  %v2632 = vsel %vm1433, %v2599, 0
  %v2635 = vsel %vm1433, %v2600, 0
  %v2638 = vsel %vm1433, %v2601, 0
  %v2641 = vsel %vm1433, %v2602, 0
  %v2644 = vsel %vm1433, %v2603, 0
  %v2647 = vsel %vm1433, %v2604, 0
  %v2650 = vsel %vm1433, %v2605, 0
  %v2653 = vsel %vm1433, %v2606, 0
  %v2656 = vsel %vm1433, %v2607, 0
  %v2659 = vsel %vm1433, %v2608, 0
  %v2662 = vsel %vm1973, %v2621, 0
  %2664 = vmatprep.subr.mxu0 0.0
  %2665 = vmatpush1.msra.mxu0 %v2609
  %2666 = vmatprep.subr.mxu0 0.0
  %2667 = vmatpush1.msra.mxu0 %v2610
  %2668 = vmatprep.subr.mxu0 0.0
  %2669 = vmatpush1.msra.mxu0 %v2611
  %2670 = vmatprep.subr.mxu0 0.0
  %2671 = vmatpush1.msra.mxu0 %v2612
  %2672 = vmatprep.subr.mxu0 0.0
  %2673 = vmatpush1.msra.mxu0 %v2613
  %2674 = vmatprep.subr.mxu0 0.0
  %2675 = vmatpush1.msra.mxu0 %v2614
  %2676 = vmatprep.subr.mxu0 0.0
  %2677 = vmatpush1.msra.mxu0 %v2615
  %2678 = vmatprep.subr.mxu0 0.0
  %2679 = vmatpush1.msra.mxu0 %v2616
  %2680 = vmatprep.subr.mxu0 0.0
  %2681 = vmatpush1.msra.mxu0 %v2617
  %2682 = vmatprep.subr.mxu0 0.0
  %2683 = vmatpush1.msra.mxu0 %v2618
  %2684 = vmatprep.subr.mxu0 0.0
  %2685 = vmatpush1.msra.mxu0 %v2619
  %2686 = vmatprep.subr.mxu0 0.0
  %2687 = vmatpush1.msra.mxu0 %v2620
  %2688 = vmatprep.subr.mxu0 0.0
  %2689 = vmatpush1.msra.mxu0 %v2662
  %2690 = vmatprep.subr.mxu0 0.0
  %2691 = vmatpush1.msra.mxu0 0.0
  %2692 = vmatprep.subr.mxu0 0.0
  %2693 = vmatpush1.msra.mxu0 0.0
  %2694 = vmatprep.subr.mxu0 0.0
  %2695 = vmatpush1.msra.mxu0 0.0
  %2696 = vmatprep.subr.mxu0 0.0
  %2697 = vmatpush1.msra.mxu0 0.0
  %2698 = vmatprep.subr.mxu0 0.0
  %2699 = vmatpush1.msra.mxu0 0.0
  %2700 = vmatprep.subr.mxu0 0.0
  %2701 = vmatpush1.msra.mxu0 0.0
  %2702 = vmatprep.subr.mxu0 0.0
  %2703 = vmatpush1.msra.mxu0 0.0
  %2704 = vmatprep.subr.mxu0 0.0
  %2705 = vmatpush1.msra.mxu0 0.0
  %2706 = vmatprep.subr.mxu0 0.0
  %2707 = vmatpush1.msra.mxu0 0.0
  %2708 = vmatprep.subr.mxu0 0.0
  %2709 = vmatpush1.msra.mxu0 0.0
  %2710 = vmatprep.subr.mxu0 0.0
  %2711 = vmatpush1.msra.mxu0 0.0
  %2712 = vmatprep.subr.mxu0 0.0
  %2713 = vmatpush1.msra.mxu0 0.0
  %2714 = vmatprep.subr.mxu0 0.0
  %2715 = vmatpush1.msra.mxu0 0.0
  %2716 = vmatprep.subr.mxu0 0.0
  %2717 = vmatpush1.msra.mxu0 0.0
  %2718 = vmatprep.subr.mxu0 0.0
  %2719 = vmatpush1.msra.mxu0 0.0
  %2720 = vmatprep.subr.mxu0 0.0
  %2721 = vmatpush1.msra.mxu0 0.0
  %2722 = vmatprep.subr.mxu0 0.0
  %2723 = vmatpush1.msra.mxu0 0.0
  %2724 = vmatprep.subr.mxu0 0.0
  %2725 = vmatpush1.msra.mxu0 0.0
  %2726 = vmatprep.subr.mxu0 0.0
  %2727 = vmatpush1.msra.mxu0 0.0
  %2728 = vmatprep.mubr.f32.mxu0 0.0
  %2729 = vmatmul.mubr.f32.gmra.mrb[0].mxu0 %v2623
  %v2730 = vpop.f32.mrb[0].mxu0
  %v2731 = vadd.f32 0.0, %v2730
  %v2732 = vpop.f32.mrb[0].mxu0
  %2733 = vmatprep.mubr.f32.mxu0 0.0
  %2734 = vmatmul.mubr.f32.gmra.mrb[0].mxu0 %v2626
  %v2735 = vpop.f32.mrb[0].mxu0
  %v2736 = vadd.f32 0.0, %v2735
  %v2737 = vpop.f32.mrb[0].mxu0
  %2738 = vmatprep.mubr.f32.mxu0 0.0
  %2739 = vmatmul.mubr.f32.gmra.mrb[0].mxu0 %v2629
  %v2740 = vpop.f32.mrb[0].mxu0
  %v2741 = vadd.f32 0.0, %v2740
  %v2742 = vpop.f32.mrb[0].mxu0
  %2743 = vmatprep.mubr.f32.mxu0 0.0
  %2744 = vmatmul.mubr.f32.gmra.mrb[0].mxu0 %v2632
  %v2745 = vpop.f32.mrb[0].mxu0
  %v2746 = vadd.f32 0.0, %v2745
  %v2747 = vpop.f32.mrb[0].mxu0
  %2748 = vmatprep.mubr.f32.mxu0 0.0
  %2749 = vmatmul.mubr.f32.gmra.mrb[0].mxu0 %v2635
  %v2750 = vpop.f32.mrb[0].mxu0
  %v2751 = vadd.f32 0.0, %v2750
  %v2752 = vpop.f32.mrb[0].mxu0
  %2753 = vmatprep.mubr.f32.mxu0 0.0
  %2754 = vmatmul.mubr.f32.gmra.mrb[0].mxu0 %v2638
  %v2755 = vpop.f32.mrb[0].mxu0
  %v2756 = vadd.f32 0.0, %v2755
  %v2757 = vpop.f32.mrb[0].mxu0
  %2758 = vmatprep.mubr.f32.mxu0 0.0
  %2759 = vmatmul.mubr.f32.gmra.mrb[0].mxu0 %v2641
  %v2760 = vpop.f32.mrb[0].mxu0
  %v2761 = vadd.f32 0.0, %v2760
  %v2762 = vpop.f32.mrb[0].mxu0
  %2763 = vmatprep.mubr.f32.mxu0 0.0
  %2764 = vmatmul.mubr.f32.gmra.mrb[0].mxu0 %v2644
  %v2765 = vpop.f32.mrb[0].mxu0
  %v2766 = vadd.f32 0.0, %v2765
  %v2767 = vpop.f32.mrb[0].mxu0
  %2768 = vmatprep.mubr.f32.mxu0 0.0
  %2769 = vmatmul.mubr.f32.gmra.mrb[0].mxu0 %v2647
  %v2770 = vpop.f32.mrb[0].mxu0
  %v2771 = vadd.f32 0.0, %v2770
  %v2772 = vpop.f32.mrb[0].mxu0
  %2773 = vmatprep.mubr.f32.mxu0 0.0
  %2774 = vmatmul.mubr.f32.gmra.mrb[0].mxu0 %v2650
  %v2775 = vpop.f32.mrb[0].mxu0
  %v2776 = vadd.f32 0.0, %v2775
  %v2777 = vpop.f32.mrb[0].mxu0
  %2778 = vmatprep.mubr.f32.mxu0 0.0
  %2779 = vmatmul.mubr.f32.gmra.mrb[0].mxu0 %v2653
  %v2780 = vpop.f32.mrb[0].mxu0
  %v2781 = vadd.f32 0.0, %v2780
  %v2782 = vpop.f32.mrb[0].mxu0
  %2783 = vmatprep.mubr.f32.mxu0 0.0
  %2784 = vmatmul.mubr.f32.gmra.mrb[0].mxu0 %v2656
  %v2785 = vpop.f32.mrb[0].mxu0
  %v2786 = vadd.f32 0.0, %v2785
  %v2787 = vpop.f32.mrb[0].mxu0
  %2788 = vmatprep.mubr.f32.mxu0 0.0
  %2789 = vmatmul.mubr.f32.gmra.mrb[0].mxu0 %v2659
  %v2790 = vpop.f32.mrb[0].mxu0
  %v2791 = vadd.f32 0.0, %v2790
  %v2792 = vpop.f32.mrb[0].mxu0
  %2793 = vdwg.mxu0
  %v2794 = vadd.f32 %v2216, %v2731
  %v2795 = vadd.f32 %v2221, %v2736
  %v2796 = vadd.f32 %v2226, %v2741
  %v2797 = vadd.f32 %v2231, %v2746
  %v2798 = vadd.f32 %v2236, %v2751
  %v2799 = vadd.f32 %v2241, %v2756
  %v2800 = vadd.f32 %v2246, %v2761
  %v2801 = vadd.f32 %v2251, %v2766
  %v2802 = vadd.f32 %v2256, %v2771
  %v2803 = vadd.f32 %v2261, %v2776
  %v2804 = vadd.f32 %v2266, %v2781
  %v2805 = vadd.f32 %v2271, %v2786
  %v2806 = vadd.f32 %v2276, %v2791
  %vm2807 = vcmp.ge.s32.totalorder %v1193, 24
  %vm2808 = vcmp.lt.s32.totalorder %v1193, 32
  %vm2809 = vmand %vm2807, %vm2808
  %v2810 = vsel %vm2809, 1, 0
  %v2811 = vcvt.s32.f32 %v2810
  %v2812 = vmul.f32 %v353, %v2811
  %v2813 = vmul.f32 %v358, %v2811
  %v2814 = vmul.f32 %v363, %v2811
  %v2815 = vmul.f32 %v368, %v2811
  %v2816 = vmul.f32 %v373, %v2811
  %v2817 = vmul.f32 %v378, %v2811
  %v2818 = vmul.f32 %v383, %v2811
  %v2819 = vmul.f32 %v388, %v2811
  %v2820 = vmul.f32 %v393, %v2811
  %v2821 = vmul.f32 %v398, %v2811
  %v2822 = vmul.f32 %v403, %v2811
  %v2823 = vmul.f32 %v408, %v2811
  %v2824 = vmul.f32 %v413, %v2811
  %v2826 = vsel %vm32, %v2812, 0
  %v2829 = vsel %vm32, %v2813, 0
  %v2832 = vsel %vm32, %v2814, 0
  %v2835 = vsel %vm32, %v2815, 0
  %v2838 = vsel %vm32, %v2816, 0
  %v2841 = vsel %vm32, %v2817, 0
  %v2844 = vsel %vm32, %v2818, 0
  %v2847 = vsel %vm32, %v2819, 0
  %v2850 = vsel %vm32, %v2820, 0
  %v2853 = vsel %vm32, %v2821, 0
  %v2856 = vsel %vm32, %v2822, 0
  %v2859 = vsel %vm32, %v2823, 0
  %v2862 = vsel %vm32, %v2824, 0
  %2864 = vmatprep.subr.mxu0 0.0
  %2865 = vmatpush1.xpose.msra.mxu0 %v1265
  %2866 = vmatprep.subr.mxu0 0.0
  %2867 = vmatpush1.xpose.msra.mxu0 %v1268
  %2868 = vmatprep.subr.mxu0 0.0
  %2869 = vmatpush1.xpose.msra.mxu0 %v1271
  %2870 = vmatprep.subr.mxu0 0.0
  %2871 = vmatpush1.xpose.msra.mxu0 %v1274
  %2872 = vmatprep.subr.mxu0 0.0
  %2873 = vmatpush1.xpose.msra.mxu0 %v1277
  %2874 = vmatprep.subr.mxu0 0.0
  %2875 = vmatpush1.xpose.msra.mxu0 %v1280
  %2876 = vmatprep.subr.mxu0 0.0
  %2877 = vmatpush1.xpose.msra.mxu0 %v1283
  %2878 = vmatprep.subr.mxu0 0.0
  %2879 = vmatpush1.xpose.msra.mxu0 %v1286
  %2880 = vmatprep.subr.mxu0 0.0
  %2881 = vmatpush1.xpose.msra.mxu0 %v1289
  %2882 = vmatprep.subr.mxu0 0.0
  %2883 = vmatpush1.xpose.msra.mxu0 %v1292
  %2884 = vmatprep.subr.mxu0 0.0
  %2885 = vmatpush1.xpose.msra.mxu0 %v1295
  %2886 = vmatprep.subr.mxu0 0.0
  %2887 = vmatpush1.xpose.msra.mxu0 %v1298
  %2888 = vmatprep.subr.mxu0 0.0
  %2889 = vmatpush1.xpose.msra.mxu0 %v1301
  %2890 = vmatprep.subr.mxu0 0.0
  %2891 = vmatpush1.xpose.msra.mxu0 0.0
  %2892 = vmatprep.subr.mxu0 0.0
  %2893 = vmatpush1.xpose.msra.mxu0 0.0
  %2894 = vmatprep.subr.mxu0 0.0
  %2895 = vmatpush1.xpose.msra.mxu0 0.0
  %2896 = vmatprep.subr.mxu0 0.0
  %2897 = vmatpush1.xpose.msra.mxu0 0.0
  %2898 = vmatprep.subr.mxu0 0.0
  %2899 = vmatpush1.xpose.msra.mxu0 0.0
  %2900 = vmatprep.subr.mxu0 0.0
  %2901 = vmatpush1.xpose.msra.mxu0 0.0
  %2902 = vmatprep.subr.mxu0 0.0
  %2903 = vmatpush1.xpose.msra.mxu0 0.0
  %2904 = vmatprep.subr.mxu0 0.0
  %2905 = vmatpush1.xpose.msra.mxu0 0.0
  %2906 = vmatprep.subr.mxu0 0.0
  %2907 = vmatpush1.xpose.msra.mxu0 0.0
  %2908 = vmatprep.subr.mxu0 0.0
  %2909 = vmatpush1.xpose.msra.mxu0 0.0
  %2910 = vmatprep.subr.mxu0 0.0
  %2911 = vmatpush1.xpose.msra.mxu0 0.0
  %2912 = vmatprep.subr.mxu0 0.0
  %2913 = vmatpush1.xpose.msra.mxu0 0.0
  %2914 = vmatprep.subr.mxu0 0.0
  %2915 = vmatpush1.xpose.msra.mxu0 0.0
  %2916 = vmatprep.subr.mxu0 0.0
  %2917 = vmatpush1.xpose.msra.mxu0 0.0
  %2918 = vmatprep.subr.mxu0 0.0
  %2919 = vmatpush1.xpose.msra.mxu0 0.0
  %2920 = vmatprep.subr.mxu0 0.0
  %2921 = vmatpush1.xpose.msra.mxu0 0.0
  %2922 = vmatprep.subr.mxu0 0.0
  %2923 = vmatpush1.xpose.msra.mxu0 0.0
  %2924 = vmatprep.subr.mxu0 0.0
  %2925 = vmatpush1.xpose.msra.mxu0 0.0
  %2926 = vmatprep.subr.mxu0 0.0
  %2927 = vmatpush1.xpose.msra.mxu0 0.0
  %2928 = vmatprep.mubr.f32.mxu0 0.0
  %2929 = vmatmul.mubr.f32.gmra.mrb[0].mxu0 %v2826
  %v2930 = vpop.f32.mrb[0].mxu0
  %v2931 = vadd.f32 %v1212, %v2930
  %v2932 = vpop.f32.mrb[0].mxu0
  %2933 = vmatprep.mubr.f32.mxu0 0.0
  %2934 = vmatmul.mubr.f32.gmra.mrb[0].mxu0 %v2829
  %v2935 = vpop.f32.mrb[0].mxu0
  %v2936 = vadd.f32 %v1213, %v2935
  %v2937 = vpop.f32.mrb[0].mxu0
  %2938 = vmatprep.mubr.f32.mxu0 0.0
  %2939 = vmatmul.mubr.f32.gmra.mrb[0].mxu0 %v2832
  %v2940 = vpop.f32.mrb[0].mxu0
  %v2941 = vadd.f32 %v1214, %v2940
  %v2942 = vpop.f32.mrb[0].mxu0
  %2943 = vmatprep.mubr.f32.mxu0 0.0
  %2944 = vmatmul.mubr.f32.gmra.mrb[0].mxu0 %v2835
  %v2945 = vpop.f32.mrb[0].mxu0
  %v2946 = vadd.f32 %v1215, %v2945
  %v2947 = vpop.f32.mrb[0].mxu0
  %2948 = vmatprep.mubr.f32.mxu0 0.0
  %2949 = vmatmul.mubr.f32.gmra.mrb[0].mxu0 %v2838
  %v2950 = vpop.f32.mrb[0].mxu0
  %v2951 = vadd.f32 %v1216, %v2950
  %v2952 = vpop.f32.mrb[0].mxu0
  %2953 = vmatprep.mubr.f32.mxu0 0.0
  %2954 = vmatmul.mubr.f32.gmra.mrb[0].mxu0 %v2841
  %v2955 = vpop.f32.mrb[0].mxu0
  %v2956 = vadd.f32 %v1217, %v2955
  %v2957 = vpop.f32.mrb[0].mxu0
  %2958 = vmatprep.mubr.f32.mxu0 0.0
  %2959 = vmatmul.mubr.f32.gmra.mrb[0].mxu0 %v2844
  %v2960 = vpop.f32.mrb[0].mxu0
  %v2961 = vadd.f32 %v1218, %v2960
  %v2962 = vpop.f32.mrb[0].mxu0
  %2963 = vmatprep.mubr.f32.mxu0 0.0
  %2964 = vmatmul.mubr.f32.gmra.mrb[0].mxu0 %v2847
  %v2965 = vpop.f32.mrb[0].mxu0
  %v2966 = vadd.f32 %v1219, %v2965
  %v2967 = vpop.f32.mrb[0].mxu0
  %2968 = vmatprep.mubr.f32.mxu0 0.0
  %2969 = vmatmul.mubr.f32.gmra.mrb[0].mxu0 %v2850
  %v2970 = vpop.f32.mrb[0].mxu0
  %v2971 = vadd.f32 %v1220, %v2970
  %v2972 = vpop.f32.mrb[0].mxu0
  %2973 = vmatprep.mubr.f32.mxu0 0.0
  %2974 = vmatmul.mubr.f32.gmra.mrb[0].mxu0 %v2853
  %v2975 = vpop.f32.mrb[0].mxu0
  %v2976 = vadd.f32 %v1221, %v2975
  %v2977 = vpop.f32.mrb[0].mxu0
  %2978 = vmatprep.mubr.f32.mxu0 0.0
  %2979 = vmatmul.mubr.f32.gmra.mrb[0].mxu0 %v2856
  %v2980 = vpop.f32.mrb[0].mxu0
  %v2981 = vadd.f32 %v1222, %v2980
  %v2982 = vpop.f32.mrb[0].mxu0
  %2983 = vmatprep.mubr.f32.mxu0 0.0
  %2984 = vmatmul.mubr.f32.gmra.mrb[0].mxu0 %v2859
  %v2985 = vpop.f32.mrb[0].mxu0
  %v2986 = vadd.f32 %v1223, %v2985
  %v2987 = vpop.f32.mrb[0].mxu0
  %2988 = vmatprep.mubr.f32.mxu0 0.0
  %2989 = vmatmul.mubr.f32.gmra.mrb[0].mxu0 %v2862
  %v2990 = vpop.f32.mrb[0].mxu0
  %v2991 = vadd.f32 %v1224, %v2990
  %v2992 = vpop.f32.mrb[0].mxu0
  %2993 = vdwg.mxu0
  %v2994 = vsel %vm1433, %v2931, -inf
  %2995 = vmax.xlane.f32.xlu0 %v2994
  %v2996 = vpop.xlane.xlu0 %2995
  %v2997 = vsel %vm1433, %v2936, -inf
  %2998 = vmax.xlane.f32.xlu0 %v2997
  %v2999 = vpop.xlane.xlu0 %2998
  %v3000 = vsel %vm1433, %v2941, -inf
  %3001 = vmax.xlane.f32.xlu0 %v3000
  %v3002 = vpop.xlane.xlu0 %3001
  %v3003 = vsel %vm1433, %v2946, -inf
  %3004 = vmax.xlane.f32.xlu0 %v3003
  %v3005 = vpop.xlane.xlu0 %3004
  %v3006 = vsel %vm1433, %v2951, -inf
  %3007 = vmax.xlane.f32.xlu0 %v3006
  %v3008 = vpop.xlane.xlu0 %3007
  %v3009 = vsel %vm1433, %v2956, -inf
  %3010 = vmax.xlane.f32.xlu0 %v3009
  %v3011 = vpop.xlane.xlu0 %3010
  %v3012 = vsel %vm1433, %v2961, -inf
  %3013 = vmax.xlane.f32.xlu0 %v3012
  %v3014 = vpop.xlane.xlu0 %3013
  %v3015 = vsel %vm1433, %v2966, -inf
  %3016 = vmax.xlane.f32.xlu0 %v3015
  %v3017 = vpop.xlane.xlu0 %3016
  %v3018 = vsel %vm1433, %v2971, -inf
  %3019 = vmax.xlane.f32.xlu0 %v3018
  %v3020 = vpop.xlane.xlu0 %3019
  %v3021 = vsel %vm1433, %v2976, -inf
  %3022 = vmax.xlane.f32.xlu0 %v3021
  %v3023 = vpop.xlane.xlu0 %3022
  %v3024 = vsel %vm1433, %v2981, -inf
  %3025 = vmax.xlane.f32.xlu0 %v3024
  %v3026 = vpop.xlane.xlu0 %3025
  %v3027 = vsel %vm1433, %v2986, -inf
  %3028 = vmax.xlane.f32.xlu0 %v3027
  %v3029 = vpop.xlane.xlu0 %3028
  %v3030 = vsel %vm1470, %v2991, -inf
  %3031 = vmax.xlane.f32.xlu0 %v3030
  %v3032 = vpop.xlane.xlu0 %3031
  %v3033 = vsub.f32 %v2931, %v2996
  %v3034 = vsub.f32 %v2936, %v2999
  %v3035 = vsub.f32 %v2941, %v3002
  %v3036 = vsub.f32 %v2946, %v3005
  %v3037 = vsub.f32 %v2951, %v3008
  %v3038 = vsub.f32 %v2956, %v3011
  %v3039 = vsub.f32 %v2961, %v3014
  %v3040 = vsub.f32 %v2966, %v3017
  %v3041 = vsub.f32 %v2971, %v3020
  %v3042 = vsub.f32 %v2976, %v3023
  %v3043 = vsub.f32 %v2981, %v3026
  %v3044 = vsub.f32 %v2986, %v3029
  %v3045 = vsub.f32 %v2991, %v3032
  %v3046 = vmul.f32 %v3033, 1.442695
  %v3047 = vpow.pop %v3046
  %v3048 = vmul.f32 %v3034, 1.442695
  %v3049 = vpow.pop %v3048
  %v3050 = vmul.f32 %v3035, 1.442695
  %v3051 = vpow.pop %v3050
  %v3052 = vmul.f32 %v3036, 1.442695
  %v3053 = vpow.pop %v3052
  %v3054 = vmul.f32 %v3037, 1.442695
  %v3055 = vpow.pop %v3054
  %v3056 = vmul.f32 %v3038, 1.442695
  %v3057 = vpow.pop %v3056
  %v3058 = vmul.f32 %v3039, 1.442695
  %v3059 = vpow.pop %v3058
  %v3060 = vmul.f32 %v3040, 1.442695
  %v3061 = vpow.pop %v3060
  %v3062 = vmul.f32 %v3041, 1.442695
  %v3063 = vpow.pop %v3062
  %v3064 = vmul.f32 %v3042, 1.442695
  %v3065 = vpow.pop %v3064
  %v3066 = vmul.f32 %v3043, 1.442695
  %v3067 = vpow.pop %v3066
  %v3068 = vmul.f32 %v3044, 1.442695
  %v3069 = vpow.pop %v3068
  %v3070 = vmul.f32 %v3045, 1.442695
  %v3071 = vpow.pop %v3070
  %v3072 = vsel %vm1433, %v3047, 0.0
  %3073 = vadd.xlane.f32.xlu0 %v3072
  %v3074 = vpop.xlane.xlu0 %3073
  %v3075 = vsel %vm1433, %v3049, 0.0
  %3076 = vadd.xlane.f32.xlu0 %v3075
  %v3077 = vpop.xlane.xlu0 %3076
  %v3078 = vsel %vm1433, %v3051, 0.0
  %3079 = vadd.xlane.f32.xlu0 %v3078
  %v3080 = vpop.xlane.xlu0 %3079
  %v3081 = vsel %vm1433, %v3053, 0.0
  %3082 = vadd.xlane.f32.xlu0 %v3081
  %v3083 = vpop.xlane.xlu0 %3082
  %v3084 = vsel %vm1433, %v3055, 0.0
  %3085 = vadd.xlane.f32.xlu0 %v3084
  %v3086 = vpop.xlane.xlu0 %3085
  %v3087 = vsel %vm1433, %v3057, 0.0
  %3088 = vadd.xlane.f32.xlu0 %v3087
  %v3089 = vpop.xlane.xlu0 %3088
  %v3090 = vsel %vm1433, %v3059, 0.0
  %3091 = vadd.xlane.f32.xlu0 %v3090
  %v3092 = vpop.xlane.xlu0 %3091
  %v3093 = vsel %vm1433, %v3061, 0.0
  %3094 = vadd.xlane.f32.xlu0 %v3093
  %v3095 = vpop.xlane.xlu0 %3094
  %v3096 = vsel %vm1433, %v3063, 0.0
  %3097 = vadd.xlane.f32.xlu0 %v3096
  %v3098 = vpop.xlane.xlu0 %3097
  %v3099 = vsel %vm1433, %v3065, 0.0
  %3100 = vadd.xlane.f32.xlu0 %v3099
  %v3101 = vpop.xlane.xlu0 %3100
  %v3102 = vsel %vm1433, %v3067, 0.0
  %3103 = vadd.xlane.f32.xlu0 %v3102
  %v3104 = vpop.xlane.xlu0 %3103
  %v3105 = vsel %vm1433, %v3069, 0.0
  %3106 = vadd.xlane.f32.xlu0 %v3105
  %v3107 = vpop.xlane.xlu0 %3106
  %v3108 = vsel %vm1470, %v3071, 0.0
  %3109 = vadd.xlane.f32.xlu0 %v3108
  %v3110 = vpop.xlane.xlu0 %3109
  %v3111 = vrcp.pop %v3074
  %v3112 = vrcp.pop %v3077
  %v3113 = vrcp.pop %v3080
  %v3114 = vrcp.pop %v3083
  %v3115 = vrcp.pop %v3086
  %v3116 = vrcp.pop %v3089
  %v3117 = vrcp.pop %v3092
  %v3118 = vrcp.pop %v3095
  %v3119 = vrcp.pop %v3098
  %v3120 = vrcp.pop %v3101
  %v3121 = vrcp.pop %v3104
  %v3122 = vrcp.pop %v3107
  %v3123 = vrcp.pop %v3110
  %v3124 = vmul.f32 %v3047, %v3111
  %v3125 = vmul.f32 %v3049, %v3112
  %v3126 = vmul.f32 %v3051, %v3113
  %v3127 = vmul.f32 %v3053, %v3114
  %v3128 = vmul.f32 %v3055, %v3115
  %v3129 = vmul.f32 %v3057, %v3116
  %v3130 = vmul.f32 %v3059, %v3117
  %v3131 = vmul.f32 %v3061, %v3118
  %v3132 = vmul.f32 %v3063, %v3119
  %v3133 = vmul.f32 %v3065, %v3120
  %v3134 = vmul.f32 %v3067, %v3121
  %v3135 = vmul.f32 %v3069, %v3122
  %v3136 = vmul.f32 %v3071, %v3123
  %v3137 = vmul.f32 %v1129, %v2811
  %v3138 = vmul.f32 %v1134, %v2811
  %v3139 = vmul.f32 %v1139, %v2811
  %v3140 = vmul.f32 %v1144, %v2811
  %v3141 = vmul.f32 %v1149, %v2811
  %v3142 = vmul.f32 %v1154, %v2811
  %v3143 = vmul.f32 %v1159, %v2811
  %v3144 = vmul.f32 %v1164, %v2811
  %v3145 = vmul.f32 %v1169, %v2811
  %v3146 = vmul.f32 %v1174, %v2811
  %v3147 = vmul.f32 %v1179, %v2811
  %v3148 = vmul.f32 %v1184, %v2811
  %v3149 = vmul.f32 %v1189, %v2811
  %v3151 = vsel %vm1433, %v3124, 0
  %v3154 = vsel %vm1433, %v3125, 0
  %v3157 = vsel %vm1433, %v3126, 0
  %v3160 = vsel %vm1433, %v3127, 0
  %v3163 = vsel %vm1433, %v3128, 0
  %v3166 = vsel %vm1433, %v3129, 0
  %v3169 = vsel %vm1433, %v3130, 0
  %v3172 = vsel %vm1433, %v3131, 0
  %v3175 = vsel %vm1433, %v3132, 0
  %v3178 = vsel %vm1433, %v3133, 0
  %v3181 = vsel %vm1433, %v3134, 0
  %v3184 = vsel %vm1433, %v3135, 0
  %v3187 = vsel %vm1433, %v3136, 0
  %v3190 = vsel %vm1973, %v3149, 0
  %3192 = vmatprep.subr.mxu0 0.0
  %3193 = vmatpush1.msra.mxu0 %v3137
  %3194 = vmatprep.subr.mxu0 0.0
  %3195 = vmatpush1.msra.mxu0 %v3138
  %3196 = vmatprep.subr.mxu0 0.0
  %3197 = vmatpush1.msra.mxu0 %v3139
  %3198 = vmatprep.subr.mxu0 0.0
  %3199 = vmatpush1.msra.mxu0 %v3140
  %3200 = vmatprep.subr.mxu0 0.0
  %3201 = vmatpush1.msra.mxu0 %v3141
  %3202 = vmatprep.subr.mxu0 0.0
  %3203 = vmatpush1.msra.mxu0 %v3142
  %3204 = vmatprep.subr.mxu0 0.0
  %3205 = vmatpush1.msra.mxu0 %v3143
  %3206 = vmatprep.subr.mxu0 0.0
  %3207 = vmatpush1.msra.mxu0 %v3144
  %3208 = vmatprep.subr.mxu0 0.0
  %3209 = vmatpush1.msra.mxu0 %v3145
  %3210 = vmatprep.subr.mxu0 0.0
  %3211 = vmatpush1.msra.mxu0 %v3146
  %3212 = vmatprep.subr.mxu0 0.0
  %3213 = vmatpush1.msra.mxu0 %v3147
  %3214 = vmatprep.subr.mxu0 0.0
  %3215 = vmatpush1.msra.mxu0 %v3148
  %3216 = vmatprep.subr.mxu0 0.0
  %3217 = vmatpush1.msra.mxu0 %v3190
  %3218 = vmatprep.subr.mxu0 0.0
  %3219 = vmatpush1.msra.mxu0 0.0
  %3220 = vmatprep.subr.mxu0 0.0
  %3221 = vmatpush1.msra.mxu0 0.0
  %3222 = vmatprep.subr.mxu0 0.0
  %3223 = vmatpush1.msra.mxu0 0.0
  %3224 = vmatprep.subr.mxu0 0.0
  %3225 = vmatpush1.msra.mxu0 0.0
  %3226 = vmatprep.subr.mxu0 0.0
  %3227 = vmatpush1.msra.mxu0 0.0
  %3228 = vmatprep.subr.mxu0 0.0
  %3229 = vmatpush1.msra.mxu0 0.0
  %3230 = vmatprep.subr.mxu0 0.0
  %3231 = vmatpush1.msra.mxu0 0.0
  %3232 = vmatprep.subr.mxu0 0.0
  %3233 = vmatpush1.msra.mxu0 0.0
  %3234 = vmatprep.subr.mxu0 0.0
  %3235 = vmatpush1.msra.mxu0 0.0
  %3236 = vmatprep.subr.mxu0 0.0
  %3237 = vmatpush1.msra.mxu0 0.0
  %3238 = vmatprep.subr.mxu0 0.0
  %3239 = vmatpush1.msra.mxu0 0.0
  %3240 = vmatprep.subr.mxu0 0.0
  %3241 = vmatpush1.msra.mxu0 0.0
  %3242 = vmatprep.subr.mxu0 0.0
  %3243 = vmatpush1.msra.mxu0 0.0
  %3244 = vmatprep.subr.mxu0 0.0
  %3245 = vmatpush1.msra.mxu0 0.0
  %3246 = vmatprep.subr.mxu0 0.0
  %3247 = vmatpush1.msra.mxu0 0.0
  %3248 = vmatprep.subr.mxu0 0.0
  %3249 = vmatpush1.msra.mxu0 0.0
  %3250 = vmatprep.subr.mxu0 0.0
  %3251 = vmatpush1.msra.mxu0 0.0
  %3252 = vmatprep.subr.mxu0 0.0
  %3253 = vmatpush1.msra.mxu0 0.0
  %3254 = vmatprep.subr.mxu0 0.0
  %3255 = vmatpush1.msra.mxu0 0.0
  %3256 = vmatprep.mubr.f32.mxu0 0.0
  %3257 = vmatmul.mubr.f32.gmra.mrb[0].mxu0 %v3151
  %v3258 = vpop.f32.mrb[0].mxu0
  %v3259 = vadd.f32 0.0, %v3258
  %v3260 = vpop.f32.mrb[0].mxu0
  %3261 = vmatprep.mubr.f32.mxu0 0.0
  %3262 = vmatmul.mubr.f32.gmra.mrb[0].mxu0 %v3154
  %v3263 = vpop.f32.mrb[0].mxu0
  %v3264 = vadd.f32 0.0, %v3263
  %v3265 = vpop.f32.mrb[0].mxu0
  %3266 = vmatprep.mubr.f32.mxu0 0.0
  %3267 = vmatmul.mubr.f32.gmra.mrb[0].mxu0 %v3157
  %v3268 = vpop.f32.mrb[0].mxu0
  %v3269 = vadd.f32 0.0, %v3268
  %v3270 = vpop.f32.mrb[0].mxu0
  %3271 = vmatprep.mubr.f32.mxu0 0.0
  %3272 = vmatmul.mubr.f32.gmra.mrb[0].mxu0 %v3160
  %v3273 = vpop.f32.mrb[0].mxu0
  %v3274 = vadd.f32 0.0, %v3273
  %v3275 = vpop.f32.mrb[0].mxu0
  %3276 = vmatprep.mubr.f32.mxu0 0.0
  %3277 = vmatmul.mubr.f32.gmra.mrb[0].mxu0 %v3163
  %v3278 = vpop.f32.mrb[0].mxu0
  %v3279 = vadd.f32 0.0, %v3278
  %v3280 = vpop.f32.mrb[0].mxu0
  %3281 = vmatprep.mubr.f32.mxu0 0.0
  %3282 = vmatmul.mubr.f32.gmra.mrb[0].mxu0 %v3166
  %v3283 = vpop.f32.mrb[0].mxu0
  %v3284 = vadd.f32 0.0, %v3283
  %v3285 = vpop.f32.mrb[0].mxu0
  %3286 = vmatprep.mubr.f32.mxu0 0.0
  %3287 = vmatmul.mubr.f32.gmra.mrb[0].mxu0 %v3169
  %v3288 = vpop.f32.mrb[0].mxu0
  %v3289 = vadd.f32 0.0, %v3288
  %v3290 = vpop.f32.mrb[0].mxu0
  %3291 = vmatprep.mubr.f32.mxu0 0.0
  %3292 = vmatmul.mubr.f32.gmra.mrb[0].mxu0 %v3172
  %v3293 = vpop.f32.mrb[0].mxu0
  %v3294 = vadd.f32 0.0, %v3293
  %v3295 = vpop.f32.mrb[0].mxu0
  %3296 = vmatprep.mubr.f32.mxu0 0.0
  %3297 = vmatmul.mubr.f32.gmra.mrb[0].mxu0 %v3175
  %v3298 = vpop.f32.mrb[0].mxu0
  %v3299 = vadd.f32 0.0, %v3298
  %v3300 = vpop.f32.mrb[0].mxu0
  %3301 = vmatprep.mubr.f32.mxu0 0.0
  %3302 = vmatmul.mubr.f32.gmra.mrb[0].mxu0 %v3178
  %v3303 = vpop.f32.mrb[0].mxu0
  %v3304 = vadd.f32 0.0, %v3303
  %v3305 = vpop.f32.mrb[0].mxu0
  %3306 = vmatprep.mubr.f32.mxu0 0.0
  %3307 = vmatmul.mubr.f32.gmra.mrb[0].mxu0 %v3181
  %v3308 = vpop.f32.mrb[0].mxu0
  %v3309 = vadd.f32 0.0, %v3308
  %v3310 = vpop.f32.mrb[0].mxu0
  %3311 = vmatprep.mubr.f32.mxu0 0.0
  %3312 = vmatmul.mubr.f32.gmra.mrb[0].mxu0 %v3184
  %v3313 = vpop.f32.mrb[0].mxu0
  %v3314 = vadd.f32 0.0, %v3313
  %v3315 = vpop.f32.mrb[0].mxu0
  %3316 = vmatprep.mubr.f32.mxu0 0.0
  %3317 = vmatmul.mubr.f32.gmra.mrb[0].mxu0 %v3187
  %v3318 = vpop.f32.mrb[0].mxu0
  %v3319 = vadd.f32 0.0, %v3318
  %v3320 = vpop.f32.mrb[0].mxu0
  %3321 = vdwg.mxu0
  %v3322 = vadd.f32 %v2794, %v3259
  %v3323 = vadd.f32 %v2795, %v3264
  %v3324 = vadd.f32 %v2796, %v3269
  %v3325 = vadd.f32 %v2797, %v3274
  %v3326 = vadd.f32 %v2798, %v3279
  %v3327 = vadd.f32 %v2799, %v3284
  %v3328 = vadd.f32 %v2800, %v3289
  %v3329 = vadd.f32 %v2801, %v3294
  %v3330 = vadd.f32 %v2802, %v3299
  %v3331 = vadd.f32 %v2803, %v3304
  %v3332 = vadd.f32 %v2804, %v3309
  %v3333 = vadd.f32 %v2805, %v3314
  %v3334 = vadd.f32 %v2806, %v3319
  %s3335 = scalar_lea.vmem %s2, 96
  %v3336 = vld [vmem:[%s3335] sm:$0xff]
  %v3337 = vld [vmem:[%s3335 + $0x8] sm:$0xff]
  %v3338 = vld [vmem:[%s3335 + $0x10] sm:$0xff]
  %v3339 = vld [vmem:[%s3335 + $0x18] sm:$0xff]
  %v3340 = vld [vmem:[%s3 + $0x5] sm:$0x1]
  %v3341 = vlaneseq
  %v3342 = vshrl.u32 %v3341, 7
  %v3343 = vsub.s32 0, %v3342
  %v3344 = vrot.slane %v3340, %v3343
  %v3346 = vsel %vm32, %v3322, 0
  %v3349 = vsel %vm32, %v3323, 0
  %v3352 = vsel %vm32, %v3324, 0
  %v3355 = vsel %vm32, %v3325, 0
  %v3358 = vsel %vm32, %v3326, 0
  %v3361 = vsel %vm32, %v3327, 0
  %v3364 = vsel %vm32, %v3328, 0
  %v3367 = vsel %vm32, %v3329, 0
  %v3370 = vsel %vm32, %v3330, 0
  %v3373 = vsel %vm32, %v3331, 0
  %v3376 = vsel %vm32, %v3332, 0
  %v3379 = vsel %vm32, %v3333, 0
  %v3382 = vsel %vm32, %v3334, 0
  %3384 = vmatprep.subr.mxu0 0.0
  %3385 = vmatpush1.msra.mxu0 %v3336
  %3386 = vmatprep.subr.mxu0 0.0
  %3387 = vmatpush1.msra.mxu0 %v3337
  %3388 = vmatprep.subr.mxu0 0.0
  %3389 = vmatpush1.msra.mxu0 %v3338
  %3390 = vmatprep.subr.mxu0 0.0
  %3391 = vmatpush1.msra.mxu0 %v3339
  %3392 = vmatprep.subr.mxu0 0.0
  %3393 = vmatpush1.msra.mxu0 0.0
  %3394 = vmatprep.subr.mxu0 0.0
  %3395 = vmatpush1.msra.mxu0 0.0
  %3396 = vmatprep.subr.mxu0 0.0
  %3397 = vmatpush1.msra.mxu0 0.0
  %3398 = vmatprep.subr.mxu0 0.0
  %3399 = vmatpush1.msra.mxu0 0.0
  %3400 = vmatprep.subr.mxu0 0.0
  %3401 = vmatpush1.msra.mxu0 0.0
  %3402 = vmatprep.subr.mxu0 0.0
  %3403 = vmatpush1.msra.mxu0 0.0
  %3404 = vmatprep.subr.mxu0 0.0
  %3405 = vmatpush1.msra.mxu0 0.0
  %3406 = vmatprep.subr.mxu0 0.0
  %3407 = vmatpush1.msra.mxu0 0.0
  %3408 = vmatprep.subr.mxu0 0.0
  %3409 = vmatpush1.msra.mxu0 0.0
  %3410 = vmatprep.subr.mxu0 0.0
  %3411 = vmatpush1.msra.mxu0 0.0
  %3412 = vmatprep.subr.mxu0 0.0
  %3413 = vmatpush1.msra.mxu0 0.0
  %3414 = vmatprep.subr.mxu0 0.0
  %3415 = vmatpush1.msra.mxu0 0.0
  %3416 = vmatprep.subr.mxu0 0.0
  %3417 = vmatpush1.msra.mxu0 0.0
  %3418 = vmatprep.subr.mxu0 0.0
  %3419 = vmatpush1.msra.mxu0 0.0
  %3420 = vmatprep.subr.mxu0 0.0
  %3421 = vmatpush1.msra.mxu0 0.0
  %3422 = vmatprep.subr.mxu0 0.0
  %3423 = vmatpush1.msra.mxu0 0.0
  %3424 = vmatprep.subr.mxu0 0.0
  %3425 = vmatpush1.msra.mxu0 0.0
  %3426 = vmatprep.subr.mxu0 0.0
  %3427 = vmatpush1.msra.mxu0 0.0
  %3428 = vmatprep.subr.mxu0 0.0
  %3429 = vmatpush1.msra.mxu0 0.0
  %3430 = vmatprep.subr.mxu0 0.0
  %3431 = vmatpush1.msra.mxu0 0.0
  %3432 = vmatprep.subr.mxu0 0.0
  %3433 = vmatpush1.msra.mxu0 0.0
  %3434 = vmatprep.subr.mxu0 0.0
  %3435 = vmatpush1.msra.mxu0 0.0
  %3436 = vmatprep.subr.mxu0 0.0
  %3437 = vmatpush1.msra.mxu0 0.0
  %3438 = vmatprep.subr.mxu0 0.0
  %3439 = vmatpush1.msra.mxu0 0.0
  %3440 = vmatprep.subr.mxu0 0.0
  %3441 = vmatpush1.msra.mxu0 0.0
  %3442 = vmatprep.subr.mxu0 0.0
  %3443 = vmatpush1.msra.mxu0 0.0
  %3444 = vmatprep.subr.mxu0 0.0
  %3445 = vmatpush1.msra.mxu0 0.0
  %3446 = vmatprep.subr.mxu0 0.0
  %3447 = vmatpush1.msra.mxu0 0.0
  %3448 = vmatprep.mubr.f32.mxu0 0.0
  %3449 = vmatmul.mubr.f32.gmra.mrb[0].mxu0 %v3346
  %v3450 = vpop.f32.mrb[0].mxu0
  %v3451 = vadd.f32 %v3344, %v3450
  %v3452 = vpop.f32.mrb[0].mxu0
  %3453 = vmatprep.mubr.f32.mxu0 0.0
  %3454 = vmatmul.mubr.f32.gmra.mrb[0].mxu0 %v3349
  %v3455 = vpop.f32.mrb[0].mxu0
  %v3456 = vadd.f32 %v3344, %v3455
  %v3457 = vpop.f32.mrb[0].mxu0
  %3458 = vmatprep.mubr.f32.mxu0 0.0
  %3459 = vmatmul.mubr.f32.gmra.mrb[0].mxu0 %v3352
  %v3460 = vpop.f32.mrb[0].mxu0
  %v3461 = vadd.f32 %v3344, %v3460
  %v3462 = vpop.f32.mrb[0].mxu0
  %3463 = vmatprep.mubr.f32.mxu0 0.0
  %3464 = vmatmul.mubr.f32.gmra.mrb[0].mxu0 %v3355
  %v3465 = vpop.f32.mrb[0].mxu0
  %v3466 = vadd.f32 %v3344, %v3465
  %v3467 = vpop.f32.mrb[0].mxu0
  %3468 = vmatprep.mubr.f32.mxu0 0.0
  %3469 = vmatmul.mubr.f32.gmra.mrb[0].mxu0 %v3358
  %v3470 = vpop.f32.mrb[0].mxu0
  %v3471 = vadd.f32 %v3344, %v3470
  %v3472 = vpop.f32.mrb[0].mxu0
  %3473 = vmatprep.mubr.f32.mxu0 0.0
  %3474 = vmatmul.mubr.f32.gmra.mrb[0].mxu0 %v3361
  %v3475 = vpop.f32.mrb[0].mxu0
  %v3476 = vadd.f32 %v3344, %v3475
  %v3477 = vpop.f32.mrb[0].mxu0
  %3478 = vmatprep.mubr.f32.mxu0 0.0
  %3479 = vmatmul.mubr.f32.gmra.mrb[0].mxu0 %v3364
  %v3480 = vpop.f32.mrb[0].mxu0
  %v3481 = vadd.f32 %v3344, %v3480
  %v3482 = vpop.f32.mrb[0].mxu0
  %3483 = vmatprep.mubr.f32.mxu0 0.0
  %3484 = vmatmul.mubr.f32.gmra.mrb[0].mxu0 %v3367
  %v3485 = vpop.f32.mrb[0].mxu0
  %v3486 = vadd.f32 %v3344, %v3485
  %v3487 = vpop.f32.mrb[0].mxu0
  %3488 = vmatprep.mubr.f32.mxu0 0.0
  %3489 = vmatmul.mubr.f32.gmra.mrb[0].mxu0 %v3370
  %v3490 = vpop.f32.mrb[0].mxu0
  %v3491 = vadd.f32 %v3344, %v3490
  %v3492 = vpop.f32.mrb[0].mxu0
  %3493 = vmatprep.mubr.f32.mxu0 0.0
  %3494 = vmatmul.mubr.f32.gmra.mrb[0].mxu0 %v3373
  %v3495 = vpop.f32.mrb[0].mxu0
  %v3496 = vadd.f32 %v3344, %v3495
  %v3497 = vpop.f32.mrb[0].mxu0
  %3498 = vmatprep.mubr.f32.mxu0 0.0
  %3499 = vmatmul.mubr.f32.gmra.mrb[0].mxu0 %v3376
  %v3500 = vpop.f32.mrb[0].mxu0
  %v3501 = vadd.f32 %v3344, %v3500
  %v3502 = vpop.f32.mrb[0].mxu0
  %3503 = vmatprep.mubr.f32.mxu0 0.0
  %3504 = vmatmul.mubr.f32.gmra.mrb[0].mxu0 %v3379
  %v3505 = vpop.f32.mrb[0].mxu0
  %v3506 = vadd.f32 %v3344, %v3505
  %v3507 = vpop.f32.mrb[0].mxu0
  %3508 = vmatprep.mubr.f32.mxu0 0.0
  %3509 = vmatmul.mubr.f32.gmra.mrb[0].mxu0 %v3382
  %v3510 = vpop.f32.mrb[0].mxu0
  %v3511 = vadd.f32 %v3344, %v3510
  %v3512 = vpop.f32.mrb[0].mxu0
  %3513 = vdwg.mxu0
  %v3514 = vadd.f32 %v19, %v3451
  %v3515 = vadd.f32 %v20, %v3456
  %v3516 = vadd.f32 %v21, %v3461
  %v3517 = vadd.f32 %v22, %v3466
  %v3518 = vadd.f32 %v23, %v3471
  %v3519 = vadd.f32 %v24, %v3476
  %v3520 = vadd.f32 %v25, %v3481
  %v3521 = vadd.f32 %v26, %v3486
  %v3522 = vadd.f32 %v27, %v3491
  %v3523 = vadd.f32 %v28, %v3496
  %v3524 = vadd.f32 %v29, %v3501
  %v3525 = vadd.f32 %v30, %v3506
  %v3526 = vadd.f32 %v31, %v3511
  %3527 = vst.msk [vmem:[%s4] sm:$0xff] %vm32, %v3514
  %3528 = vst.msk [vmem:[%s4 + $0x8] sm:$0xff] %vm32, %v3515
  %3529 = vst.msk [vmem:[%s4 + $0x10] sm:$0xff] %vm32, %v3516
  %3530 = vst.msk [vmem:[%s4 + $0x18] sm:$0xff] %vm32, %v3517
  %3531 = vst.msk [vmem:[%s4 + $0x20] sm:$0xff] %vm32, %v3518
  %3532 = vst.msk [vmem:[%s4 + $0x28] sm:$0xff] %vm32, %v3519
  %3533 = vst.msk [vmem:[%s4 + $0x30] sm:$0xff] %vm32, %v3520
  %3534 = vst.msk [vmem:[%s4 + $0x38] sm:$0xff] %vm32, %v3521
  %3535 = vst.msk [vmem:[%s4 + $0x40] sm:$0xff] %vm32, %v3522
  %3536 = vst.msk [vmem:[%s4 + $0x48] sm:$0xff] %vm32, %v3523
  %3537 = vst.msk [vmem:[%s4 + $0x50] sm:$0xff] %vm32, %v3524
  %3538 = vst.msk [vmem:[%s4 + $0x58] sm:$0xff] %vm32, %v3525
  %3539 = vst.msk [vmem:[%s4 + $0x60] sm:$0xf] %vm69, %v3526
  // Predicated region
  $region18: #{tpu_custom_call.1} parent=0 // pred_check
    _
  $region19: #{tpu_custom_call.1} parent=0 // pred_check_branch
    %3541 = sbr.rel (0) target = $region21
  $region20: #{tpu_custom_call.1} parent=0 // pred_region
    _
  $region21: #{tpu_custom_call.1} parent=0 // pred_fallthru
    _
  // Predicated region
  $region22: #{tpu_custom_call.1} parent=0 // pred_check
    _
  $region23: #{tpu_custom_call.1} parent=0 // pred_check_branch
    %3543 = sbr.rel (0) target = $region25
  $region24: #{tpu_custom_call.1} parent=0 // pred_region
    _
  $region25: #{tpu_custom_call.1} parent=0 // pred_fallthru
    _

</llo_original>
